<compile_context>
chip_gen: v5e
topology: v5e:2x2
jax: 0.10.0
libtpu: 0.0.40
codegen_flags: <defaults>
</compile_context>

<pallas_src>
import functools

import jax
import jax.numpy as jnp
import numpy as np
from jax.experimental import pallas as pl
from jax.experimental.pallas import tpu as pltpu


def _round_up(x, m):
    return ((x + m - 1) // m) * m


# ----------------------------------------------------------------------------
# Fused kernel factory: conv stack (stride 1, "same" pad, odd kernel) + heads.
# Activation layout: channels in sublanes, flattened padded spatial in lanes.
# ----------------------------------------------------------------------------
def _make_fused_kernel(H, W, KH, KW, chans_out, cins_p, bn_size, Bs):
    ph, pw = (KH - 1) // 2, (KW - 1) // 2
    Wp = W + KW - 1                      # padded width
    N = H * Wp                           # flattened conv-output length (incl. pad cols)
    off0 = ph * Wp + pw                  # lane offset of interior pixel (h=0, w=0)
    starts = [dh * Wp + dw for dh in range(KH) for dw in range(KW)]
    n_layers = len(chans_out)
    two_bn = 2 * bn_size

    def kernel(*refs):
        x_ref = refs[0]                                   # (Bs, cin_p0, slab_len)
        conv_refs = refs[1:1 + 2 * n_layers]              # (w_taps, bias) per layer
        whd_ref = refs[1 + 2 * n_layers]                  # (H, 2*bn, c_last)
        bhd_ref = refs[2 + 2 * n_layers]                  # (2*bn, 1)
        packed_ref = refs[3 + 2 * n_layers]               # (Bs, 1, 2*bn*W)
        save_ref = refs[4 + 2 * n_layers]                 # (Bs, c_last, H*Wp)
        slabs = refs[5 + 2 * n_layers:]                   # (n_layers-1) inter-layer slabs

        # "same"-padding column mask for the inter-layer slab interior writes
        lane = jax.lax.broadcasted_iota(jnp.int32, (1, N), 1)
        col_mask = (lane % Wp < W).astype(jnp.float32)

        # Cheap (few wide stores) per-step zero of the padded slabs.  This is
        # megacore-safe: with a "parallel" grid axis a core may never execute
        # program_id 0, so one-time init of persistent scratch would be wrong.
        for s in slabs:
            s[...] = jnp.zeros(s.shape, s.dtype)

        for j in range(Bs):
            # ---- conv stack: taps folded as accumulated MXU matmuls ----
            a = None
            for l in range(n_layers):
                w_ref = conv_refs[2 * l]                  # (n_taps, cout, cin_p)
                b_ref = conv_refs[2 * l + 1]              # (cout, 1)
                src = x_ref if l == 0 else slabs[l - 1]   # (Bs, cin_p, slab_len)
                acc = None
                for t, st in enumerate(starts):
                    rhs = src[j, :, st:st + N]            # (cin_p, N) unaligned vld
                    part = jnp.dot(w_ref[t], rhs,
                                   preferred_element_type=jnp.float32)
                    acc = part if acc is None else acc + part
                a = jnp.maximum(acc + b_ref[...], 0.0)    # bias + ReLU, (cout, N)
                if l + 1 < n_layers:
                    # masked interior write: reproduces zero "same" padding
                    slabs[l][j, 0:chans_out[l], off0:off0 + N] = a * col_mask

            # ---- inputs_save: single lane-dense (c_last, H*Wp) store; the
            #      Wp-W pad columns are cropped for free in the wrapper.
            save_ref[j] = a

            # ---- means/vars heads: per-image-row accumulated matmuls ----
            hv = None
            for h in range(H):
                ch = save_ref[j, :, h * Wp:h * Wp + W]    # (c_last, W) valid cols
                part = jnp.dot(whd_ref[h], ch,
                               preferred_element_type=jnp.float32)   # (2bn, W)
                hv = part if hv is None else hv + part
            hv = hv + bhd_ref[...]                        # (2bn, W)

            # pack (2bn, W) -> (1, 2bn*W): one lane-dense 256-wide store
            row = jnp.concatenate([hv[o:o + 1, :] for o in range(two_bn)], axis=1)
            packed_ref[j] = row

    return kernel


# ----------------------------------------------------------------------------
# Fused forward (jitted); wrapper-side ops are tiny pads / reshapes / slices.
# ----------------------------------------------------------------------------
@functools.partial(jax.jit,
                   static_argnames=("H", "W", "KH", "KW", "chans_in",
                                    "chans_out", "bn_size", "grid_steps"))
def _fused_forward(x, conv_params, wm, bm, wv, bv, *,
                   H, W, KH, KW, chans_in, chans_out, bn_size, grid_steps):
    B = x.shape[0]
    G = grid_steps
    Bs = B // G
    ph, pw = (KH - 1) // 2, (KW - 1) // 2
    Wp = W + KW - 1
    Hp = H + KH - 1
    N = H * Wp
    slab_len = (Hp + 1) * Wp            # extra zero row so every tap slice fits
    off0 = ph * Wp + pw
    n_taps = KH * KW
    c_last = chans_out[-1]
    n_layers = len(chans_in)
    cins_p = tuple(_round_up(c, 8) for c in chans_in)

    # --- layer-0 padded slab built here (removes the in-kernel scatter) ---
    cin0 = chans_in[0]
    xp = jnp.pad(x, ((0, 0), (0, cins_p[0] - cin0), (0, 0), (0, Wp - W)))
    xp = xp.reshape(B, cins_p[0], H * Wp)
    xp = jnp.pad(xp, ((0, 0), (0, 0), (off0, slab_len - off0 - H * Wp)))

    # --- conv weights: one (n_taps, cout, cin_p) slab per layer ---
    conv_args = []
    for (w, b), cin_p in zip(conv_params, cins_p):
        cout, cin = int(w.shape[0]), int(w.shape[1])
        w_t = jnp.transpose(w, (2, 3, 0, 1)).reshape(n_taps, cout, cin)
        w_t = jnp.pad(w_t, ((0, 0), (0, 0), (0, cin_p - cin)))
        conv_args += [w_t, b.reshape(cout, 1)]

    # --- heads: per-image-row weight slices; PyTorch flat index d = c*H + h ---
    w_heads = jnp.concatenate([wm, wv], axis=0)                       # (2bn, c_last*H)
    whd = jnp.transpose(w_heads.reshape(2 * bn_size, c_last, H), (2, 0, 1))  # (H, 2bn, c_last)
    bhd = jnp.concatenate([bm, bv], axis=0).reshape(2 * bn_size, 1)

    kernel = _make_fused_kernel(H, W, KH, KW, chans_out, cins_p, bn_size, Bs)

    in_specs = [pl.BlockSpec((Bs, cins_p[0], slab_len), lambda g: (g, 0, 0))]
    for cout, cin_p in zip(chans_out, cins_p):
        in_specs.append(pl.BlockSpec((n_taps, cout, cin_p), lambda g: (0, 0, 0)))
        in_specs.append(pl.BlockSpec((cout, 1), lambda g: (0, 0)))
    in_specs += [
        pl.BlockSpec((H, 2 * bn_size, c_last), lambda g: (0, 0, 0)),
        pl.BlockSpec((2 * bn_size, 1), lambda g: (0, 0)),
    ]
    out_specs = (
        pl.BlockSpec((Bs, 1, 2 * bn_size * W), lambda g: (g, 0, 0)),   # packed heads
        pl.BlockSpec((Bs, c_last, H * Wp), lambda g: (g, 0, 0)),       # padded save
    )
    out_shape = (
        jax.ShapeDtypeStruct((B, 1, 2 * bn_size * W), jnp.float32),
        jax.ShapeDtypeStruct((B, c_last, H * Wp), jnp.float32),
    )
    scratch_shapes = [pltpu.VMEM((Bs, cins_p[l], slab_len), jnp.float32)
                      for l in range(1, n_layers)]

    packed, save_p = pl.pallas_call(
        kernel,
        out_shape=out_shape,
        grid=(G,),
        in_specs=in_specs,
        out_specs=out_specs,
        scratch_shapes=scratch_shapes,
        compiler_params=pltpu.CompilerParams(
            dimension_semantics=("parallel",)),   # grid of 2 feeds both v7x cores
    )(xp, *conv_args, whd, bhd)

    hv = packed.reshape(B, 2, bn_size, W)          # free reshape + split
    means = hv[:, 0]
    variances = hv[:, 1]
    inputs_save = save_p.reshape(B, c_last, H, Wp)[:, :, :, :W]   # crop width pad
    return means, variances, inputs_save


# ----------------------------------------------------------------------------
# Public forward (mirrors VAECNNEncoderNopool.forward)
# ----------------------------------------------------------------------------
def vae_cnn_encoder_nopool(x_nchw, params, grid_steps=None):
    conv_params, (wm, bm), (wv, bv) = params
    B, _, H, W = x_nchw.shape
    KH, KW = int(conv_params[0][0].shape[2]), int(conv_params[0][0].shape[3])
    chans_in = tuple(int(w.shape[1]) for (w, _) in conv_params)
    chans_out = tuple(int(w.shape[0]) for (w, _) in conv_params)
    bn_size = int(wm.shape[0])
    if grid_steps is None:
        # 2 grid steps keeps both v7x TensorCores busy; single-TC v5e/v6e can
        # pass grid_steps=1 to fold the whole batch into one step.
        grid_steps = 2 if (B >= 2 and B % 2 == 0) else 1
    if B % grid_steps:
        grid_steps = 1
    means, variances, inputs_save = _fused_forward(
        x_nchw, conv_params, wm, bm, wv, bv,
        H=int(H), W=int(W), KH=KH, KW=KW,
        chans_in=chans_in, chans_out=chans_out, bn_size=bn_size,
        grid_steps=int(grid_steps))
    return means, variances, int(W), inputs_save


# ----------------------------------------------------------------------------
# Pure-JAX reference (for correctness check only)
# ----------------------------------------------------------------------------
def ref_forward(x, params):
    conv_params, (wm, bm), (wv, bv) = params
    KH, KW = int(conv_params[0][0].shape[2]), int(conv_params[0][0].shape[3])
    ph, pw = (KH - 1) // 2, (KW - 1) // 2
    h = x
    for (w, b) in conv_params:
        h = jax.lax.conv_general_dilated(
            h, w, window_strides=(1, 1), padding=((ph, ph), (pw, pw)),
            dimension_numbers=('NCHW', 'OIHW', 'NCHW'))
        h = jnp.maximum(h + b[None, :, None, None], 0.0)
    saved = h
    B, C, H, W = h.shape
    flat = h.reshape(B, C * H, W)
    means = jnp.einsum('od,bdw->bow', wm, flat) + bm[None, :, None]
    vars_ = jnp.einsum('od,bdw->bow', wv, flat) + bv[None, :, None]
    return means, vars_, W, saved


if __name__ == "__main__":
    # Module hyper-parameters (small, consistent with the PyTorch __init__)
    input_h, input_w = 16, 16
    in_channels = (4, 8)
    out_channels = (8, 8)
    kernel = (3, 3)
    bn_size = 8
    B = 2
    cnn_out_dim = out_channels[-1] * input_h       # 128

    key = jax.random.PRNGKey(0)
    keys = jax.random.split(key, 16)
    ki = iter(keys)

    # Deterministic synthetic parameters (PyTorch weight layouts).
    conv_params = []
    for cin, cout in zip(in_channels, out_channels):
        w = 0.1 * jax.random.normal(next(ki), (cout, cin, kernel[0], kernel[1]),
                                    dtype=jnp.float32)
        b = 0.05 * jax.random.normal(next(ki), (cout,), dtype=jnp.float32)
        conv_params.append((w, b))
    wm = 0.1 * jax.random.normal(next(ki), (bn_size, cnn_out_dim), dtype=jnp.float32)
    bm = 0.05 * jax.random.normal(next(ki), (bn_size,), dtype=jnp.float32)
    wv = 0.1 * jax.random.normal(next(ki), (bn_size, cnn_out_dim), dtype=jnp.float32)
    bv = 0.05 * jax.random.normal(next(ki), (bn_size,), dtype=jnp.float32)
    params = (conv_params, (wm, bm), (wv, bv))

    # Input: NCHW, like the PyTorch module.
    x = jax.random.normal(next(ki), (B, in_channels[0], input_h, input_w),
                          dtype=jnp.float32)

    r_means, r_vars, r_w, r_save = ref_forward(x, params)

    # Default path: grid=(2,) "parallel" (one image per step, both v7x cores).
    means, variances, w_change, inputs_save = jax.block_until_ready(
        vae_cnn_encoder_nopool(x, params))
    assert w_change == r_w
    np.testing.assert_allclose(np.asarray(means), np.asarray(r_means),
                               rtol=1e-4, atol=1e-4)
    np.testing.assert_allclose(np.asarray(variances), np.asarray(r_vars),
                               rtol=1e-4, atol=1e-4)
    np.testing.assert_allclose(np.asarray(inputs_save), np.asarray(r_save),
                               rtol=1e-4, atol=1e-4)

    # Single-step path (batch folded into one grid step; best on v5e/v6e).
    means1, vars1, w1, save1 = jax.block_until_ready(
        vae_cnn_encoder_nopool(x, params, grid_steps=1))
    assert w1 == r_w
    np.testing.assert_allclose(np.asarray(means1), np.asarray(r_means),
                               rtol=1e-4, atol=1e-4)
    np.testing.assert_allclose(np.asarray(vars1), np.asarray(r_vars),
                               rtol=1e-4, atol=1e-4)
    np.testing.assert_allclose(np.asarray(save1), np.asarray(r_save),
                               rtol=1e-4, atol=1e-4)

    print("KERNEL_OK")
</pallas_src>

<mosaic_0001>
module attributes {stable_mosaic.version = 11 : i64} {
  func.func @kernel(%arg0: i32, %arg1: memref<1x8x342xf32, #tpu.memory_space<vmem>>, %arg2: memref<9x8x8xf32, #tpu.memory_space<vmem>>, %arg3: memref<8x1xf32, #tpu.memory_space<vmem>>, %arg4: memref<9x8x8xf32, #tpu.memory_space<vmem>>, %arg5: memref<8x1xf32, #tpu.memory_space<vmem>>, %arg6: memref<16x16x8xf32, #tpu.memory_space<vmem>>, %arg7: memref<16x1xf32, #tpu.memory_space<vmem>>, %arg8: memref<1x1x256xf32, #tpu.memory_space<vmem>>, %arg9: memref<1x8x288xf32, #tpu.memory_space<vmem>>, %arg10: memref<1x8x342xf32, #tpu.memory_space<vmem>>) attributes {dimension_semantics = [#tpu.dimension_semantics<parallel>], iteration_bounds = array<i64: 2>, scalar_prefetch = 0 : i64, scratch_operands = 1 : i64, tpu.core_type = #tpu.core_type<tc>, window_params = [{transform_indices = @transform_0, window_bounds = array<i64: 1, 8, 342>}, {pipeline_mode = #tpu.pipeline_mode<synchronous>, transform_indices = @transform_1, window_bounds = array<i64: 9, 8, 8>}, {pipeline_mode = #tpu.pipeline_mode<synchronous>, transform_indices = @transform_2, window_bounds = array<i64: 8, 1>}, {pipeline_mode = #tpu.pipeline_mode<synchronous>, transform_indices = @transform_3, window_bounds = array<i64: 9, 8, 8>}, {pipeline_mode = #tpu.pipeline_mode<synchronous>, transform_indices = @transform_4, window_bounds = array<i64: 8, 1>}, {pipeline_mode = #tpu.pipeline_mode<synchronous>, transform_indices = @transform_5, window_bounds = array<i64: 16, 16, 8>}, {pipeline_mode = #tpu.pipeline_mode<synchronous>, transform_indices = @transform_6, window_bounds = array<i64: 16, 1>}, {transform_indices = @transform_7, window_bounds = array<i64: 1, 1, 256>}, {transform_indices = @transform_8, window_bounds = array<i64: 1, 8, 288>}]} {
    %0 = tpu.iota {dimensions = array<i32: 1>} : vector<1x288xi32>
    %c18_i32 = arith.constant 18 : i32
    %c0_i32 = arith.constant 0 : i32
    %1 = arith.cmpi eq, %c18_i32, %c0_i32 : i32
    %c1_i32 = arith.constant 1 : i32
    %2 = arith.select %1, %c1_i32, %c18_i32 : i32
    %3 = vector.broadcast %2 : i32 to vector<1x288xi32>
    %4 = arith.remsi %0, %3 : vector<1x288xi32>
    %c0_i32_0 = arith.constant 0 : i32
    %5 = vector.broadcast %c0_i32_0 : i32 to vector<1x288xi32>
    %6 = arith.cmpi ne, %4, %5 : vector<1x288xi32>
    %c0_i32_1 = arith.constant 0 : i32
    %7 = vector.broadcast %c0_i32_1 : i32 to vector<1x288xi32>
    %8 = arith.cmpi slt, %4, %7 : vector<1x288xi32>
    %c0_i32_2 = arith.constant 0 : i32
    %9 = arith.cmpi slt, %2, %c0_i32_2 : i32
    %10 = vector.broadcast %9 : i1 to vector<1x288xi1>
    %11 = vector.broadcast %10 : vector<1x288xi1> to vector<1x288xi1>
    %12 = arith.xori %8, %11 : vector<1x288xi1>
    %13 = arith.andi %12, %6 : vector<1x288xi1>
    %14 = vector.broadcast %2 : i32 to vector<1x288xi32>
    %15 = arith.addi %4, %14 : vector<1x288xi32>
    %16 = arith.select %13, %15, %4 : vector<1x288xi1>, vector<1x288xi32>
    %c16_i32 = arith.constant 16 : i32
    %17 = vector.broadcast %c16_i32 : i32 to vector<1x288xi32>
    %18 = arith.cmpi slt, %16, %17 : vector<1x288xi32>
    %19 = arith.extui %18 : vector<1x288xi1> to vector<1x288xi32>
    %20 = arith.sitofp %19 : vector<1x288xi32> to vector<1x288xf32>
    %cst = arith.constant 0.000000e+00 : f32
    %21 = vector.broadcast %cst : f32 to vector<1x8x342xf32>
    %c0 = arith.constant 0 : index
    %c0_3 = arith.constant 0 : index
    %c0_4 = arith.constant 0 : index
    %22 = vector.load %arg10[%c0, %c0_3, %c0_4] : memref<1x8x342xf32, #tpu.memory_space<vmem>>, vector<1x8x342xf32>
    tpu.vector_store %arg10[%c0, %c0_3, %c0_4], %21 {strides = array<i32>} : memref<1x8x342xf32, #tpu.memory_space<vmem>>, vector<1x8x342xf32>,
    %c0_5 = arith.constant 0 : index
    %c0_6 = arith.constant 0 : index
    %c0_7 = arith.constant 0 : index
    %23 = vector.load %arg1[%c0_5, %c0_6, %c0_7] : memref<1x8x342xf32, #tpu.memory_space<vmem>>, vector<1x8x288xf32>
    %24 = vector.shape_cast %23 : vector<1x8x288xf32> to vector<8x288xf32>
    %c0_8 = arith.constant 0 : index
    %c0_9 = arith.constant 0 : index
    %c0_10 = arith.constant 0 : index
    %25 = vector.load %arg2[%c0_8, %c0_9, %c0_10] : memref<9x8x8xf32, #tpu.memory_space<vmem>>, vector<1x8x8xf32>
    %26 = vector.shape_cast %25 : vector<1x8x8xf32> to vector<8x8xf32>
    %cst_11 = arith.constant dense<0.000000e+00> : vector<8x288xf32>
    %27 = tpu.matmul %26, %24, %cst_11 {dimension_numbers = #tpu.dot_dimension_numbers<[1], [0], [0], [1], [0, 0, 1, 1], [], []>} : vector<8x8xf32>, vector<8x288xf32>, vector<8x288xf32> -> vector<8x288xf32>
    %c0_12 = arith.constant 0 : index
    %c0_13 = arith.constant 0 : index
    %c1 = arith.constant 1 : index
    %28 = vector.load %arg1[%c0_12, %c0_13, %c1] : memref<1x8x342xf32, #tpu.memory_space<vmem>>, vector<1x8x288xf32>
    %29 = vector.shape_cast %28 : vector<1x8x288xf32> to vector<8x288xf32>
    %c1_14 = arith.constant 1 : index
    %c0_15 = arith.constant 0 : index
    %c0_16 = arith.constant 0 : index
    %30 = vector.load %arg2[%c1_14, %c0_15, %c0_16] : memref<9x8x8xf32, #tpu.memory_space<vmem>>, vector<1x8x8xf32>
    %31 = vector.shape_cast %30 : vector<1x8x8xf32> to vector<8x8xf32>
    %cst_17 = arith.constant dense<0.000000e+00> : vector<8x288xf32>
    %32 = tpu.matmul %31, %29, %cst_17 {dimension_numbers = #tpu.dot_dimension_numbers<[1], [0], [0], [1], [0, 0, 1, 1], [], []>} : vector<8x8xf32>, vector<8x288xf32>, vector<8x288xf32> -> vector<8x288xf32>
    %33 = arith.addf %27, %32 : vector<8x288xf32>
    %c0_18 = arith.constant 0 : index
    %c0_19 = arith.constant 0 : index
    %c2 = arith.constant 2 : index
    %34 = vector.load %arg1[%c0_18, %c0_19, %c2] : memref<1x8x342xf32, #tpu.memory_space<vmem>>, vector<1x8x288xf32>
    %35 = vector.shape_cast %34 : vector<1x8x288xf32> to vector<8x288xf32>
    %c2_20 = arith.constant 2 : index
    %c0_21 = arith.constant 0 : index
    %c0_22 = arith.constant 0 : index
    %36 = vector.load %arg2[%c2_20, %c0_21, %c0_22] : memref<9x8x8xf32, #tpu.memory_space<vmem>>, vector<1x8x8xf32>
    %37 = vector.shape_cast %36 : vector<1x8x8xf32> to vector<8x8xf32>
    %cst_23 = arith.constant dense<0.000000e+00> : vector<8x288xf32>
    %38 = tpu.matmul %37, %35, %cst_23 {dimension_numbers = #tpu.dot_dimension_numbers<[1], [0], [0], [1], [0, 0, 1, 1], [], []>} : vector<8x8xf32>, vector<8x288xf32>, vector<8x288xf32> -> vector<8x288xf32>
    %39 = arith.addf %33, %38 : vector<8x288xf32>
    %c0_24 = arith.constant 0 : index
    %c0_25 = arith.constant 0 : index
    %c18 = arith.constant 18 : index
    %40 = vector.load %arg1[%c0_24, %c0_25, %c18] : memref<1x8x342xf32, #tpu.memory_space<vmem>>, vector<1x8x288xf32>
    %41 = vector.shape_cast %40 : vector<1x8x288xf32> to vector<8x288xf32>
    %c3 = arith.constant 3 : index
    %c0_26 = arith.constant 0 : index
    %c0_27 = arith.constant 0 : index
    %42 = vector.load %arg2[%c3, %c0_26, %c0_27] : memref<9x8x8xf32, #tpu.memory_space<vmem>>, vector<1x8x8xf32>
    %43 = vector.shape_cast %42 : vector<1x8x8xf32> to vector<8x8xf32>
    %cst_28 = arith.constant dense<0.000000e+00> : vector<8x288xf32>
    %44 = tpu.matmul %43, %41, %cst_28 {dimension_numbers = #tpu.dot_dimension_numbers<[1], [0], [0], [1], [0, 0, 1, 1], [], []>} : vector<8x8xf32>, vector<8x288xf32>, vector<8x288xf32> -> vector<8x288xf32>
    %45 = arith.addf %39, %44 : vector<8x288xf32>
    %c0_29 = arith.constant 0 : index
    %c0_30 = arith.constant 0 : index
    %c19 = arith.constant 19 : index
    %46 = vector.load %arg1[%c0_29, %c0_30, %c19] : memref<1x8x342xf32, #tpu.memory_space<vmem>>, vector<1x8x288xf32>
    %47 = vector.shape_cast %46 : vector<1x8x288xf32> to vector<8x288xf32>
    %c4 = arith.constant 4 : index
    %c0_31 = arith.constant 0 : index
    %c0_32 = arith.constant 0 : index
    %48 = vector.load %arg2[%c4, %c0_31, %c0_32] : memref<9x8x8xf32, #tpu.memory_space<vmem>>, vector<1x8x8xf32>
    %49 = vector.shape_cast %48 : vector<1x8x8xf32> to vector<8x8xf32>
    %cst_33 = arith.constant dense<0.000000e+00> : vector<8x288xf32>
    %50 = tpu.matmul %49, %47, %cst_33 {dimension_numbers = #tpu.dot_dimension_numbers<[1], [0], [0], [1], [0, 0, 1, 1], [], []>} : vector<8x8xf32>, vector<8x288xf32>, vector<8x288xf32> -> vector<8x288xf32>
    %51 = arith.addf %45, %50 : vector<8x288xf32>
    %c0_34 = arith.constant 0 : index
    %c0_35 = arith.constant 0 : index
    %c20 = arith.constant 20 : index
    %52 = vector.load %arg1[%c0_34, %c0_35, %c20] : memref<1x8x342xf32, #tpu.memory_space<vmem>>, vector<1x8x288xf32>
    %53 = vector.shape_cast %52 : vector<1x8x288xf32> to vector<8x288xf32>
    %c5 = arith.constant 5 : index
    %c0_36 = arith.constant 0 : index
    %c0_37 = arith.constant 0 : index
    %54 = vector.load %arg2[%c5, %c0_36, %c0_37] : memref<9x8x8xf32, #tpu.memory_space<vmem>>, vector<1x8x8xf32>
    %55 = vector.shape_cast %54 : vector<1x8x8xf32> to vector<8x8xf32>
    %cst_38 = arith.constant dense<0.000000e+00> : vector<8x288xf32>
    %56 = tpu.matmul %55, %53, %cst_38 {dimension_numbers = #tpu.dot_dimension_numbers<[1], [0], [0], [1], [0, 0, 1, 1], [], []>} : vector<8x8xf32>, vector<8x288xf32>, vector<8x288xf32> -> vector<8x288xf32>
    %57 = arith.addf %51, %56 : vector<8x288xf32>
    %c0_39 = arith.constant 0 : index
    %c0_40 = arith.constant 0 : index
    %c36 = arith.constant 36 : index
    %58 = vector.load %arg1[%c0_39, %c0_40, %c36] : memref<1x8x342xf32, #tpu.memory_space<vmem>>, vector<1x8x288xf32>
    %59 = vector.shape_cast %58 : vector<1x8x288xf32> to vector<8x288xf32>
    %c6 = arith.constant 6 : index
    %c0_41 = arith.constant 0 : index
    %c0_42 = arith.constant 0 : index
    %60 = vector.load %arg2[%c6, %c0_41, %c0_42] : memref<9x8x8xf32, #tpu.memory_space<vmem>>, vector<1x8x8xf32>
    %61 = vector.shape_cast %60 : vector<1x8x8xf32> to vector<8x8xf32>
    %cst_43 = arith.constant dense<0.000000e+00> : vector<8x288xf32>
    %62 = tpu.matmul %61, %59, %cst_43 {dimension_numbers = #tpu.dot_dimension_numbers<[1], [0], [0], [1], [0, 0, 1, 1], [], []>} : vector<8x8xf32>, vector<8x288xf32>, vector<8x288xf32> -> vector<8x288xf32>
    %63 = arith.addf %57, %62 : vector<8x288xf32>
    %c0_44 = arith.constant 0 : index
    %c0_45 = arith.constant 0 : index
    %c37 = arith.constant 37 : index
    %64 = vector.load %arg1[%c0_44, %c0_45, %c37] : memref<1x8x342xf32, #tpu.memory_space<vmem>>, vector<1x8x288xf32>
    %65 = vector.shape_cast %64 : vector<1x8x288xf32> to vector<8x288xf32>
    %c7 = arith.constant 7 : index
    %c0_46 = arith.constant 0 : index
    %c0_47 = arith.constant 0 : index
    %66 = vector.load %arg2[%c7, %c0_46, %c0_47] : memref<9x8x8xf32, #tpu.memory_space<vmem>>, vector<1x8x8xf32>
    %67 = vector.shape_cast %66 : vector<1x8x8xf32> to vector<8x8xf32>
    %cst_48 = arith.constant dense<0.000000e+00> : vector<8x288xf32>
    %68 = tpu.matmul %67, %65, %cst_48 {dimension_numbers = #tpu.dot_dimension_numbers<[1], [0], [0], [1], [0, 0, 1, 1], [], []>} : vector<8x8xf32>, vector<8x288xf32>, vector<8x288xf32> -> vector<8x288xf32>
    %69 = arith.addf %63, %68 : vector<8x288xf32>
    %c0_49 = arith.constant 0 : index
    %c0_50 = arith.constant 0 : index
    %c38 = arith.constant 38 : index
    %70 = vector.load %arg1[%c0_49, %c0_50, %c38] : memref<1x8x342xf32, #tpu.memory_space<vmem>>, vector<1x8x288xf32>
    %71 = vector.shape_cast %70 : vector<1x8x288xf32> to vector<8x288xf32>
    %c8 = arith.constant 8 : index
    %c0_51 = arith.constant 0 : index
    %c0_52 = arith.constant 0 : index
    %72 = vector.load %arg2[%c8, %c0_51, %c0_52] : memref<9x8x8xf32, #tpu.memory_space<vmem>>, vector<1x8x8xf32>
    %73 = vector.shape_cast %72 : vector<1x8x8xf32> to vector<8x8xf32>
    %cst_53 = arith.constant dense<0.000000e+00> : vector<8x288xf32>
    %74 = tpu.matmul %73, %71, %cst_53 {dimension_numbers = #tpu.dot_dimension_numbers<[1], [0], [0], [1], [0, 0, 1, 1], [], []>} : vector<8x8xf32>, vector<8x288xf32>, vector<8x288xf32> -> vector<8x288xf32>
    %75 = arith.addf %69, %74 : vector<8x288xf32>
    %c0_54 = arith.constant 0 : index
    %c0_55 = arith.constant 0 : index
    %76 = vector.load %arg3[%c0_54, %c0_55] : memref<8x1xf32, #tpu.memory_space<vmem>>, vector<8x1xf32>
    %77 = vector.broadcast %76 : vector<8x1xf32> to vector<8x288xf32>
    %78 = arith.addf %75, %77 : vector<8x288xf32>
    %cst_56 = arith.constant 0.000000e+00 : f32
    %79 = vector.broadcast %cst_56 : f32 to vector<8x288xf32>
    %80 = arith.maximumf %78, %79 : vector<8x288xf32>
    %81 = vector.broadcast %20 : vector<1x288xf32> to vector<8x288xf32>
    %82 = arith.mulf %80, %81 : vector<8x288xf32>
    %c0_57 = arith.constant 0 : index
    %c0_58 = arith.constant 0 : index
    %c19_59 = arith.constant 19 : index
    %83 = vector.load %arg10[%c0_57, %c0_58, %c19_59] : memref<1x8x342xf32, #tpu.memory_space<vmem>>, vector<1x8x288xf32>
    %84 = vector.shape_cast %83 : vector<1x8x288xf32> to vector<8x288xf32>
    %85 = vector.shape_cast %82 : vector<8x288xf32> to vector<1x8x288xf32>
    tpu.vector_store %arg10[%c0_57, %c0_58, %c19_59], %85 {strides = array<i32>} : memref<1x8x342xf32, #tpu.memory_space<vmem>>, vector<1x8x288xf32>,
    %c0_60 = arith.constant 0 : index
    %c0_61 = arith.constant 0 : index
    %c0_62 = arith.constant 0 : index
    %86 = vector.load %arg10[%c0_60, %c0_61, %c0_62] : memref<1x8x342xf32, #tpu.memory_space<vmem>>, vector<1x8x288xf32>
    %87 = vector.shape_cast %86 : vector<1x8x288xf32> to vector<8x288xf32>
    %c0_63 = arith.constant 0 : index
    %c0_64 = arith.constant 0 : index
    %c0_65 = arith.constant 0 : index
    %88 = vector.load %arg4[%c0_63, %c0_64, %c0_65] : memref<9x8x8xf32, #tpu.memory_space<vmem>>, vector<1x8x8xf32>
    %89 = vector.shape_cast %88 : vector<1x8x8xf32> to vector<8x8xf32>
    %cst_66 = arith.constant dense<0.000000e+00> : vector<8x288xf32>
    %90 = tpu.matmul %89, %87, %cst_66 {dimension_numbers = #tpu.dot_dimension_numbers<[1], [0], [0], [1], [0, 0, 1, 1], [], []>} : vector<8x8xf32>, vector<8x288xf32>, vector<8x288xf32> -> vector<8x288xf32>
    %c0_67 = arith.constant 0 : index
    %c0_68 = arith.constant 0 : index
    %c1_69 = arith.constant 1 : index
    %91 = vector.load %arg10[%c0_67, %c0_68, %c1_69] : memref<1x8x342xf32, #tpu.memory_space<vmem>>, vector<1x8x288xf32>
    %92 = vector.shape_cast %91 : vector<1x8x288xf32> to vector<8x288xf32>
    %c1_70 = arith.constant 1 : index
    %c0_71 = arith.constant 0 : index
    %c0_72 = arith.constant 0 : index
    %93 = vector.load %arg4[%c1_70, %c0_71, %c0_72] : memref<9x8x8xf32, #tpu.memory_space<vmem>>, vector<1x8x8xf32>
    %94 = vector.shape_cast %93 : vector<1x8x8xf32> to vector<8x8xf32>
    %cst_73 = arith.constant dense<0.000000e+00> : vector<8x288xf32>
    %95 = tpu.matmul %94, %92, %cst_73 {dimension_numbers = #tpu.dot_dimension_numbers<[1], [0], [0], [1], [0, 0, 1, 1], [], []>} : vector<8x8xf32>, vector<8x288xf32>, vector<8x288xf32> -> vector<8x288xf32>
    %96 = arith.addf %90, %95 : vector<8x288xf32>
    %c0_74 = arith.constant 0 : index
    %c0_75 = arith.constant 0 : index
    %c2_76 = arith.constant 2 : index
    %97 = vector.load %arg10[%c0_74, %c0_75, %c2_76] : memref<1x8x342xf32, #tpu.memory_space<vmem>>, vector<1x8x288xf32>
    %98 = vector.shape_cast %97 : vector<1x8x288xf32> to vector<8x288xf32>
    %c2_77 = arith.constant 2 : index
    %c0_78 = arith.constant 0 : index
    %c0_79 = arith.constant 0 : index
    %99 = vector.load %arg4[%c2_77, %c0_78, %c0_79] : memref<9x8x8xf32, #tpu.memory_space<vmem>>, vector<1x8x8xf32>
    %100 = vector.shape_cast %99 : vector<1x8x8xf32> to vector<8x8xf32>
    %cst_80 = arith.constant dense<0.000000e+00> : vector<8x288xf32>
    %101 = tpu.matmul %100, %98, %cst_80 {dimension_numbers = #tpu.dot_dimension_numbers<[1], [0], [0], [1], [0, 0, 1, 1], [], []>} : vector<8x8xf32>, vector<8x288xf32>, vector<8x288xf32> -> vector<8x288xf32>
    %102 = arith.addf %96, %101 : vector<8x288xf32>
    %c0_81 = arith.constant 0 : index
    %c0_82 = arith.constant 0 : index
    %c18_83 = arith.constant 18 : index
    %103 = vector.load %arg10[%c0_81, %c0_82, %c18_83] : memref<1x8x342xf32, #tpu.memory_space<vmem>>, vector<1x8x288xf32>
    %104 = vector.shape_cast %103 : vector<1x8x288xf32> to vector<8x288xf32>
    %c3_84 = arith.constant 3 : index
    %c0_85 = arith.constant 0 : index
    %c0_86 = arith.constant 0 : index
    %105 = vector.load %arg4[%c3_84, %c0_85, %c0_86] : memref<9x8x8xf32, #tpu.memory_space<vmem>>, vector<1x8x8xf32>
    %106 = vector.shape_cast %105 : vector<1x8x8xf32> to vector<8x8xf32>
    %cst_87 = arith.constant dense<0.000000e+00> : vector<8x288xf32>
    %107 = tpu.matmul %106, %104, %cst_87 {dimension_numbers = #tpu.dot_dimension_numbers<[1], [0], [0], [1], [0, 0, 1, 1], [], []>} : vector<8x8xf32>, vector<8x288xf32>, vector<8x288xf32> -> vector<8x288xf32>
    %108 = arith.addf %102, %107 : vector<8x288xf32>
    %c0_88 = arith.constant 0 : index
    %c0_89 = arith.constant 0 : index
    %c19_90 = arith.constant 19 : index
    %109 = vector.load %arg10[%c0_88, %c0_89, %c19_90] : memref<1x8x342xf32, #tpu.memory_space<vmem>>, vector<1x8x288xf32>
    %110 = vector.shape_cast %109 : vector<1x8x288xf32> to vector<8x288xf32>
    %c4_91 = arith.constant 4 : index
    %c0_92 = arith.constant 0 : index
    %c0_93 = arith.constant 0 : index
    %111 = vector.load %arg4[%c4_91, %c0_92, %c0_93] : memref<9x8x8xf32, #tpu.memory_space<vmem>>, vector<1x8x8xf32>
    %112 = vector.shape_cast %111 : vector<1x8x8xf32> to vector<8x8xf32>
    %cst_94 = arith.constant dense<0.000000e+00> : vector<8x288xf32>
    %113 = tpu.matmul %112, %110, %cst_94 {dimension_numbers = #tpu.dot_dimension_numbers<[1], [0], [0], [1], [0, 0, 1, 1], [], []>} : vector<8x8xf32>, vector<8x288xf32>, vector<8x288xf32> -> vector<8x288xf32>
    %114 = arith.addf %108, %113 : vector<8x288xf32>
    %c0_95 = arith.constant 0 : index
    %c0_96 = arith.constant 0 : index
    %c20_97 = arith.constant 20 : index
    %115 = vector.load %arg10[%c0_95, %c0_96, %c20_97] : memref<1x8x342xf32, #tpu.memory_space<vmem>>, vector<1x8x288xf32>
    %116 = vector.shape_cast %115 : vector<1x8x288xf32> to vector<8x288xf32>
    %c5_98 = arith.constant 5 : index
    %c0_99 = arith.constant 0 : index
    %c0_100 = arith.constant 0 : index
    %117 = vector.load %arg4[%c5_98, %c0_99, %c0_100] : memref<9x8x8xf32, #tpu.memory_space<vmem>>, vector<1x8x8xf32>
    %118 = vector.shape_cast %117 : vector<1x8x8xf32> to vector<8x8xf32>
    %cst_101 = arith.constant dense<0.000000e+00> : vector<8x288xf32>
    %119 = tpu.matmul %118, %116, %cst_101 {dimension_numbers = #tpu.dot_dimension_numbers<[1], [0], [0], [1], [0, 0, 1, 1], [], []>} : vector<8x8xf32>, vector<8x288xf32>, vector<8x288xf32> -> vector<8x288xf32>
    %120 = arith.addf %114, %119 : vector<8x288xf32>
    %c0_102 = arith.constant 0 : index
    %c0_103 = arith.constant 0 : index
    %c36_104 = arith.constant 36 : index
    %121 = vector.load %arg10[%c0_102, %c0_103, %c36_104] : memref<1x8x342xf32, #tpu.memory_space<vmem>>, vector<1x8x288xf32>
    %122 = vector.shape_cast %121 : vector<1x8x288xf32> to vector<8x288xf32>
    %c6_105 = arith.constant 6 : index
    %c0_106 = arith.constant 0 : index
    %c0_107 = arith.constant 0 : index
    %123 = vector.load %arg4[%c6_105, %c0_106, %c0_107] : memref<9x8x8xf32, #tpu.memory_space<vmem>>, vector<1x8x8xf32>
    %124 = vector.shape_cast %123 : vector<1x8x8xf32> to vector<8x8xf32>
    %cst_108 = arith.constant dense<0.000000e+00> : vector<8x288xf32>
    %125 = tpu.matmul %124, %122, %cst_108 {dimension_numbers = #tpu.dot_dimension_numbers<[1], [0], [0], [1], [0, 0, 1, 1], [], []>} : vector<8x8xf32>, vector<8x288xf32>, vector<8x288xf32> -> vector<8x288xf32>
    %126 = arith.addf %120, %125 : vector<8x288xf32>
    %c0_109 = arith.constant 0 : index
    %c0_110 = arith.constant 0 : index
    %c37_111 = arith.constant 37 : index
    %127 = vector.load %arg10[%c0_109, %c0_110, %c37_111] : memref<1x8x342xf32, #tpu.memory_space<vmem>>, vector<1x8x288xf32>
    %128 = vector.shape_cast %127 : vector<1x8x288xf32> to vector<8x288xf32>
    %c7_112 = arith.constant 7 : index
    %c0_113 = arith.constant 0 : index
    %c0_114 = arith.constant 0 : index
    %129 = vector.load %arg4[%c7_112, %c0_113, %c0_114] : memref<9x8x8xf32, #tpu.memory_space<vmem>>, vector<1x8x8xf32>
    %130 = vector.shape_cast %129 : vector<1x8x8xf32> to vector<8x8xf32>
    %cst_115 = arith.constant dense<0.000000e+00> : vector<8x288xf32>
    %131 = tpu.matmul %130, %128, %cst_115 {dimension_numbers = #tpu.dot_dimension_numbers<[1], [0], [0], [1], [0, 0, 1, 1], [], []>} : vector<8x8xf32>, vector<8x288xf32>, vector<8x288xf32> -> vector<8x288xf32>
    %132 = arith.addf %126, %131 : vector<8x288xf32>
    %c0_116 = arith.constant 0 : index
    %c0_117 = arith.constant 0 : index
    %c38_118 = arith.constant 38 : index
    %133 = vector.load %arg10[%c0_116, %c0_117, %c38_118] : memref<1x8x342xf32, #tpu.memory_space<vmem>>, vector<1x8x288xf32>
    %134 = vector.shape_cast %133 : vector<1x8x288xf32> to vector<8x288xf32>
    %c8_119 = arith.constant 8 : index
    %c0_120 = arith.constant 0 : index
    %c0_121 = arith.constant 0 : index
    %135 = vector.load %arg4[%c8_119, %c0_120, %c0_121] : memref<9x8x8xf32, #tpu.memory_space<vmem>>, vector<1x8x8xf32>
    %136 = vector.shape_cast %135 : vector<1x8x8xf32> to vector<8x8xf32>
    %cst_122 = arith.constant dense<0.000000e+00> : vector<8x288xf32>
    %137 = tpu.matmul %136, %134, %cst_122 {dimension_numbers = #tpu.dot_dimension_numbers<[1], [0], [0], [1], [0, 0, 1, 1], [], []>} : vector<8x8xf32>, vector<8x288xf32>, vector<8x288xf32> -> vector<8x288xf32>
    %138 = arith.addf %132, %137 : vector<8x288xf32>
    %c0_123 = arith.constant 0 : index
    %c0_124 = arith.constant 0 : index
    %139 = vector.load %arg5[%c0_123, %c0_124] : memref<8x1xf32, #tpu.memory_space<vmem>>, vector<8x1xf32>
    %140 = vector.broadcast %139 : vector<8x1xf32> to vector<8x288xf32>
    %141 = arith.addf %138, %140 : vector<8x288xf32>
    %cst_125 = arith.constant 0.000000e+00 : f32
    %142 = vector.broadcast %cst_125 : f32 to vector<8x288xf32>
    %143 = arith.maximumf %141, %142 : vector<8x288xf32>
    %c0_126 = arith.constant 0 : index
    %c0_127 = arith.constant 0 : index
    %c0_128 = arith.constant 0 : index
    %144 = vector.load %arg9[%c0_126, %c0_127, %c0_128] : memref<1x8x288xf32, #tpu.memory_space<vmem>>, vector<1x8x288xf32>
    %145 = vector.shape_cast %144 : vector<1x8x288xf32> to vector<8x288xf32>
    %146 = vector.shape_cast %143 : vector<8x288xf32> to vector<1x8x288xf32>
    tpu.vector_store %arg9[%c0_126, %c0_127, %c0_128], %146 {strides = array<i32>} : memref<1x8x288xf32, #tpu.memory_space<vmem>>, vector<1x8x288xf32>,
    %c0_129 = arith.constant 0 : index
    %c0_130 = arith.constant 0 : index
    %c0_131 = arith.constant 0 : index
    %147 = vector.load %arg9[%c0_129, %c0_130, %c0_131] : memref<1x8x288xf32, #tpu.memory_space<vmem>>, vector<1x8x16xf32>
    %148 = vector.shape_cast %147 : vector<1x8x16xf32> to vector<8x16xf32>
    %c0_132 = arith.constant 0 : index
    %c0_133 = arith.constant 0 : index
    %c0_134 = arith.constant 0 : index
    %149 = vector.load %arg6[%c0_132, %c0_133, %c0_134] : memref<16x16x8xf32, #tpu.memory_space<vmem>>, vector<1x16x8xf32>
    %150 = vector.shape_cast %149 : vector<1x16x8xf32> to vector<16x8xf32>
    %cst_135 = arith.constant dense<0.000000e+00> : vector<16x16xf32>
    %151 = tpu.matmul %150, %148, %cst_135 {dimension_numbers = #tpu.dot_dimension_numbers<[1], [0], [0], [1], [0, 0, 1, 1], [], []>} : vector<16x8xf32>, vector<8x16xf32>, vector<16x16xf32> -> vector<16x16xf32>
    %c0_136 = arith.constant 0 : index
    %c0_137 = arith.constant 0 : index
    %c18_138 = arith.constant 18 : index
    %152 = vector.load %arg9[%c0_136, %c0_137, %c18_138] : memref<1x8x288xf32, #tpu.memory_space<vmem>>, vector<1x8x16xf32>
    %153 = vector.shape_cast %152 : vector<1x8x16xf32> to vector<8x16xf32>
    %c1_139 = arith.constant 1 : index
    %c0_140 = arith.constant 0 : index
    %c0_141 = arith.constant 0 : index
    %154 = vector.load %arg6[%c1_139, %c0_140, %c0_141] : memref<16x16x8xf32, #tpu.memory_space<vmem>>, vector<1x16x8xf32>
    %155 = vector.shape_cast %154 : vector<1x16x8xf32> to vector<16x8xf32>
    %cst_142 = arith.constant dense<0.000000e+00> : vector<16x16xf32>
    %156 = tpu.matmul %155, %153, %cst_142 {dimension_numbers = #tpu.dot_dimension_numbers<[1], [0], [0], [1], [0, 0, 1, 1], [], []>} : vector<16x8xf32>, vector<8x16xf32>, vector<16x16xf32> -> vector<16x16xf32>
    %157 = arith.addf %151, %156 : vector<16x16xf32>
    %c0_143 = arith.constant 0 : index
    %c0_144 = arith.constant 0 : index
    %c36_145 = arith.constant 36 : index
    %158 = vector.load %arg9[%c0_143, %c0_144, %c36_145] : memref<1x8x288xf32, #tpu.memory_space<vmem>>, vector<1x8x16xf32>
    %159 = vector.shape_cast %158 : vector<1x8x16xf32> to vector<8x16xf32>
    %c2_146 = arith.constant 2 : index
    %c0_147 = arith.constant 0 : index
    %c0_148 = arith.constant 0 : index
    %160 = vector.load %arg6[%c2_146, %c0_147, %c0_148] : memref<16x16x8xf32, #tpu.memory_space<vmem>>, vector<1x16x8xf32>
    %161 = vector.shape_cast %160 : vector<1x16x8xf32> to vector<16x8xf32>
    %cst_149 = arith.constant dense<0.000000e+00> : vector<16x16xf32>
    %162 = tpu.matmul %161, %159, %cst_149 {dimension_numbers = #tpu.dot_dimension_numbers<[1], [0], [0], [1], [0, 0, 1, 1], [], []>} : vector<16x8xf32>, vector<8x16xf32>, vector<16x16xf32> -> vector<16x16xf32>
    %163 = arith.addf %157, %162 : vector<16x16xf32>
    %c0_150 = arith.constant 0 : index
    %c0_151 = arith.constant 0 : index
    %c54 = arith.constant 54 : index
    %164 = vector.load %arg9[%c0_150, %c0_151, %c54] : memref<1x8x288xf32, #tpu.memory_space<vmem>>, vector<1x8x16xf32>
    %165 = vector.shape_cast %164 : vector<1x8x16xf32> to vector<8x16xf32>
    %c3_152 = arith.constant 3 : index
    %c0_153 = arith.constant 0 : index
    %c0_154 = arith.constant 0 : index
    %166 = vector.load %arg6[%c3_152, %c0_153, %c0_154] : memref<16x16x8xf32, #tpu.memory_space<vmem>>, vector<1x16x8xf32>
    %167 = vector.shape_cast %166 : vector<1x16x8xf32> to vector<16x8xf32>
    %cst_155 = arith.constant dense<0.000000e+00> : vector<16x16xf32>
    %168 = tpu.matmul %167, %165, %cst_155 {dimension_numbers = #tpu.dot_dimension_numbers<[1], [0], [0], [1], [0, 0, 1, 1], [], []>} : vector<16x8xf32>, vector<8x16xf32>, vector<16x16xf32> -> vector<16x16xf32>
    %169 = arith.addf %163, %168 : vector<16x16xf32>
    %c0_156 = arith.constant 0 : index
    %c0_157 = arith.constant 0 : index
    %c72 = arith.constant 72 : index
    %170 = vector.load %arg9[%c0_156, %c0_157, %c72] : memref<1x8x288xf32, #tpu.memory_space<vmem>>, vector<1x8x16xf32>
    %171 = vector.shape_cast %170 : vector<1x8x16xf32> to vector<8x16xf32>
    %c4_158 = arith.constant 4 : index
    %c0_159 = arith.constant 0 : index
    %c0_160 = arith.constant 0 : index
    %172 = vector.load %arg6[%c4_158, %c0_159, %c0_160] : memref<16x16x8xf32, #tpu.memory_space<vmem>>, vector<1x16x8xf32>
    %173 = vector.shape_cast %172 : vector<1x16x8xf32> to vector<16x8xf32>
    %cst_161 = arith.constant dense<0.000000e+00> : vector<16x16xf32>
    %174 = tpu.matmul %173, %171, %cst_161 {dimension_numbers = #tpu.dot_dimension_numbers<[1], [0], [0], [1], [0, 0, 1, 1], [], []>} : vector<16x8xf32>, vector<8x16xf32>, vector<16x16xf32> -> vector<16x16xf32>
    %175 = arith.addf %169, %174 : vector<16x16xf32>
    %c0_162 = arith.constant 0 : index
    %c0_163 = arith.constant 0 : index
    %c90 = arith.constant 90 : index
    %176 = vector.load %arg9[%c0_162, %c0_163, %c90] : memref<1x8x288xf32, #tpu.memory_space<vmem>>, vector<1x8x16xf32>
    %177 = vector.shape_cast %176 : vector<1x8x16xf32> to vector<8x16xf32>
    %c5_164 = arith.constant 5 : index
    %c0_165 = arith.constant 0 : index
    %c0_166 = arith.constant 0 : index
    %178 = vector.load %arg6[%c5_164, %c0_165, %c0_166] : memref<16x16x8xf32, #tpu.memory_space<vmem>>, vector<1x16x8xf32>
    %179 = vector.shape_cast %178 : vector<1x16x8xf32> to vector<16x8xf32>
    %cst_167 = arith.constant dense<0.000000e+00> : vector<16x16xf32>
    %180 = tpu.matmul %179, %177, %cst_167 {dimension_numbers = #tpu.dot_dimension_numbers<[1], [0], [0], [1], [0, 0, 1, 1], [], []>} : vector<16x8xf32>, vector<8x16xf32>, vector<16x16xf32> -> vector<16x16xf32>
    %181 = arith.addf %175, %180 : vector<16x16xf32>
    %c0_168 = arith.constant 0 : index
    %c0_169 = arith.constant 0 : index
    %c108 = arith.constant 108 : index
    %182 = vector.load %arg9[%c0_168, %c0_169, %c108] : memref<1x8x288xf32, #tpu.memory_space<vmem>>, vector<1x8x16xf32>
    %183 = vector.shape_cast %182 : vector<1x8x16xf32> to vector<8x16xf32>
    %c6_170 = arith.constant 6 : index
    %c0_171 = arith.constant 0 : index
    %c0_172 = arith.constant 0 : index
    %184 = vector.load %arg6[%c6_170, %c0_171, %c0_172] : memref<16x16x8xf32, #tpu.memory_space<vmem>>, vector<1x16x8xf32>
    %185 = vector.shape_cast %184 : vector<1x16x8xf32> to vector<16x8xf32>
    %cst_173 = arith.constant dense<0.000000e+00> : vector<16x16xf32>
    %186 = tpu.matmul %185, %183, %cst_173 {dimension_numbers = #tpu.dot_dimension_numbers<[1], [0], [0], [1], [0, 0, 1, 1], [], []>} : vector<16x8xf32>, vector<8x16xf32>, vector<16x16xf32> -> vector<16x16xf32>
    %187 = arith.addf %181, %186 : vector<16x16xf32>
    %c0_174 = arith.constant 0 : index
    %c0_175 = arith.constant 0 : index
    %c126 = arith.constant 126 : index
    %188 = vector.load %arg9[%c0_174, %c0_175, %c126] : memref<1x8x288xf32, #tpu.memory_space<vmem>>, vector<1x8x16xf32>
    %189 = vector.shape_cast %188 : vector<1x8x16xf32> to vector<8x16xf32>
    %c7_176 = arith.constant 7 : index
    %c0_177 = arith.constant 0 : index
    %c0_178 = arith.constant 0 : index
    %190 = vector.load %arg6[%c7_176, %c0_177, %c0_178] : memref<16x16x8xf32, #tpu.memory_space<vmem>>, vector<1x16x8xf32>
    %191 = vector.shape_cast %190 : vector<1x16x8xf32> to vector<16x8xf32>
    %cst_179 = arith.constant dense<0.000000e+00> : vector<16x16xf32>
    %192 = tpu.matmul %191, %189, %cst_179 {dimension_numbers = #tpu.dot_dimension_numbers<[1], [0], [0], [1], [0, 0, 1, 1], [], []>} : vector<16x8xf32>, vector<8x16xf32>, vector<16x16xf32> -> vector<16x16xf32>
    %193 = arith.addf %187, %192 : vector<16x16xf32>
    %c0_180 = arith.constant 0 : index
    %c0_181 = arith.constant 0 : index
    %c144 = arith.constant 144 : index
    %194 = vector.load %arg9[%c0_180, %c0_181, %c144] : memref<1x8x288xf32, #tpu.memory_space<vmem>>, vector<1x8x16xf32>
    %195 = vector.shape_cast %194 : vector<1x8x16xf32> to vector<8x16xf32>
    %c8_182 = arith.constant 8 : index
    %c0_183 = arith.constant 0 : index
    %c0_184 = arith.constant 0 : index
    %196 = vector.load %arg6[%c8_182, %c0_183, %c0_184] : memref<16x16x8xf32, #tpu.memory_space<vmem>>, vector<1x16x8xf32>
    %197 = vector.shape_cast %196 : vector<1x16x8xf32> to vector<16x8xf32>
    %cst_185 = arith.constant dense<0.000000e+00> : vector<16x16xf32>
    %198 = tpu.matmul %197, %195, %cst_185 {dimension_numbers = #tpu.dot_dimension_numbers<[1], [0], [0], [1], [0, 0, 1, 1], [], []>} : vector<16x8xf32>, vector<8x16xf32>, vector<16x16xf32> -> vector<16x16xf32>
    %199 = arith.addf %193, %198 : vector<16x16xf32>
    %c0_186 = arith.constant 0 : index
    %c0_187 = arith.constant 0 : index
    %c162 = arith.constant 162 : index
    %200 = vector.load %arg9[%c0_186, %c0_187, %c162] : memref<1x8x288xf32, #tpu.memory_space<vmem>>, vector<1x8x16xf32>
    %201 = vector.shape_cast %200 : vector<1x8x16xf32> to vector<8x16xf32>
    %c9 = arith.constant 9 : index
    %c0_188 = arith.constant 0 : index
    %c0_189 = arith.constant 0 : index
    %202 = vector.load %arg6[%c9, %c0_188, %c0_189] : memref<16x16x8xf32, #tpu.memory_space<vmem>>, vector<1x16x8xf32>
    %203 = vector.shape_cast %202 : vector<1x16x8xf32> to vector<16x8xf32>
    %cst_190 = arith.constant dense<0.000000e+00> : vector<16x16xf32>
    %204 = tpu.matmul %203, %201, %cst_190 {dimension_numbers = #tpu.dot_dimension_numbers<[1], [0], [0], [1], [0, 0, 1, 1], [], []>} : vector<16x8xf32>, vector<8x16xf32>, vector<16x16xf32> -> vector<16x16xf32>
    %205 = arith.addf %199, %204 : vector<16x16xf32>
    %c0_191 = arith.constant 0 : index
    %c0_192 = arith.constant 0 : index
    %c180 = arith.constant 180 : index
    %206 = vector.load %arg9[%c0_191, %c0_192, %c180] : memref<1x8x288xf32, #tpu.memory_space<vmem>>, vector<1x8x16xf32>
    %207 = vector.shape_cast %206 : vector<1x8x16xf32> to vector<8x16xf32>
    %c10 = arith.constant 10 : index
    %c0_193 = arith.constant 0 : index
    %c0_194 = arith.constant 0 : index
    %208 = vector.load %arg6[%c10, %c0_193, %c0_194] : memref<16x16x8xf32, #tpu.memory_space<vmem>>, vector<1x16x8xf32>
    %209 = vector.shape_cast %208 : vector<1x16x8xf32> to vector<16x8xf32>
    %cst_195 = arith.constant dense<0.000000e+00> : vector<16x16xf32>
    %210 = tpu.matmul %209, %207, %cst_195 {dimension_numbers = #tpu.dot_dimension_numbers<[1], [0], [0], [1], [0, 0, 1, 1], [], []>} : vector<16x8xf32>, vector<8x16xf32>, vector<16x16xf32> -> vector<16x16xf32>
    %211 = arith.addf %205, %210 : vector<16x16xf32>
    %c0_196 = arith.constant 0 : index
    %c0_197 = arith.constant 0 : index
    %c198 = arith.constant 198 : index
    %212 = vector.load %arg9[%c0_196, %c0_197, %c198] : memref<1x8x288xf32, #tpu.memory_space<vmem>>, vector<1x8x16xf32>
    %213 = vector.shape_cast %212 : vector<1x8x16xf32> to vector<8x16xf32>
    %c11 = arith.constant 11 : index
    %c0_198 = arith.constant 0 : index
    %c0_199 = arith.constant 0 : index
    %214 = vector.load %arg6[%c11, %c0_198, %c0_199] : memref<16x16x8xf32, #tpu.memory_space<vmem>>, vector<1x16x8xf32>
    %215 = vector.shape_cast %214 : vector<1x16x8xf32> to vector<16x8xf32>
    %cst_200 = arith.constant dense<0.000000e+00> : vector<16x16xf32>
    %216 = tpu.matmul %215, %213, %cst_200 {dimension_numbers = #tpu.dot_dimension_numbers<[1], [0], [0], [1], [0, 0, 1, 1], [], []>} : vector<16x8xf32>, vector<8x16xf32>, vector<16x16xf32> -> vector<16x16xf32>
    %217 = arith.addf %211, %216 : vector<16x16xf32>
    %c0_201 = arith.constant 0 : index
    %c0_202 = arith.constant 0 : index
    %c216 = arith.constant 216 : index
    %218 = vector.load %arg9[%c0_201, %c0_202, %c216] : memref<1x8x288xf32, #tpu.memory_space<vmem>>, vector<1x8x16xf32>
    %219 = vector.shape_cast %218 : vector<1x8x16xf32> to vector<8x16xf32>
    %c12 = arith.constant 12 : index
    %c0_203 = arith.constant 0 : index
    %c0_204 = arith.constant 0 : index
    %220 = vector.load %arg6[%c12, %c0_203, %c0_204] : memref<16x16x8xf32, #tpu.memory_space<vmem>>, vector<1x16x8xf32>
    %221 = vector.shape_cast %220 : vector<1x16x8xf32> to vector<16x8xf32>
    %cst_205 = arith.constant dense<0.000000e+00> : vector<16x16xf32>
    %222 = tpu.matmul %221, %219, %cst_205 {dimension_numbers = #tpu.dot_dimension_numbers<[1], [0], [0], [1], [0, 0, 1, 1], [], []>} : vector<16x8xf32>, vector<8x16xf32>, vector<16x16xf32> -> vector<16x16xf32>
    %223 = arith.addf %217, %222 : vector<16x16xf32>
    %c0_206 = arith.constant 0 : index
    %c0_207 = arith.constant 0 : index
    %c234 = arith.constant 234 : index
    %224 = vector.load %arg9[%c0_206, %c0_207, %c234] : memref<1x8x288xf32, #tpu.memory_space<vmem>>, vector<1x8x16xf32>
    %225 = vector.shape_cast %224 : vector<1x8x16xf32> to vector<8x16xf32>
    %c13 = arith.constant 13 : index
    %c0_208 = arith.constant 0 : index
    %c0_209 = arith.constant 0 : index
    %226 = vector.load %arg6[%c13, %c0_208, %c0_209] : memref<16x16x8xf32, #tpu.memory_space<vmem>>, vector<1x16x8xf32>
    %227 = vector.shape_cast %226 : vector<1x16x8xf32> to vector<16x8xf32>
    %cst_210 = arith.constant dense<0.000000e+00> : vector<16x16xf32>
    %228 = tpu.matmul %227, %225, %cst_210 {dimension_numbers = #tpu.dot_dimension_numbers<[1], [0], [0], [1], [0, 0, 1, 1], [], []>} : vector<16x8xf32>, vector<8x16xf32>, vector<16x16xf32> -> vector<16x16xf32>
    %229 = arith.addf %223, %228 : vector<16x16xf32>
    %c0_211 = arith.constant 0 : index
    %c0_212 = arith.constant 0 : index
    %c252 = arith.constant 252 : index
    %230 = vector.load %arg9[%c0_211, %c0_212, %c252] : memref<1x8x288xf32, #tpu.memory_space<vmem>>, vector<1x8x16xf32>
    %231 = vector.shape_cast %230 : vector<1x8x16xf32> to vector<8x16xf32>
    %c14 = arith.constant 14 : index
    %c0_213 = arith.constant 0 : index
    %c0_214 = arith.constant 0 : index
    %232 = vector.load %arg6[%c14, %c0_213, %c0_214] : memref<16x16x8xf32, #tpu.memory_space<vmem>>, vector<1x16x8xf32>
    %233 = vector.shape_cast %232 : vector<1x16x8xf32> to vector<16x8xf32>
    %cst_215 = arith.constant dense<0.000000e+00> : vector<16x16xf32>
    %234 = tpu.matmul %233, %231, %cst_215 {dimension_numbers = #tpu.dot_dimension_numbers<[1], [0], [0], [1], [0, 0, 1, 1], [], []>} : vector<16x8xf32>, vector<8x16xf32>, vector<16x16xf32> -> vector<16x16xf32>
    %235 = arith.addf %229, %234 : vector<16x16xf32>
    %c0_216 = arith.constant 0 : index
    %c0_217 = arith.constant 0 : index
    %c270 = arith.constant 270 : index
    %236 = vector.load %arg9[%c0_216, %c0_217, %c270] : memref<1x8x288xf32, #tpu.memory_space<vmem>>, vector<1x8x16xf32>
    %237 = vector.shape_cast %236 : vector<1x8x16xf32> to vector<8x16xf32>
    %c15 = arith.constant 15 : index
    %c0_218 = arith.constant 0 : index
    %c0_219 = arith.constant 0 : index
    %238 = vector.load %arg6[%c15, %c0_218, %c0_219] : memref<16x16x8xf32, #tpu.memory_space<vmem>>, vector<1x16x8xf32>
    %239 = vector.shape_cast %238 : vector<1x16x8xf32> to vector<16x8xf32>
    %cst_220 = arith.constant dense<0.000000e+00> : vector<16x16xf32>
    %240 = tpu.matmul %239, %237, %cst_220 {dimension_numbers = #tpu.dot_dimension_numbers<[1], [0], [0], [1], [0, 0, 1, 1], [], []>} : vector<16x8xf32>, vector<8x16xf32>, vector<16x16xf32> -> vector<16x16xf32>
    %241 = arith.addf %235, %240 : vector<16x16xf32>
    %c0_221 = arith.constant 0 : index
    %c0_222 = arith.constant 0 : index
    %242 = vector.load %arg7[%c0_221, %c0_222] : memref<16x1xf32, #tpu.memory_space<vmem>>, vector<16x1xf32>
    %243 = vector.broadcast %242 : vector<16x1xf32> to vector<16x16xf32>
    %244 = arith.addf %241, %243 : vector<16x16xf32>
    %245 = vector.extract_strided_slice %244 {offsets = [0, 0], sizes = [1, 16], strides = [1, 1]} : vector<16x16xf32> to vector<1x16xf32>
    %246 = vector.extract_strided_slice %244 {offsets = [1, 0], sizes = [1, 16], strides = [1, 1]} : vector<16x16xf32> to vector<1x16xf32>
    %247 = vector.extract_strided_slice %244 {offsets = [2, 0], sizes = [1, 16], strides = [1, 1]} : vector<16x16xf32> to vector<1x16xf32>
    %248 = vector.extract_strided_slice %244 {offsets = [3, 0], sizes = [1, 16], strides = [1, 1]} : vector<16x16xf32> to vector<1x16xf32>
    %249 = vector.extract_strided_slice %244 {offsets = [4, 0], sizes = [1, 16], strides = [1, 1]} : vector<16x16xf32> to vector<1x16xf32>
    %250 = vector.extract_strided_slice %244 {offsets = [5, 0], sizes = [1, 16], strides = [1, 1]} : vector<16x16xf32> to vector<1x16xf32>
    %251 = vector.extract_strided_slice %244 {offsets = [6, 0], sizes = [1, 16], strides = [1, 1]} : vector<16x16xf32> to vector<1x16xf32>
    %252 = vector.extract_strided_slice %244 {offsets = [7, 0], sizes = [1, 16], strides = [1, 1]} : vector<16x16xf32> to vector<1x16xf32>
    %253 = vector.extract_strided_slice %244 {offsets = [8, 0], sizes = [1, 16], strides = [1, 1]} : vector<16x16xf32> to vector<1x16xf32>
    %254 = vector.extract_strided_slice %244 {offsets = [9, 0], sizes = [1, 16], strides = [1, 1]} : vector<16x16xf32> to vector<1x16xf32>
    %255 = vector.extract_strided_slice %244 {offsets = [10, 0], sizes = [1, 16], strides = [1, 1]} : vector<16x16xf32> to vector<1x16xf32>
    %256 = vector.extract_strided_slice %244 {offsets = [11, 0], sizes = [1, 16], strides = [1, 1]} : vector<16x16xf32> to vector<1x16xf32>
    %257 = vector.extract_strided_slice %244 {offsets = [12, 0], sizes = [1, 16], strides = [1, 1]} : vector<16x16xf32> to vector<1x16xf32>
    %258 = vector.extract_strided_slice %244 {offsets = [13, 0], sizes = [1, 16], strides = [1, 1]} : vector<16x16xf32> to vector<1x16xf32>
    %259 = vector.extract_strided_slice %244 {offsets = [14, 0], sizes = [1, 16], strides = [1, 1]} : vector<16x16xf32> to vector<1x16xf32>
    %260 = vector.extract_strided_slice %244 {offsets = [15, 0], sizes = [1, 16], strides = [1, 1]} : vector<16x16xf32> to vector<1x16xf32>
    %261 = tpu.concatenate %245, %246, %247, %248, %249, %250, %251, %252, %253, %254, %255, %256, %257, %258, %259, %260 in 1 : vector<1x16xf32>, vector<1x16xf32>, vector<1x16xf32>, vector<1x16xf32>, vector<1x16xf32>, vector<1x16xf32>, vector<1x16xf32>, vector<1x16xf32>, vector<1x16xf32>, vector<1x16xf32>, vector<1x16xf32>, vector<1x16xf32>, vector<1x16xf32>, vector<1x16xf32>, vector<1x16xf32>, vector<1x16xf32> -> vector<1x256xf32>
    %c0_223 = arith.constant 0 : index
    %c0_224 = arith.constant 0 : index
    %c0_225 = arith.constant 0 : index
    %262 = vector.load %arg8[%c0_223, %c0_224, %c0_225] : memref<1x1x256xf32, #tpu.memory_space<vmem>>, vector<1x1x256xf32>
    %263 = vector.shape_cast %262 : vector<1x1x256xf32> to vector<1x256xf32>
    %264 = vector.shape_cast %261 : vector<1x256xf32> to vector<1x1x256xf32>
    tpu.vector_store %arg8[%c0_223, %c0_224, %c0_225], %264 {strides = array<i32>} : memref<1x1x256xf32, #tpu.memory_space<vmem>>, vector<1x1x256xf32>,
    return
  }
  func.func @transform_0(%arg0: i32) -> (i32, i32, i32) {
    %c0_i32 = arith.constant 0 : i32
    %c0_i32_0 = arith.constant 0 : i32
    %c0_i32_1 = arith.constant 0 : i32
    return %arg0, %c0_i32, %c0_i32_0 : i32, i32, i32
  }
  func.func @transform_1(%arg0: i32) -> (i32, i32, i32) {
    %c0_i32 = arith.constant 0 : i32
    %c0_i32_0 = arith.constant 0 : i32
    %c0_i32_1 = arith.constant 0 : i32
    %c0_i32_2 = arith.constant 0 : i32
    return %c0_i32, %c0_i32_0, %c0_i32_1 : i32, i32, i32
  }
  func.func @transform_2(%arg0: i32) -> (i32, i32) {
    %c0_i32 = arith.constant 0 : i32
    %c0_i32_0 = arith.constant 0 : i32
    %c0_i32_1 = arith.constant 0 : i32
    return %c0_i32, %c0_i32_0 : i32, i32
  }
  func.func @transform_3(%arg0: i32) -> (i32, i32, i32) {
    %c0_i32 = arith.constant 0 : i32
    %c0_i32_0 = arith.constant 0 : i32
    %c0_i32_1 = arith.constant 0 : i32
    %c0_i32_2 = arith.constant 0 : i32
    return %c0_i32, %c0_i32_0, %c0_i32_1 : i32, i32, i32
  }
  func.func @transform_4(%arg0: i32) -> (i32, i32) {
    %c0_i32 = arith.constant 0 : i32
    %c0_i32_0 = arith.constant 0 : i32
    %c0_i32_1 = arith.constant 0 : i32
    return %c0_i32, %c0_i32_0 : i32, i32
  }
  func.func @transform_5(%arg0: i32) -> (i32, i32, i32) {
    %c0_i32 = arith.constant 0 : i32
    %c0_i32_0 = arith.constant 0 : i32
    %c0_i32_1 = arith.constant 0 : i32
    %c0_i32_2 = arith.constant 0 : i32
    return %c0_i32, %c0_i32_0, %c0_i32_1 : i32, i32, i32
  }
  func.func @transform_6(%arg0: i32) -> (i32, i32) {
    %c0_i32 = arith.constant 0 : i32
    %c0_i32_0 = arith.constant 0 : i32
    %c0_i32_1 = arith.constant 0 : i32
    return %c0_i32, %c0_i32_0 : i32, i32
  }
  func.func @transform_7(%arg0: i32) -> (i32, i32, i32) {
    %c0_i32 = arith.constant 0 : i32
    %c0_i32_0 = arith.constant 0 : i32
    %c0_i32_1 = arith.constant 0 : i32
    return %arg0, %c0_i32, %c0_i32_0 : i32, i32, i32
  }
  func.func @transform_8(%arg0: i32) -> (i32, i32, i32) {
    %c0_i32 = arith.constant 0 : i32
    %c0_i32_0 = arith.constant 0 : i32
    %c0_i32_1 = arith.constant 0 : i32
    return %arg0, %c0_i32, %c0_i32_0 : i32, i32, i32
  }
}

</mosaic_0001>

<llo_original>
// kernel: _fused_forward.1
$region0: #{_fused_forward.1}
  #allocation0 [shape = 'u32[]', space=smem, size = 0x4, offset = 0x4, fixed_abs, tag = 'smem constant byte address 0x4 - core index']
  #allocation1 [shape = 'u32[72,128]{1,0:T(1,128)}', space=vmem, size = 0x9000, scoped, tag = 'internal scratch']
  #allocation2 [shape = 'f32[1,8,342]{2,1,0:T(8,128)}', space=vmem, size = 0x3000, scoped, tag = 'scratch operand']
  %s0 = inlined_call_operand.vmem [shape: f32[2,8,342], index: 0, kind: input, shape index: {}]
  %s1 = inlined_call_operand.vmem [shape: f32[9,8,8], index: 1, kind: input, shape index: {}]
  %s2 = inlined_call_operand.vmem [shape: f32[8,1], index: 2, kind: input, shape index: {}]
  %s3 = inlined_call_operand.vmem [shape: f32[9,8,8], index: 3, kind: input, shape index: {}]
  %s4 = inlined_call_operand.vmem [shape: f32[8,1], index: 4, kind: input, shape index: {}]
  %s5 = inlined_call_operand.vmem [shape: f32[16,16,8], index: 5, kind: input, shape index: {}]
  %s6 = inlined_call_operand.vmem [shape: f32[16,1], index: 6, kind: input, shape index: {}]
  %s7 = inlined_call_operand.vmem [shape: f32[2,1,256], index: 7, kind: output, shape index: {0}]
  %s8 = inlined_call_operand.vmem [shape: f32[2,8,288], index: 8, kind: output, shape index: {1}]
  %9 = xla_tuple %s7, %s8
  %s10 = sld [smem:[#allocation0]]
  $region69: #{_fused_forward.1} parent=0
    _
  %s12 = ssub.s32 1, %s10
  %s13 = scalar_select 0, %s12, %s10
  loop: start=0, step=1, limit=4
  $region2: #{_fused_forward.1} parent=0 // loop_pre_header
    _
  $region3: #{_fused_forward.1} parent=0 // loop_header
    %s15 = sphi 0, %s19
    %p16 = scmp.ge.s32.totalorder %s15, 4
    %s25 = sphi 0, %s27
    %s28 = sphi 0, %s25
    %s29 = sphi 0, %s28
    %s45 = sphi 0, %s29
    %s49 = sphi 0, %s49
    %s51 = sphi 0, %s49
    %s52 = sphi 0, %s51
    %s66 = sphi 0, %s52
    %s70 = sphi 0, %s70
    %s72 = sphi 0, %s70
    %s73 = sphi 0, %s72
    %s87 = sphi 0, %s73
    %s91 = sphi 0, %s91
    %s93 = sphi 0, %s91
    %s94 = sphi 0, %s93
    %s108 = sphi 0, %s94
    %s112 = sphi 0, %s112
    %s114 = sphi 0, %s112
    %s115 = sphi 0, %s114
    %s129 = sphi 0, %s115
    %s133 = sphi 0, %s133
    %s135 = sphi 0, %s133
    %s136 = sphi 0, %s135
    %s150 = sphi 0, %s136
    %s154 = sphi 0, %s154
    %s156 = sphi 0, %s154
    %s157 = sphi 0, %s156
    %s171 = sphi 0, %s157
    %s177 = sphi 0, %s179
    %s180 = sphi 0, %s177
    %s181 = sphi 0, %s180
    %s197 = sphi 0, %s181
    %s203 = sphi 0, %s205
    %s206 = sphi 0, %s203
    %s207 = sphi 0, %s206
    %s223 = sphi 0, %s207
  $region4: #{_fused_forward.1} parent=0 // loop_header_branch
    %18 = sbr.rel (%p16) target = $region8
  $region5: #{_fused_forward.1} parent=0 // loop_body
    %s20 = ssub.s32 %s15, 1
    %s21 = ssub.s32 %s15, 2
    %s22 = sadd.s32 %s15, 1
    %s23 = ssub.s32 %s15, %s22
    %p24 = scmp.eq.s32.totalorder %s23, 0
    %s26 = sadd.s32 %s25, 1
    %s27 = scalar_select %p24, %s25, %s26
    %p30 = pneg %p24
    %p31 = scmp.eq.s32.totalorder %s15, 1
    %p32 = por %p30, %p31
    %p33 = scmp.ne.s32.totalorder %s25, %s28
    %p34 = scmp.eq.s32.totalorder %s15, 0
    %p35 = por %p33, %p34
    %p36 = scmp.ne.s32.totalorder %s25, %s28
    %p37 = scmp.eq.s32.totalorder %s20, 1
    %p38 = por %p36, %p37
    %p39 = scmp.ne.s32.totalorder %s28, %s29
    %p40 = scmp.eq.s32.totalorder %s20, 0
    %p41 = por %p39, %p40
    %p42 = scmp.ne.s32.totalorder %s28, %s29
    %p43 = scmp.eq.s32.totalorder %s21, 1
    %p44 = por %p42, %p43
    %p46 = scmp.ne.s32.totalorder %s29, %s45
    %p47 = scmp.eq.s32.totalorder %s21, 0
    %p48 = por %p46, %p47
    %s50 = sadd.s32 %s49, 1
    %p53 = scmp.eq.s32.totalorder %s15, 1
    %p54 = scmp.ne.s32.totalorder %s49, %s51
    %p55 = scmp.eq.s32.totalorder %s15, 0
    %p56 = por %p54, %p55
    %p57 = scmp.ne.s32.totalorder %s49, %s51
    %p58 = scmp.eq.s32.totalorder %s20, 1
    %p59 = por %p57, %p58
    %p60 = scmp.ne.s32.totalorder %s51, %s52
    %p61 = scmp.eq.s32.totalorder %s20, 0
    %p62 = por %p60, %p61
    %p63 = scmp.ne.s32.totalorder %s51, %s52
    %p64 = scmp.eq.s32.totalorder %s21, 1
    %p65 = por %p63, %p64
    %p67 = scmp.ne.s32.totalorder %s52, %s66
    %p68 = scmp.eq.s32.totalorder %s21, 0
    %p69 = por %p67, %p68
    %s71 = sadd.s32 %s70, 1
    %p74 = scmp.eq.s32.totalorder %s15, 1
    %p75 = scmp.ne.s32.totalorder %s70, %s72
    %p76 = scmp.eq.s32.totalorder %s15, 0
    %p77 = por %p75, %p76
    %p78 = scmp.ne.s32.totalorder %s70, %s72
    %p79 = scmp.eq.s32.totalorder %s20, 1
    %p80 = por %p78, %p79
    %p81 = scmp.ne.s32.totalorder %s72, %s73
    %p82 = scmp.eq.s32.totalorder %s20, 0
    %p83 = por %p81, %p82
    %p84 = scmp.ne.s32.totalorder %s72, %s73
    %p85 = scmp.eq.s32.totalorder %s21, 1
    %p86 = por %p84, %p85
    %p88 = scmp.ne.s32.totalorder %s73, %s87
    %p89 = scmp.eq.s32.totalorder %s21, 0
    %p90 = por %p88, %p89
    %s92 = sadd.s32 %s91, 1
    %p95 = scmp.eq.s32.totalorder %s15, 1
    %p96 = scmp.ne.s32.totalorder %s91, %s93
    %p97 = scmp.eq.s32.totalorder %s15, 0
    %p98 = por %p96, %p97
    %p99 = scmp.ne.s32.totalorder %s91, %s93
    %p100 = scmp.eq.s32.totalorder %s20, 1
    %p101 = por %p99, %p100
    %p102 = scmp.ne.s32.totalorder %s93, %s94
    %p103 = scmp.eq.s32.totalorder %s20, 0
    %p104 = por %p102, %p103
    %p105 = scmp.ne.s32.totalorder %s93, %s94
    %p106 = scmp.eq.s32.totalorder %s21, 1
    %p107 = por %p105, %p106
    %p109 = scmp.ne.s32.totalorder %s94, %s108
    %p110 = scmp.eq.s32.totalorder %s21, 0
    %p111 = por %p109, %p110
    %s113 = sadd.s32 %s112, 1
    %p116 = scmp.eq.s32.totalorder %s15, 1
    %p117 = scmp.ne.s32.totalorder %s112, %s114
    %p118 = scmp.eq.s32.totalorder %s15, 0
    %p119 = por %p117, %p118
    %p120 = scmp.ne.s32.totalorder %s112, %s114
    %p121 = scmp.eq.s32.totalorder %s20, 1
    %p122 = por %p120, %p121
    %p123 = scmp.ne.s32.totalorder %s114, %s115
    %p124 = scmp.eq.s32.totalorder %s20, 0
    %p125 = por %p123, %p124
    %p126 = scmp.ne.s32.totalorder %s114, %s115
    %p127 = scmp.eq.s32.totalorder %s21, 1
    %p128 = por %p126, %p127
    %p130 = scmp.ne.s32.totalorder %s115, %s129
    %p131 = scmp.eq.s32.totalorder %s21, 0
    %p132 = por %p130, %p131
    %s134 = sadd.s32 %s133, 1
    %p137 = scmp.eq.s32.totalorder %s15, 1
    %p138 = scmp.ne.s32.totalorder %s133, %s135
    %p139 = scmp.eq.s32.totalorder %s15, 0
    %p140 = por %p138, %p139
    %p141 = scmp.ne.s32.totalorder %s133, %s135
    %p142 = scmp.eq.s32.totalorder %s20, 1
    %p143 = por %p141, %p142
    %p144 = scmp.ne.s32.totalorder %s135, %s136
    %p145 = scmp.eq.s32.totalorder %s20, 0
    %p146 = por %p144, %p145
    %p147 = scmp.ne.s32.totalorder %s135, %s136
    %p148 = scmp.eq.s32.totalorder %s21, 1
    %p149 = por %p147, %p148
    %p151 = scmp.ne.s32.totalorder %s136, %s150
    %p152 = scmp.eq.s32.totalorder %s21, 0
    %p153 = por %p151, %p152
    %s155 = sadd.s32 %s154, 1
    %p158 = scmp.eq.s32.totalorder %s15, 1
    %p159 = scmp.ne.s32.totalorder %s154, %s156
    %p160 = scmp.eq.s32.totalorder %s15, 0
    %p161 = por %p159, %p160
    %p162 = scmp.ne.s32.totalorder %s154, %s156
    %p163 = scmp.eq.s32.totalorder %s20, 1
    %p164 = por %p162, %p163
    %p165 = scmp.ne.s32.totalorder %s156, %s157
    %p166 = scmp.eq.s32.totalorder %s20, 0
    %p167 = por %p165, %p166
    %p168 = scmp.ne.s32.totalorder %s156, %s157
    %p169 = scmp.eq.s32.totalorder %s21, 1
    %p170 = por %p168, %p169
    %p172 = scmp.ne.s32.totalorder %s157, %s171
    %p173 = scmp.eq.s32.totalorder %s21, 0
    %p174 = por %p172, %p173
    %s175 = ssub.s32 %s15, %s22
    %p176 = scmp.eq.s32.totalorder %s175, 0
    %s178 = sadd.s32 %s177, 1
    %s179 = scalar_select %p176, %s177, %s178
    %p182 = pneg %p176
    %p183 = scmp.eq.s32.totalorder %s15, 1
    %p184 = por %p182, %p183
    %p185 = scmp.ne.s32.totalorder %s177, %s180
    %p186 = scmp.eq.s32.totalorder %s15, 0
    %p187 = por %p185, %p186
    %p188 = scmp.ne.s32.totalorder %s177, %s180
    %p189 = scmp.eq.s32.totalorder %s20, 1
    %p190 = por %p188, %p189
    %p191 = scmp.ne.s32.totalorder %s180, %s181
    %p192 = scmp.eq.s32.totalorder %s20, 0
    %p193 = por %p191, %p192
    %p194 = scmp.ne.s32.totalorder %s180, %s181
    %p195 = scmp.eq.s32.totalorder %s21, 1
    %p196 = por %p194, %p195
    %p198 = scmp.ne.s32.totalorder %s181, %s197
    %p199 = scmp.eq.s32.totalorder %s21, 0
    %p200 = por %p198, %p199
    %s201 = ssub.s32 %s15, %s22
    %p202 = scmp.eq.s32.totalorder %s201, 0
    %s204 = sadd.s32 %s203, 1
    %s205 = scalar_select %p202, %s203, %s204
    %p208 = pneg %p202
    %p209 = scmp.eq.s32.totalorder %s15, 1
    %p210 = por %p208, %p209
    %p211 = scmp.ne.s32.totalorder %s203, %s206
    %p212 = scmp.eq.s32.totalorder %s15, 0
    %p213 = por %p211, %p212
    %p214 = scmp.ne.s32.totalorder %s203, %s206
    %p215 = scmp.eq.s32.totalorder %s20, 1
    %p216 = por %p214, %p215
    %p217 = scmp.ne.s32.totalorder %s206, %s207
    %p218 = scmp.eq.s32.totalorder %s20, 0
    %p219 = por %p217, %p218
    %p220 = scmp.ne.s32.totalorder %s206, %s207
    %p221 = scmp.eq.s32.totalorder %s21, 1
    %p222 = por %p220, %p221
    %p224 = scmp.ne.s32.totalorder %s207, %s223
    %p225 = scmp.eq.s32.totalorder %s21, 0
    %p226 = por %p224, %p225
    %p227 = scmp.le.s32.totalorder 1, %s15
    %p228 = scmp.lt.s32.totalorder %s15, 3
    %p229 = pnand %p227, %p228
    %p230 = pneg %p229
    // Predicated region
    $region9: #{_fused_forward.1} parent=5 // pred_check
      _
    $region10: #{_fused_forward.1} parent=5 // pred_check_branch
      %232 = sbr.rel (%p229) target = $region12
    $region11: #{_fused_forward.1} parent=5 // pred_region
      %s233 = ssub.s32 %s15, 1
      // Predicated region
      $region13: #{_fused_forward.1} parent=11 // pred_check
        %p234 = pneg %p62
      $region14: #{_fused_forward.1} parent=11 // pred_check_branch
        %236 = sbr.rel (%p234) target = $region16
      $region15: #{_fused_forward.1} parent=11 // pred_region
        _
      $region16: #{_fused_forward.1} parent=11 // pred_fallthru
        _
      // Predicated region
      $region17: #{_fused_forward.1} parent=11 // pred_check
        %p237 = pneg %p83
      $region18: #{_fused_forward.1} parent=11 // pred_check_branch
        %239 = sbr.rel (%p237) target = $region20
      $region19: #{_fused_forward.1} parent=11 // pred_region
        _
      $region20: #{_fused_forward.1} parent=11 // pred_fallthru
        _
      // Predicated region
      $region21: #{_fused_forward.1} parent=11 // pred_check
        %p240 = pneg %p104
      $region22: #{_fused_forward.1} parent=11 // pred_check_branch
        %242 = sbr.rel (%p240) target = $region24
      $region23: #{_fused_forward.1} parent=11 // pred_region
        _
      $region24: #{_fused_forward.1} parent=11 // pred_fallthru
        _
      // Predicated region
      $region25: #{_fused_forward.1} parent=11 // pred_check
        %p243 = pneg %p125
      $region26: #{_fused_forward.1} parent=11 // pred_check_branch
        %245 = sbr.rel (%p243) target = $region28
      $region27: #{_fused_forward.1} parent=11 // pred_region
        _
      $region28: #{_fused_forward.1} parent=11 // pred_fallthru
        _
      // Predicated region
      $region29: #{_fused_forward.1} parent=11 // pred_check
        %p246 = pneg %p146
      $region30: #{_fused_forward.1} parent=11 // pred_check_branch
        %248 = sbr.rel (%p246) target = $region32
      $region31: #{_fused_forward.1} parent=11 // pred_region
        _
      $region32: #{_fused_forward.1} parent=11 // pred_fallthru
        _
      // Predicated region
      $region33: #{_fused_forward.1} parent=11 // pred_check
        %p249 = pneg %p167
      $region34: #{_fused_forward.1} parent=11 // pred_check_branch
        %251 = sbr.rel (%p249) target = $region36
      $region35: #{_fused_forward.1} parent=11 // pred_region
        _
      $region36: #{_fused_forward.1} parent=11 // pred_fallthru
        _
    $region12: #{_fused_forward.1} parent=5 // pred_fallthru
      _
    %p252 = scmp.lt.s32.totalorder %s15, 2
    // Predicated region
    $region37: #{_fused_forward.1} parent=5 // pred_check
      %p253 = pneg %p252
    $region38: #{_fused_forward.1} parent=5 // pred_check_branch
      %255 = sbr.rel (%p253) target = $region40
    $region39: #{_fused_forward.1} parent=5 // pred_region
      // Predicated region
      $region41: #{_fused_forward.1} parent=39 // pred_check
        %p256 = pneg %p35
      $region42: #{_fused_forward.1} parent=39 // pred_check_branch
        %258 = sbr.rel (%p256) target = $region44
      $region43: #{_fused_forward.1} parent=39 // pred_region
        %p259 = scmp.lt.s32.totalorder %s15, 1
        %s260 = scalar_select %p259, %s15, 1
        %s261 = smul.addr %s260, 3
        %s262 = smul.addr %s261, 8
        %s263 = scalar_lea.vmem %s0, %s262
      $region44: #{_fused_forward.1} parent=39 // pred_fallthru
        _
    $region40: #{_fused_forward.1} parent=5 // pred_fallthru
      _
    %p264 = scmp.le.s32.totalorder 1, %s15
    %p265 = scmp.lt.s32.totalorder %s15, 3
    %p266 = pnand %p264, %p265
    %p267 = pneg %p266
    // Predicated region
    $region45: #{_fused_forward.1} parent=5 // pred_check
      _
    $region46: #{_fused_forward.1} parent=5 // pred_check_branch
      %269 = sbr.rel (%p266) target = $region48
    $region47: #{_fused_forward.1} parent=5 // pred_region
      %s270 = ssub.s32 %s15, 1
      %p271 = scmp.lt.s32.totalorder %s20, 1
      %s272 = scalar_select %p271, %s20, 1
      %s273 = smul.addr %s272, 3
      %s274 = smul.addr %s273, 8
      %s275 = scalar_lea.vmem %s0, %s274
      %p276 = pneg %p41
      %p277 = pneg %p38
      %p278 = pneg %p62
      %p279 = pneg %p59
      %p280 = pneg %p83
      %p281 = pneg %p80
      %p282 = pneg %p104
      %p283 = pneg %p101
      %p284 = pneg %p125
      %p285 = pneg %p122
      %p286 = pneg %p146
      %p287 = pneg %p143
      %p288 = pneg %p167
      %p289 = pneg %p164
      %p290 = pneg %p193
      %p291 = pneg %p190
      %p292 = scmp.lt.s32.totalorder %s20, 1
      %s293 = scalar_select %p292, %s20, 1
      %s294 = smul.addr %s293, 2
      %s295 = scalar_lea.vmem %s7, %s294
      %p296 = pneg %p219
      %p297 = pneg %p216
      %p298 = scmp.lt.s32.totalorder %s20, 1
      %s299 = scalar_select %p298, %s20, 1
      %s300 = smul.addr %s299, 3
      %s301 = smul.addr %s300, 8
      %s302 = scalar_lea.vmem %s8, %s301
      %p303 = scmp.lt.s32.totalorder %s20, 1
      %s304 = scalar_select %p303, %s20, 1
      %s305 = smul.addr %s304, 3
      %s306 = smul.addr %s305, 8
      %s307 = scalar_lea.vmem %s0, %s306
      %p308 = scmp.lt.s32.totalorder %s20, 1
      %s309 = scalar_select %p308, %s20, 1
      %s310 = smul.addr %s309, 2
      %s311 = scalar_lea.vmem %s7, %s310
      %p312 = scmp.lt.s32.totalorder %s20, 1
      %s313 = scalar_select %p312, %s20, 1
      %s314 = smul.addr %s313, 3
      %s315 = smul.addr %s314, 8
      %s316 = scalar_lea.vmem %s8, %s315
      %v317 = vlaneseq
      %v318 = vand.u32 %v317, 127
      %v319 = vadd.s32 %v318, 128
      %v320 = vadd.s32 %v318, 256
      %vm321 = vcmp.lt.s32.totalorder %v318, 0
      %v322 = vsub.s32 0, %v318
      %v323 = vsel %vm321, %v322, %v318
      %v324 = vand.u32 %v323, 65535
      %v325 = vshrl.u32 %v323, 16
      %v327 = vmul.u32 %v324, 14564
      %v328 = vmul.u32 %v324, 58254
      %v329 = vmul.u32 %v325, 14564
      %v330 = vmul.u32 %v325, 58254
      %v331 = vshll.u32 %v328, 16
      %v332 = vshrl.u32 %v328, 16
      %v333 = vshll.u32 %v329, 16
      %v334 = vshrl.u32 %v329, 16
      %vm335 = vc.u32 %v327, %v331
      %v336 = vsel %vm335, 1, 0
      %v337 = vadd.s32 %v327, %v331
      %v338 = vadd.s32 %v330, %v336
      %vm339 = vc.u32 %v337, %v333
      %v340 = vsel %vm339, 1, 0
      %v341 = vadd.s32 %v337, %v333
      %v342 = vadd.s32 %v338, %v340
      %v343 = vadd.s32 %v342, %v332
      %v344 = vadd.s32 %v343, %v334
      %v345 = vshrl.u32 %v344, 4
      %v346 = vmul.u32 %v345, 18
      %v347 = vsub.s32 %v323, %v346
      %v348 = vsub.s32 0, %v347
      %v349 = vsel %vm321, %v348, %v347
      %vm350 = vcmp.lt.s32.totalorder %v319, 0
      %v351 = vsub.s32 0, %v319
      %v352 = vsel %vm350, %v351, %v319
      %v353 = vand.u32 %v352, 65535
      %v354 = vshrl.u32 %v352, 16
      %v356 = vmul.u32 %v353, 14564
      %v357 = vmul.u32 %v353, 58254
      %v358 = vmul.u32 %v354, 14564
      %v359 = vmul.u32 %v354, 58254
      %v360 = vshll.u32 %v357, 16
      %v361 = vshrl.u32 %v357, 16
      %v362 = vshll.u32 %v358, 16
      %v363 = vshrl.u32 %v358, 16
      %vm364 = vc.u32 %v356, %v360
      %v365 = vsel %vm364, 1, 0
      %v366 = vadd.s32 %v356, %v360
      %v367 = vadd.s32 %v359, %v365
      %vm368 = vc.u32 %v366, %v362
      %v369 = vsel %vm368, 1, 0
      %v370 = vadd.s32 %v366, %v362
      %v371 = vadd.s32 %v367, %v369
      %v372 = vadd.s32 %v371, %v361
      %v373 = vadd.s32 %v372, %v363
      %v374 = vshrl.u32 %v373, 4
      %v375 = vmul.u32 %v374, 18
      %v376 = vsub.s32 %v352, %v375
      %v377 = vsub.s32 0, %v376
      %v378 = vsel %vm350, %v377, %v376
      %vm379 = vcmp.lt.s32.totalorder %v320, 0
      %v380 = vsub.s32 0, %v320
      %v381 = vsel %vm379, %v380, %v320
      %v382 = vand.u32 %v381, 65535
      %v383 = vshrl.u32 %v381, 16
      %v385 = vmul.u32 %v382, 14564
      %v386 = vmul.u32 %v382, 58254
      %v387 = vmul.u32 %v383, 14564
      %v388 = vmul.u32 %v383, 58254
      %v389 = vshll.u32 %v386, 16
      %v390 = vshrl.u32 %v386, 16
      %v391 = vshll.u32 %v387, 16
      %v392 = vshrl.u32 %v387, 16
      %vm393 = vc.u32 %v385, %v389
      %v394 = vsel %vm393, 1, 0
      %v395 = vadd.s32 %v385, %v389
      %v396 = vadd.s32 %v388, %v394
      %vm397 = vc.u32 %v395, %v391
      %v398 = vsel %vm397, 1, 0
      %v399 = vadd.s32 %v395, %v391
      %v400 = vadd.s32 %v396, %v398
      %v401 = vadd.s32 %v400, %v390
      %v402 = vadd.s32 %v401, %v392
      %v403 = vshrl.u32 %v402, 4
      %v404 = vmul.u32 %v403, 18
      %v405 = vsub.s32 %v381, %v404
      %v406 = vsub.s32 0, %v405
      %v407 = vsel %vm379, %v406, %v405
      %vm408 = vcmp.ne.s32.totalorder %v349, 0
      %vm409 = vcmp.ne.s32.totalorder %v378, 0
      %vm410 = vcmp.ne.s32.totalorder %v407, 0
      %vm411 = vcmp.lt.s32.totalorder %v349, 0
      %vm412 = vcmp.lt.s32.totalorder %v378, 0
      %vm413 = vcmp.lt.s32.totalorder %v407, 0
      %vm414 = vmand %vm411, %vm408
      %vm415 = vmand %vm412, %vm409
      %vm416 = vmand %vm413, %vm410
      %v417 = vadd.s32 %v349, 18
      %v418 = vadd.s32 %v378, 18
      %v419 = vadd.s32 %v407, 18
      %v420 = vsel %vm414, %v417, %v349
      %v421 = vsel %vm415, %v418, %v378
      %v422 = vsel %vm416, %v419, %v407
      %vm423 = vcmp.lt.s32.totalorder %v420, 16
      %vm424 = vcmp.lt.s32.totalorder %v421, 16
      %vm425 = vcmp.lt.s32.totalorder %v422, 16
      %v426 = vsel %vm423, 1, 0
      %v427 = vsel %vm424, 1, 0
      %v428 = vsel %vm425, 1, 0
      %v429 = vcvt.s32.f32 %v426
      %v430 = vcvt.s32.f32 %v427
      %v431 = vcvt.s32.f32 %v428
      %432 = vst [vmem:[#allocation2] sm:$0xff] 0.0
      %433 = vst [vmem:[#allocation2 + $0x8] sm:$0xff] 0.0
      %vm434 = vcmask 703488
      %435 = vst.msk [vmem:[#allocation2 + $0x10] sm:$0xff] %vm434, 0.0
      %v436 = vld [vmem:[%s307] sm:$0xff]
      %v437 = vld [vmem:[%s307 + $0x8] sm:$0xff]
      %v438 = vld [vmem:[%s307 + $0x10] sm:$0xff]
      %v439 = vld [vmem:[%s1] sm:$0xff]
      %s440 = scalar_lea.vmem %s1, 8
      %v441 = vld [vmem:[%s440] sm:$0xff]
      %445 = vrot.lane.b32.xlu0 %v436, 127
      %v446 = vpop.permute.xlu0 %445
      %447 = vrot.lane.b32.xlu0 %v437, 127
      %v448 = vpop.permute.xlu0 %447
      %449 = vrot.lane.b32.xlu0 %v438, 127
      %v450 = vpop.permute.xlu0 %449
      %vm451 = vcmask 1039360
      %v452 = vsel %vm451, %v446, %v448
      %v453 = vsel %vm451, %v448, %v450
      %vm457 = vcmask 64512
      %v459 = vsel %vm457, %v441, 0
      %461 = vmatpush.msra.mxu0 0.0
      %462 = vmatpush.msra.mxu0 0.0
      %463 = vmatpush.msra.mxu0 0.0
      %464 = vmatpush.msra.mxu0 0.0
      %465 = vmatpush.msra.mxu0 0.0
      %466 = vmatpush.msra.mxu0 0.0
      %467 = vmatpush.msra.mxu0 0.0
      %468 = vmatpush.msra.mxu0 0.0
      %469 = vmatpush.msra.mxu0 0.0
      %470 = vmatpush.msra.mxu0 0.0
      %471 = vmatpush.msra.mxu0 0.0
      %472 = vmatpush.msra.mxu0 0.0
      %473 = vmatpush.msra.mxu0 0.0
      %474 = vmatpush.msra.mxu0 0.0
      %475 = vmatpush.msra.mxu0 0.0
      %476 = vmatpush.msra.mxu0 %v452
      %477 = vmatmul.f32.gmra.mxu0 %v459
      %v478 = vpop.f32.mrf.mxu0
      %v479 = vadd.f32 0.0, %v478
      %480 = vdwg.mxu0
      %481 = vmatpush.msra.mxu0 0.0
      %482 = vmatpush.msra.mxu0 0.0
      %483 = vmatpush.msra.mxu0 0.0
      %484 = vmatpush.msra.mxu0 0.0
      %485 = vmatpush.msra.mxu0 0.0
      %486 = vmatpush.msra.mxu0 0.0
      %487 = vmatpush.msra.mxu0 0.0
      %488 = vmatpush.msra.mxu0 0.0
      %489 = vmatpush.msra.mxu0 0.0
      %490 = vmatpush.msra.mxu0 0.0
      %491 = vmatpush.msra.mxu0 0.0
      %492 = vmatpush.msra.mxu0 0.0
      %493 = vmatpush.msra.mxu0 0.0
      %494 = vmatpush.msra.mxu0 0.0
      %495 = vmatpush.msra.mxu0 0.0
      %496 = vmatpush.msra.mxu0 %v453
      %497 = vmatmul.f32.gmra.mxu0 %v459
      %v498 = vpop.f32.mrf.mxu0
      %v499 = vadd.f32 0.0, %v498
      %500 = vdwg.mxu0
      %501 = vmatpush.msra.mxu0 0.0
      %502 = vmatpush.msra.mxu0 0.0
      %503 = vmatpush.msra.mxu0 0.0
      %504 = vmatpush.msra.mxu0 0.0
      %505 = vmatpush.msra.mxu0 0.0
      %506 = vmatpush.msra.mxu0 0.0
      %507 = vmatpush.msra.mxu0 0.0
      %508 = vmatpush.msra.mxu0 0.0
      %509 = vmatpush.msra.mxu0 0.0
      %510 = vmatpush.msra.mxu0 0.0
      %511 = vmatpush.msra.mxu0 0.0
      %512 = vmatpush.msra.mxu0 0.0
      %513 = vmatpush.msra.mxu0 0.0
      %514 = vmatpush.msra.mxu0 0.0
      %515 = vmatpush.msra.mxu0 0.0
      %516 = vmatpush.msra.mxu0 %v450
      %517 = vmatmul.f32.gmra.mxu0 %v459
      %v518 = vpop.f32.mrf.mxu0
      %v519 = vadd.f32 0.0, %v518
      %520 = vdwg.mxu0
      %v522 = vsel %vm457, %v439, 0
      %524 = vmatpush.msra.mxu0 0.0
      %525 = vmatpush.msra.mxu0 0.0
      %526 = vmatpush.msra.mxu0 0.0
      %527 = vmatpush.msra.mxu0 0.0
      %528 = vmatpush.msra.mxu0 0.0
      %529 = vmatpush.msra.mxu0 0.0
      %530 = vmatpush.msra.mxu0 0.0
      %531 = vmatpush.msra.mxu0 0.0
      %532 = vmatpush.msra.mxu0 0.0
      %533 = vmatpush.msra.mxu0 0.0
      %534 = vmatpush.msra.mxu0 0.0
      %535 = vmatpush.msra.mxu0 0.0
      %536 = vmatpush.msra.mxu0 0.0
      %537 = vmatpush.msra.mxu0 0.0
      %538 = vmatpush.msra.mxu0 0.0
      %539 = vmatpush.msra.mxu0 %v436
      %540 = vmatmul.f32.gmra.mxu0 %v522
      %v541 = vpop.f32.mrf.mxu0
      %v542 = vadd.f32 %v479, %v541
      %543 = vdwg.mxu0
      %544 = vmatpush.msra.mxu0 0.0
      %545 = vmatpush.msra.mxu0 0.0
      %546 = vmatpush.msra.mxu0 0.0
      %547 = vmatpush.msra.mxu0 0.0
      %548 = vmatpush.msra.mxu0 0.0
      %549 = vmatpush.msra.mxu0 0.0
      %550 = vmatpush.msra.mxu0 0.0
      %551 = vmatpush.msra.mxu0 0.0
      %552 = vmatpush.msra.mxu0 0.0
      %553 = vmatpush.msra.mxu0 0.0
      %554 = vmatpush.msra.mxu0 0.0
      %555 = vmatpush.msra.mxu0 0.0
      %556 = vmatpush.msra.mxu0 0.0
      %557 = vmatpush.msra.mxu0 0.0
      %558 = vmatpush.msra.mxu0 0.0
      %559 = vmatpush.msra.mxu0 %v437
      %560 = vmatmul.f32.gmra.mxu0 %v522
      %v561 = vpop.f32.mrf.mxu0
      %v562 = vadd.f32 %v499, %v561
      %563 = vdwg.mxu0
      %564 = vmatpush.msra.mxu0 0.0
      %565 = vmatpush.msra.mxu0 0.0
      %566 = vmatpush.msra.mxu0 0.0
      %567 = vmatpush.msra.mxu0 0.0
      %568 = vmatpush.msra.mxu0 0.0
      %569 = vmatpush.msra.mxu0 0.0
      %570 = vmatpush.msra.mxu0 0.0
      %571 = vmatpush.msra.mxu0 0.0
      %572 = vmatpush.msra.mxu0 0.0
      %573 = vmatpush.msra.mxu0 0.0
      %574 = vmatpush.msra.mxu0 0.0
      %575 = vmatpush.msra.mxu0 0.0
      %576 = vmatpush.msra.mxu0 0.0
      %577 = vmatpush.msra.mxu0 0.0
      %578 = vmatpush.msra.mxu0 0.0
      %579 = vmatpush.msra.mxu0 %v438
      %580 = vmatmul.f32.gmra.mxu0 %v522
      %v581 = vpop.f32.mrf.mxu0
      %v582 = vadd.f32 %v519, %v581
      %583 = vdwg.mxu0
      %s584 = scalar_lea.vmem %s1, 16
      %v585 = vld [vmem:[%s584] sm:$0xff]
      %586 = vrot.lane.b32.xlu0 %v436, 126
      %v587 = vpop.permute.xlu0 %586
      %588 = vrot.lane.b32.xlu0 %v437, 126
      %v589 = vpop.permute.xlu0 %588
      %590 = vrot.lane.b32.xlu0 %v438, 126
      %v591 = vpop.permute.xlu0 %590
      %vm592 = vcmask 1031168
      %v593 = vsel %vm592, %v587, %v589
      %v594 = vsel %vm592, %v589, %v591
      %v599 = vsel %vm457, %v585, 0
      %601 = vmatpush.msra.mxu0 0.0
      %602 = vmatpush.msra.mxu0 0.0
      %603 = vmatpush.msra.mxu0 0.0
      %604 = vmatpush.msra.mxu0 0.0
      %605 = vmatpush.msra.mxu0 0.0
      %606 = vmatpush.msra.mxu0 0.0
      %607 = vmatpush.msra.mxu0 0.0
      %608 = vmatpush.msra.mxu0 0.0
      %609 = vmatpush.msra.mxu0 0.0
      %610 = vmatpush.msra.mxu0 0.0
      %611 = vmatpush.msra.mxu0 0.0
      %612 = vmatpush.msra.mxu0 0.0
      %613 = vmatpush.msra.mxu0 0.0
      %614 = vmatpush.msra.mxu0 0.0
      %615 = vmatpush.msra.mxu0 0.0
      %616 = vmatpush.msra.mxu0 %v593
      %617 = vmatmul.f32.gmra.mxu0 %v599
      %v618 = vpop.f32.mrf.mxu0
      %v619 = vadd.f32 0.0, %v618
      %620 = vdwg.mxu0
      %621 = vmatpush.msra.mxu0 0.0
      %622 = vmatpush.msra.mxu0 0.0
      %623 = vmatpush.msra.mxu0 0.0
      %624 = vmatpush.msra.mxu0 0.0
      %625 = vmatpush.msra.mxu0 0.0
      %626 = vmatpush.msra.mxu0 0.0
      %627 = vmatpush.msra.mxu0 0.0
      %628 = vmatpush.msra.mxu0 0.0
      %629 = vmatpush.msra.mxu0 0.0
      %630 = vmatpush.msra.mxu0 0.0
      %631 = vmatpush.msra.mxu0 0.0
      %632 = vmatpush.msra.mxu0 0.0
      %633 = vmatpush.msra.mxu0 0.0
      %634 = vmatpush.msra.mxu0 0.0
      %635 = vmatpush.msra.mxu0 0.0
      %636 = vmatpush.msra.mxu0 %v594
      %637 = vmatmul.f32.gmra.mxu0 %v599
      %v638 = vpop.f32.mrf.mxu0
      %v639 = vadd.f32 0.0, %v638
      %640 = vdwg.mxu0
      %641 = vmatpush.msra.mxu0 0.0
      %642 = vmatpush.msra.mxu0 0.0
      %643 = vmatpush.msra.mxu0 0.0
      %644 = vmatpush.msra.mxu0 0.0
      %645 = vmatpush.msra.mxu0 0.0
      %646 = vmatpush.msra.mxu0 0.0
      %647 = vmatpush.msra.mxu0 0.0
      %648 = vmatpush.msra.mxu0 0.0
      %649 = vmatpush.msra.mxu0 0.0
      %650 = vmatpush.msra.mxu0 0.0
      %651 = vmatpush.msra.mxu0 0.0
      %652 = vmatpush.msra.mxu0 0.0
      %653 = vmatpush.msra.mxu0 0.0
      %654 = vmatpush.msra.mxu0 0.0
      %655 = vmatpush.msra.mxu0 0.0
      %656 = vmatpush.msra.mxu0 %v591
      %657 = vmatmul.f32.gmra.mxu0 %v599
      %v658 = vpop.f32.mrf.mxu0
      %v659 = vadd.f32 0.0, %v658
      %660 = vdwg.mxu0
      %v661 = vadd.f32 %v542, %v619
      %v662 = vadd.f32 %v562, %v639
      %v663 = vadd.f32 %v582, %v659
      %s664 = scalar_lea.vmem %s1, 24
      %v665 = vld [vmem:[%s664] sm:$0xff]
      %666 = vrot.lane.b32.xlu0 %v436, 110
      %v667 = vpop.permute.xlu0 %666
      %668 = vrot.lane.b32.xlu0 %v437, 110
      %v669 = vpop.permute.xlu0 %668
      %670 = vrot.lane.b32.xlu0 %v438, 110
      %v671 = vpop.permute.xlu0 %670
      %vm672 = vcmask 900096
      %v673 = vsel %vm672, %v667, %v669
      %v674 = vsel %vm672, %v669, %v671
      %v679 = vsel %vm457, %v665, 0
      %681 = vmatpush.msra.mxu0 0.0
      %682 = vmatpush.msra.mxu0 0.0
      %683 = vmatpush.msra.mxu0 0.0
      %684 = vmatpush.msra.mxu0 0.0
      %685 = vmatpush.msra.mxu0 0.0
      %686 = vmatpush.msra.mxu0 0.0
      %687 = vmatpush.msra.mxu0 0.0
      %688 = vmatpush.msra.mxu0 0.0
      %689 = vmatpush.msra.mxu0 0.0
      %690 = vmatpush.msra.mxu0 0.0
      %691 = vmatpush.msra.mxu0 0.0
      %692 = vmatpush.msra.mxu0 0.0
      %693 = vmatpush.msra.mxu0 0.0
      %694 = vmatpush.msra.mxu0 0.0
      %695 = vmatpush.msra.mxu0 0.0
      %696 = vmatpush.msra.mxu0 %v673
      %697 = vmatmul.f32.gmra.mxu0 %v679
      %v698 = vpop.f32.mrf.mxu0
      %v699 = vadd.f32 0.0, %v698
      %700 = vdwg.mxu0
      %701 = vmatpush.msra.mxu0 0.0
      %702 = vmatpush.msra.mxu0 0.0
      %703 = vmatpush.msra.mxu0 0.0
      %704 = vmatpush.msra.mxu0 0.0
      %705 = vmatpush.msra.mxu0 0.0
      %706 = vmatpush.msra.mxu0 0.0
      %707 = vmatpush.msra.mxu0 0.0
      %708 = vmatpush.msra.mxu0 0.0
      %709 = vmatpush.msra.mxu0 0.0
      %710 = vmatpush.msra.mxu0 0.0
      %711 = vmatpush.msra.mxu0 0.0
      %712 = vmatpush.msra.mxu0 0.0
      %713 = vmatpush.msra.mxu0 0.0
      %714 = vmatpush.msra.mxu0 0.0
      %715 = vmatpush.msra.mxu0 0.0
      %716 = vmatpush.msra.mxu0 %v674
      %717 = vmatmul.f32.gmra.mxu0 %v679
      %v718 = vpop.f32.mrf.mxu0
      %v719 = vadd.f32 0.0, %v718
      %720 = vdwg.mxu0
      %721 = vmatpush.msra.mxu0 0.0
      %722 = vmatpush.msra.mxu0 0.0
      %723 = vmatpush.msra.mxu0 0.0
      %724 = vmatpush.msra.mxu0 0.0
      %725 = vmatpush.msra.mxu0 0.0
      %726 = vmatpush.msra.mxu0 0.0
      %727 = vmatpush.msra.mxu0 0.0
      %728 = vmatpush.msra.mxu0 0.0
      %729 = vmatpush.msra.mxu0 0.0
      %730 = vmatpush.msra.mxu0 0.0
      %731 = vmatpush.msra.mxu0 0.0
      %732 = vmatpush.msra.mxu0 0.0
      %733 = vmatpush.msra.mxu0 0.0
      %734 = vmatpush.msra.mxu0 0.0
      %735 = vmatpush.msra.mxu0 0.0
      %736 = vmatpush.msra.mxu0 %v671
      %737 = vmatmul.f32.gmra.mxu0 %v679
      %v738 = vpop.f32.mrf.mxu0
      %v739 = vadd.f32 0.0, %v738
      %740 = vdwg.mxu0
      %v741 = vadd.f32 %v661, %v699
      %v742 = vadd.f32 %v662, %v719
      %v743 = vadd.f32 %v663, %v739
      %s744 = scalar_lea.vmem %s1, 32
      %v745 = vld [vmem:[%s744] sm:$0xff]
      %746 = vrot.lane.b32.xlu0 %v436, 109
      %v747 = vpop.permute.xlu0 %746
      %748 = vrot.lane.b32.xlu0 %v437, 109
      %v749 = vpop.permute.xlu0 %748
      %750 = vrot.lane.b32.xlu0 %v438, 109
      %v751 = vpop.permute.xlu0 %750
      %vm752 = vcmask 891904
      %v753 = vsel %vm752, %v747, %v749
      %v754 = vsel %vm752, %v749, %v751
      %v759 = vsel %vm457, %v745, 0
      %761 = vmatpush.msra.mxu0 0.0
      %762 = vmatpush.msra.mxu0 0.0
      %763 = vmatpush.msra.mxu0 0.0
      %764 = vmatpush.msra.mxu0 0.0
      %765 = vmatpush.msra.mxu0 0.0
      %766 = vmatpush.msra.mxu0 0.0
      %767 = vmatpush.msra.mxu0 0.0
      %768 = vmatpush.msra.mxu0 0.0
      %769 = vmatpush.msra.mxu0 0.0
      %770 = vmatpush.msra.mxu0 0.0
      %771 = vmatpush.msra.mxu0 0.0
      %772 = vmatpush.msra.mxu0 0.0
      %773 = vmatpush.msra.mxu0 0.0
      %774 = vmatpush.msra.mxu0 0.0
      %775 = vmatpush.msra.mxu0 0.0
      %776 = vmatpush.msra.mxu0 %v753
      %777 = vmatmul.f32.gmra.mxu0 %v759
      %v778 = vpop.f32.mrf.mxu0
      %v779 = vadd.f32 0.0, %v778
      %780 = vdwg.mxu0
      %781 = vmatpush.msra.mxu0 0.0
      %782 = vmatpush.msra.mxu0 0.0
      %783 = vmatpush.msra.mxu0 0.0
      %784 = vmatpush.msra.mxu0 0.0
      %785 = vmatpush.msra.mxu0 0.0
      %786 = vmatpush.msra.mxu0 0.0
      %787 = vmatpush.msra.mxu0 0.0
      %788 = vmatpush.msra.mxu0 0.0
      %789 = vmatpush.msra.mxu0 0.0
      %790 = vmatpush.msra.mxu0 0.0
      %791 = vmatpush.msra.mxu0 0.0
      %792 = vmatpush.msra.mxu0 0.0
      %793 = vmatpush.msra.mxu0 0.0
      %794 = vmatpush.msra.mxu0 0.0
      %795 = vmatpush.msra.mxu0 0.0
      %796 = vmatpush.msra.mxu0 %v754
      %797 = vmatmul.f32.gmra.mxu0 %v759
      %v798 = vpop.f32.mrf.mxu0
      %v799 = vadd.f32 0.0, %v798
      %800 = vdwg.mxu0
      %801 = vmatpush.msra.mxu0 0.0
      %802 = vmatpush.msra.mxu0 0.0
      %803 = vmatpush.msra.mxu0 0.0
      %804 = vmatpush.msra.mxu0 0.0
      %805 = vmatpush.msra.mxu0 0.0
      %806 = vmatpush.msra.mxu0 0.0
      %807 = vmatpush.msra.mxu0 0.0
      %808 = vmatpush.msra.mxu0 0.0
      %809 = vmatpush.msra.mxu0 0.0
      %810 = vmatpush.msra.mxu0 0.0
      %811 = vmatpush.msra.mxu0 0.0
      %812 = vmatpush.msra.mxu0 0.0
      %813 = vmatpush.msra.mxu0 0.0
      %814 = vmatpush.msra.mxu0 0.0
      %815 = vmatpush.msra.mxu0 0.0
      %816 = vmatpush.msra.mxu0 %v751
      %817 = vmatmul.f32.gmra.mxu0 %v759
      %v818 = vpop.f32.mrf.mxu0
      %v819 = vadd.f32 0.0, %v818
      %820 = vdwg.mxu0
      %v821 = vadd.f32 %v741, %v779
      %v822 = vadd.f32 %v742, %v799
      %v823 = vadd.f32 %v743, %v819
      %s824 = scalar_lea.vmem %s1, 40
      %v825 = vld [vmem:[%s824] sm:$0xff]
      %826 = vrot.lane.b32.xlu0 %v436, 108
      %v827 = vpop.permute.xlu0 %826
      %828 = vrot.lane.b32.xlu0 %v437, 108
      %v829 = vpop.permute.xlu0 %828
      %830 = vrot.lane.b32.xlu0 %v438, 108
      %v831 = vpop.permute.xlu0 %830
      %vm832 = vcmask 883712
      %v833 = vsel %vm832, %v827, %v829
      %v834 = vsel %vm832, %v829, %v831
      %v839 = vsel %vm457, %v825, 0
      %841 = vmatpush.msra.mxu0 0.0
      %842 = vmatpush.msra.mxu0 0.0
      %843 = vmatpush.msra.mxu0 0.0
      %844 = vmatpush.msra.mxu0 0.0
      %845 = vmatpush.msra.mxu0 0.0
      %846 = vmatpush.msra.mxu0 0.0
      %847 = vmatpush.msra.mxu0 0.0
      %848 = vmatpush.msra.mxu0 0.0
      %849 = vmatpush.msra.mxu0 0.0
      %850 = vmatpush.msra.mxu0 0.0
      %851 = vmatpush.msra.mxu0 0.0
      %852 = vmatpush.msra.mxu0 0.0
      %853 = vmatpush.msra.mxu0 0.0
      %854 = vmatpush.msra.mxu0 0.0
      %855 = vmatpush.msra.mxu0 0.0
      %856 = vmatpush.msra.mxu0 %v833
      %857 = vmatmul.f32.gmra.mxu0 %v839
      %v858 = vpop.f32.mrf.mxu0
      %v859 = vadd.f32 0.0, %v858
      %860 = vdwg.mxu0
      %861 = vmatpush.msra.mxu0 0.0
      %862 = vmatpush.msra.mxu0 0.0
      %863 = vmatpush.msra.mxu0 0.0
      %864 = vmatpush.msra.mxu0 0.0
      %865 = vmatpush.msra.mxu0 0.0
      %866 = vmatpush.msra.mxu0 0.0
      %867 = vmatpush.msra.mxu0 0.0
      %868 = vmatpush.msra.mxu0 0.0
      %869 = vmatpush.msra.mxu0 0.0
      %870 = vmatpush.msra.mxu0 0.0
      %871 = vmatpush.msra.mxu0 0.0
      %872 = vmatpush.msra.mxu0 0.0
      %873 = vmatpush.msra.mxu0 0.0
      %874 = vmatpush.msra.mxu0 0.0
      %875 = vmatpush.msra.mxu0 0.0
      %876 = vmatpush.msra.mxu0 %v834
      %877 = vmatmul.f32.gmra.mxu0 %v839
      %v878 = vpop.f32.mrf.mxu0
      %v879 = vadd.f32 0.0, %v878
      %880 = vdwg.mxu0
      %881 = vmatpush.msra.mxu0 0.0
      %882 = vmatpush.msra.mxu0 0.0
      %883 = vmatpush.msra.mxu0 0.0
      %884 = vmatpush.msra.mxu0 0.0
      %885 = vmatpush.msra.mxu0 0.0
      %886 = vmatpush.msra.mxu0 0.0
      %887 = vmatpush.msra.mxu0 0.0
      %888 = vmatpush.msra.mxu0 0.0
      %889 = vmatpush.msra.mxu0 0.0
      %890 = vmatpush.msra.mxu0 0.0
      %891 = vmatpush.msra.mxu0 0.0
      %892 = vmatpush.msra.mxu0 0.0
      %893 = vmatpush.msra.mxu0 0.0
      %894 = vmatpush.msra.mxu0 0.0
      %895 = vmatpush.msra.mxu0 0.0
      %896 = vmatpush.msra.mxu0 %v831
      %897 = vmatmul.f32.gmra.mxu0 %v839
      %v898 = vpop.f32.mrf.mxu0
      %v899 = vadd.f32 0.0, %v898
      %900 = vdwg.mxu0
      %v901 = vadd.f32 %v821, %v859
      %v902 = vadd.f32 %v822, %v879
      %v903 = vadd.f32 %v823, %v899
      %s904 = scalar_lea.vmem %s1, 48
      %v905 = vld [vmem:[%s904] sm:$0xff]
      %906 = vrot.lane.b32.xlu0 %v436, 92
      %v907 = vpop.permute.xlu0 %906
      %908 = vrot.lane.b32.xlu0 %v437, 92
      %v909 = vpop.permute.xlu0 %908
      %910 = vrot.lane.b32.xlu0 %v438, 92
      %v911 = vpop.permute.xlu0 %910
      %vm912 = vcmask 752640
      %v913 = vsel %vm912, %v907, %v909
      %v914 = vsel %vm912, %v909, %v911
      %v919 = vsel %vm457, %v905, 0
      %921 = vmatpush.msra.mxu0 0.0
      %922 = vmatpush.msra.mxu0 0.0
      %923 = vmatpush.msra.mxu0 0.0
      %924 = vmatpush.msra.mxu0 0.0
      %925 = vmatpush.msra.mxu0 0.0
      %926 = vmatpush.msra.mxu0 0.0
      %927 = vmatpush.msra.mxu0 0.0
      %928 = vmatpush.msra.mxu0 0.0
      %929 = vmatpush.msra.mxu0 0.0
      %930 = vmatpush.msra.mxu0 0.0
      %931 = vmatpush.msra.mxu0 0.0
      %932 = vmatpush.msra.mxu0 0.0
      %933 = vmatpush.msra.mxu0 0.0
      %934 = vmatpush.msra.mxu0 0.0
      %935 = vmatpush.msra.mxu0 0.0
      %936 = vmatpush.msra.mxu0 %v913
      %937 = vmatmul.f32.gmra.mxu0 %v919
      %v938 = vpop.f32.mrf.mxu0
      %v939 = vadd.f32 0.0, %v938
      %940 = vdwg.mxu0
      %941 = vmatpush.msra.mxu0 0.0
      %942 = vmatpush.msra.mxu0 0.0
      %943 = vmatpush.msra.mxu0 0.0
      %944 = vmatpush.msra.mxu0 0.0
      %945 = vmatpush.msra.mxu0 0.0
      %946 = vmatpush.msra.mxu0 0.0
      %947 = vmatpush.msra.mxu0 0.0
      %948 = vmatpush.msra.mxu0 0.0
      %949 = vmatpush.msra.mxu0 0.0
      %950 = vmatpush.msra.mxu0 0.0
      %951 = vmatpush.msra.mxu0 0.0
      %952 = vmatpush.msra.mxu0 0.0
      %953 = vmatpush.msra.mxu0 0.0
      %954 = vmatpush.msra.mxu0 0.0
      %955 = vmatpush.msra.mxu0 0.0
      %956 = vmatpush.msra.mxu0 %v914
      %957 = vmatmul.f32.gmra.mxu0 %v919
      %v958 = vpop.f32.mrf.mxu0
      %v959 = vadd.f32 0.0, %v958
      %960 = vdwg.mxu0
      %961 = vmatpush.msra.mxu0 0.0
      %962 = vmatpush.msra.mxu0 0.0
      %963 = vmatpush.msra.mxu0 0.0
      %964 = vmatpush.msra.mxu0 0.0
      %965 = vmatpush.msra.mxu0 0.0
      %966 = vmatpush.msra.mxu0 0.0
      %967 = vmatpush.msra.mxu0 0.0
      %968 = vmatpush.msra.mxu0 0.0
      %969 = vmatpush.msra.mxu0 0.0
      %970 = vmatpush.msra.mxu0 0.0
      %971 = vmatpush.msra.mxu0 0.0
      %972 = vmatpush.msra.mxu0 0.0
      %973 = vmatpush.msra.mxu0 0.0
      %974 = vmatpush.msra.mxu0 0.0
      %975 = vmatpush.msra.mxu0 0.0
      %976 = vmatpush.msra.mxu0 %v911
      %977 = vmatmul.f32.gmra.mxu0 %v919
      %v978 = vpop.f32.mrf.mxu0
      %v979 = vadd.f32 0.0, %v978
      %980 = vdwg.mxu0
      %v981 = vadd.f32 %v901, %v939
      %v982 = vadd.f32 %v902, %v959
      %v983 = vadd.f32 %v903, %v979
      %s984 = scalar_lea.vmem %s1, 56
      %v985 = vld [vmem:[%s984] sm:$0xff]
      %986 = vrot.lane.b32.xlu0 %v436, 91
      %v987 = vpop.permute.xlu0 %986
      %988 = vrot.lane.b32.xlu0 %v437, 91
      %v989 = vpop.permute.xlu0 %988
      %990 = vrot.lane.b32.xlu0 %v438, 91
      %v991 = vpop.permute.xlu0 %990
      %vm992 = vcmask 744448
      %v993 = vsel %vm992, %v987, %v989
      %v994 = vsel %vm992, %v989, %v991
      %v999 = vsel %vm457, %v985, 0
      %1001 = vmatpush.msra.mxu0 0.0
      %1002 = vmatpush.msra.mxu0 0.0
      %1003 = vmatpush.msra.mxu0 0.0
      %1004 = vmatpush.msra.mxu0 0.0
      %1005 = vmatpush.msra.mxu0 0.0
      %1006 = vmatpush.msra.mxu0 0.0
      %1007 = vmatpush.msra.mxu0 0.0
      %1008 = vmatpush.msra.mxu0 0.0
      %1009 = vmatpush.msra.mxu0 0.0
      %1010 = vmatpush.msra.mxu0 0.0
      %1011 = vmatpush.msra.mxu0 0.0
      %1012 = vmatpush.msra.mxu0 0.0
      %1013 = vmatpush.msra.mxu0 0.0
      %1014 = vmatpush.msra.mxu0 0.0
      %1015 = vmatpush.msra.mxu0 0.0
      %1016 = vmatpush.msra.mxu0 %v993
      %1017 = vmatmul.f32.gmra.mxu0 %v999
      %v1018 = vpop.f32.mrf.mxu0
      %v1019 = vadd.f32 0.0, %v1018
      %1020 = vdwg.mxu0
      %1021 = vmatpush.msra.mxu0 0.0
      %1022 = vmatpush.msra.mxu0 0.0
      %1023 = vmatpush.msra.mxu0 0.0
      %1024 = vmatpush.msra.mxu0 0.0
      %1025 = vmatpush.msra.mxu0 0.0
      %1026 = vmatpush.msra.mxu0 0.0
      %1027 = vmatpush.msra.mxu0 0.0
      %1028 = vmatpush.msra.mxu0 0.0
      %1029 = vmatpush.msra.mxu0 0.0
      %1030 = vmatpush.msra.mxu0 0.0
      %1031 = vmatpush.msra.mxu0 0.0
      %1032 = vmatpush.msra.mxu0 0.0
      %1033 = vmatpush.msra.mxu0 0.0
      %1034 = vmatpush.msra.mxu0 0.0
      %1035 = vmatpush.msra.mxu0 0.0
      %1036 = vmatpush.msra.mxu0 %v994
      %1037 = vmatmul.f32.gmra.mxu0 %v999
      %v1038 = vpop.f32.mrf.mxu0
      %v1039 = vadd.f32 0.0, %v1038
      %1040 = vdwg.mxu0
      %1041 = vmatpush.msra.mxu0 0.0
      %1042 = vmatpush.msra.mxu0 0.0
      %1043 = vmatpush.msra.mxu0 0.0
      %1044 = vmatpush.msra.mxu0 0.0
      %1045 = vmatpush.msra.mxu0 0.0
      %1046 = vmatpush.msra.mxu0 0.0
      %1047 = vmatpush.msra.mxu0 0.0
      %1048 = vmatpush.msra.mxu0 0.0
      %1049 = vmatpush.msra.mxu0 0.0
      %1050 = vmatpush.msra.mxu0 0.0
      %1051 = vmatpush.msra.mxu0 0.0
      %1052 = vmatpush.msra.mxu0 0.0
      %1053 = vmatpush.msra.mxu0 0.0
      %1054 = vmatpush.msra.mxu0 0.0
      %1055 = vmatpush.msra.mxu0 0.0
      %1056 = vmatpush.msra.mxu0 %v991
      %1057 = vmatmul.f32.gmra.mxu0 %v999
      %v1058 = vpop.f32.mrf.mxu0
      %v1059 = vadd.f32 0.0, %v1058
      %1060 = vdwg.mxu0
      %v1061 = vadd.f32 %v981, %v1019
      %v1062 = vadd.f32 %v982, %v1039
      %v1063 = vadd.f32 %v983, %v1059
      %s1064 = scalar_lea.vmem %s1, 64
      %v1065 = vld [vmem:[%s1064] sm:$0xff]
      %1066 = vrot.lane.b32.xlu0 %v436, 90
      %v1067 = vpop.permute.xlu0 %1066
      %1068 = vrot.lane.b32.xlu0 %v437, 90
      %v1069 = vpop.permute.xlu0 %1068
      %1070 = vrot.lane.b32.xlu0 %v438, 90
      %v1071 = vpop.permute.xlu0 %1070
      %vm1072 = vcmask 736256
      %v1073 = vsel %vm1072, %v1067, %v1069
      %v1074 = vsel %vm1072, %v1069, %v1071
      %v1079 = vsel %vm457, %v1065, 0
      %1081 = vmatpush.msra.mxu0 0.0
      %1082 = vmatpush.msra.mxu0 0.0
      %1083 = vmatpush.msra.mxu0 0.0
      %1084 = vmatpush.msra.mxu0 0.0
      %1085 = vmatpush.msra.mxu0 0.0
      %1086 = vmatpush.msra.mxu0 0.0
      %1087 = vmatpush.msra.mxu0 0.0
      %1088 = vmatpush.msra.mxu0 0.0
      %1089 = vmatpush.msra.mxu0 0.0
      %1090 = vmatpush.msra.mxu0 0.0
      %1091 = vmatpush.msra.mxu0 0.0
      %1092 = vmatpush.msra.mxu0 0.0
      %1093 = vmatpush.msra.mxu0 0.0
      %1094 = vmatpush.msra.mxu0 0.0
      %1095 = vmatpush.msra.mxu0 0.0
      %1096 = vmatpush.msra.mxu0 %v1073
      %1097 = vmatmul.f32.gmra.mxu0 %v1079
      %v1098 = vpop.f32.mrf.mxu0
      %v1099 = vadd.f32 0.0, %v1098
      %1100 = vdwg.mxu0
      %1101 = vmatpush.msra.mxu0 0.0
      %1102 = vmatpush.msra.mxu0 0.0
      %1103 = vmatpush.msra.mxu0 0.0
      %1104 = vmatpush.msra.mxu0 0.0
      %1105 = vmatpush.msra.mxu0 0.0
      %1106 = vmatpush.msra.mxu0 0.0
      %1107 = vmatpush.msra.mxu0 0.0
      %1108 = vmatpush.msra.mxu0 0.0
      %1109 = vmatpush.msra.mxu0 0.0
      %1110 = vmatpush.msra.mxu0 0.0
      %1111 = vmatpush.msra.mxu0 0.0
      %1112 = vmatpush.msra.mxu0 0.0
      %1113 = vmatpush.msra.mxu0 0.0
      %1114 = vmatpush.msra.mxu0 0.0
      %1115 = vmatpush.msra.mxu0 0.0
      %1116 = vmatpush.msra.mxu0 %v1074
      %1117 = vmatmul.f32.gmra.mxu0 %v1079
      %v1118 = vpop.f32.mrf.mxu0
      %v1119 = vadd.f32 0.0, %v1118
      %1120 = vdwg.mxu0
      %1121 = vmatpush.msra.mxu0 0.0
      %1122 = vmatpush.msra.mxu0 0.0
      %1123 = vmatpush.msra.mxu0 0.0
      %1124 = vmatpush.msra.mxu0 0.0
      %1125 = vmatpush.msra.mxu0 0.0
      %1126 = vmatpush.msra.mxu0 0.0
      %1127 = vmatpush.msra.mxu0 0.0
      %1128 = vmatpush.msra.mxu0 0.0
      %1129 = vmatpush.msra.mxu0 0.0
      %1130 = vmatpush.msra.mxu0 0.0
      %1131 = vmatpush.msra.mxu0 0.0
      %1132 = vmatpush.msra.mxu0 0.0
      %1133 = vmatpush.msra.mxu0 0.0
      %1134 = vmatpush.msra.mxu0 0.0
      %1135 = vmatpush.msra.mxu0 0.0
      %1136 = vmatpush.msra.mxu0 %v1071
      %1137 = vmatmul.f32.gmra.mxu0 %v1079
      %v1138 = vpop.f32.mrf.mxu0
      %v1139 = vadd.f32 0.0, %v1138
      %1140 = vdwg.mxu0
      %v1141 = vadd.f32 %v1061, %v1099
      %v1142 = vadd.f32 %v1062, %v1119
      %v1143 = vadd.f32 %v1063, %v1139
      %v1144 = vld [vmem:[%s2] sm:$0xff]
      %1146 = vset.pattern.permute.xlu0 0
      %1147 = vperm.xlu0 %1146, %v1144
      %v1148 = vpop.permute.xlu0 %1147
      %v1150 = vadd.f32 %v1141, %v1148
      %v1151 = vadd.f32 %v1142, %v1148
      %v1152 = vadd.f32 %v1143, %v1148
      %v1153 = vmax.f32 %v1150, 0.0
      %v1154 = vmax.f32 %v1151, 0.0
      %v1155 = vmax.f32 %v1152, 0.0
      %v1156 = vmul.f32 %v1153, %v429
      %v1157 = vmul.f32 %v1154, %v430
      %v1158 = vmul.f32 %v1155, %v431
      %1162 = vrot.lane.b32.xlu0 %v1156, 19
      %v1163 = vpop.permute.xlu0 %1162
      %1164 = vrot.lane.b32.xlu0 %v1157, 19
      %v1165 = vpop.permute.xlu0 %1164
      %1166 = vrot.lane.b32.xlu0 %v1158, 19
      %v1167 = vpop.permute.xlu0 %1166
      %vm1168 = vcmask 154624
      %v1169 = vsel %vm1168, %v1163, %v1165
      %v1170 = vsel %vm1168, %v1165, %v1167
      %vm1174 = vcmask 1047704
      %1175 = vst.msk [vmem:[#allocation2] sm:$0xff] %vm1174, %v1163
      %1176 = vst [vmem:[#allocation2 + $0x8] sm:$0xff] %v1169
      %vm1177 = vcmask 416768
      %1178 = vst.msk [vmem:[#allocation2 + $0x10] sm:$0xff] %vm1177, %v1170
      %v1179 = vld [vmem:[#allocation2] sm:$0xff]
      %v1180 = vld [vmem:[#allocation2 + $0x8] sm:$0xff]
      %v1181 = vld [vmem:[#allocation2 + $0x10] sm:$0xff]
      %v1182 = vld [vmem:[%s3] sm:$0xff]
      %s1183 = scalar_lea.vmem %s3, 8
      %v1184 = vld [vmem:[%s1183] sm:$0xff]
      %1188 = vrot.lane.b32.xlu0 %v1179, 127
      %v1189 = vpop.permute.xlu0 %1188
      %1190 = vrot.lane.b32.xlu0 %v1180, 127
      %v1191 = vpop.permute.xlu0 %1190
      %1192 = vrot.lane.b32.xlu0 %v1181, 127
      %v1193 = vpop.permute.xlu0 %1192
      %v1194 = vsel %vm451, %v1189, %v1191
      %v1195 = vsel %vm451, %v1191, %v1193
      %v1200 = vsel %vm457, %v1184, 0
      %1202 = vmatpush.msra.mxu0 0.0
      %1203 = vmatpush.msra.mxu0 0.0
      %1204 = vmatpush.msra.mxu0 0.0
      %1205 = vmatpush.msra.mxu0 0.0
      %1206 = vmatpush.msra.mxu0 0.0
      %1207 = vmatpush.msra.mxu0 0.0
      %1208 = vmatpush.msra.mxu0 0.0
      %1209 = vmatpush.msra.mxu0 0.0
      %1210 = vmatpush.msra.mxu0 0.0
      %1211 = vmatpush.msra.mxu0 0.0
      %1212 = vmatpush.msra.mxu0 0.0
      %1213 = vmatpush.msra.mxu0 0.0
      %1214 = vmatpush.msra.mxu0 0.0
      %1215 = vmatpush.msra.mxu0 0.0
      %1216 = vmatpush.msra.mxu0 0.0
      %1217 = vmatpush.msra.mxu0 %v1194
      %1218 = vmatmul.f32.gmra.mxu0 %v1200
      %v1219 = vpop.f32.mrf.mxu0
      %v1220 = vadd.f32 0.0, %v1219
      %1221 = vdwg.mxu0
      %1222 = vmatpush.msra.mxu0 0.0
      %1223 = vmatpush.msra.mxu0 0.0
      %1224 = vmatpush.msra.mxu0 0.0
      %1225 = vmatpush.msra.mxu0 0.0
      %1226 = vmatpush.msra.mxu0 0.0
      %1227 = vmatpush.msra.mxu0 0.0
      %1228 = vmatpush.msra.mxu0 0.0
      %1229 = vmatpush.msra.mxu0 0.0
      %1230 = vmatpush.msra.mxu0 0.0
      %1231 = vmatpush.msra.mxu0 0.0
      %1232 = vmatpush.msra.mxu0 0.0
      %1233 = vmatpush.msra.mxu0 0.0
      %1234 = vmatpush.msra.mxu0 0.0
      %1235 = vmatpush.msra.mxu0 0.0
      %1236 = vmatpush.msra.mxu0 0.0
      %1237 = vmatpush.msra.mxu0 %v1195
      %1238 = vmatmul.f32.gmra.mxu0 %v1200
      %v1239 = vpop.f32.mrf.mxu0
      %v1240 = vadd.f32 0.0, %v1239
      %1241 = vdwg.mxu0
      %1242 = vmatpush.msra.mxu0 0.0
      %1243 = vmatpush.msra.mxu0 0.0
      %1244 = vmatpush.msra.mxu0 0.0
      %1245 = vmatpush.msra.mxu0 0.0
      %1246 = vmatpush.msra.mxu0 0.0
      %1247 = vmatpush.msra.mxu0 0.0
      %1248 = vmatpush.msra.mxu0 0.0
      %1249 = vmatpush.msra.mxu0 0.0
      %1250 = vmatpush.msra.mxu0 0.0
      %1251 = vmatpush.msra.mxu0 0.0
      %1252 = vmatpush.msra.mxu0 0.0
      %1253 = vmatpush.msra.mxu0 0.0
      %1254 = vmatpush.msra.mxu0 0.0
      %1255 = vmatpush.msra.mxu0 0.0
      %1256 = vmatpush.msra.mxu0 0.0
      %1257 = vmatpush.msra.mxu0 %v1193
      %1258 = vmatmul.f32.gmra.mxu0 %v1200
      %v1259 = vpop.f32.mrf.mxu0
      %v1260 = vadd.f32 0.0, %v1259
      %1261 = vdwg.mxu0
      %v1263 = vsel %vm457, %v1182, 0
      %1265 = vmatpush.msra.mxu0 0.0
      %1266 = vmatpush.msra.mxu0 0.0
      %1267 = vmatpush.msra.mxu0 0.0
      %1268 = vmatpush.msra.mxu0 0.0
      %1269 = vmatpush.msra.mxu0 0.0
      %1270 = vmatpush.msra.mxu0 0.0
      %1271 = vmatpush.msra.mxu0 0.0
      %1272 = vmatpush.msra.mxu0 0.0
      %1273 = vmatpush.msra.mxu0 0.0
      %1274 = vmatpush.msra.mxu0 0.0
      %1275 = vmatpush.msra.mxu0 0.0
      %1276 = vmatpush.msra.mxu0 0.0
      %1277 = vmatpush.msra.mxu0 0.0
      %1278 = vmatpush.msra.mxu0 0.0
      %1279 = vmatpush.msra.mxu0 0.0
      %1280 = vmatpush.msra.mxu0 %v1179
      %1281 = vmatmul.f32.gmra.mxu0 %v1263
      %v1282 = vpop.f32.mrf.mxu0
      %v1283 = vadd.f32 %v1220, %v1282
      %1284 = vdwg.mxu0
      %1285 = vmatpush.msra.mxu0 0.0
      %1286 = vmatpush.msra.mxu0 0.0
      %1287 = vmatpush.msra.mxu0 0.0
      %1288 = vmatpush.msra.mxu0 0.0
      %1289 = vmatpush.msra.mxu0 0.0
      %1290 = vmatpush.msra.mxu0 0.0
      %1291 = vmatpush.msra.mxu0 0.0
      %1292 = vmatpush.msra.mxu0 0.0
      %1293 = vmatpush.msra.mxu0 0.0
      %1294 = vmatpush.msra.mxu0 0.0
      %1295 = vmatpush.msra.mxu0 0.0
      %1296 = vmatpush.msra.mxu0 0.0
      %1297 = vmatpush.msra.mxu0 0.0
      %1298 = vmatpush.msra.mxu0 0.0
      %1299 = vmatpush.msra.mxu0 0.0
      %1300 = vmatpush.msra.mxu0 %v1180
      %1301 = vmatmul.f32.gmra.mxu0 %v1263
      %v1302 = vpop.f32.mrf.mxu0
      %v1303 = vadd.f32 %v1240, %v1302
      %1304 = vdwg.mxu0
      %1305 = vmatpush.msra.mxu0 0.0
      %1306 = vmatpush.msra.mxu0 0.0
      %1307 = vmatpush.msra.mxu0 0.0
      %1308 = vmatpush.msra.mxu0 0.0
      %1309 = vmatpush.msra.mxu0 0.0
      %1310 = vmatpush.msra.mxu0 0.0
      %1311 = vmatpush.msra.mxu0 0.0
      %1312 = vmatpush.msra.mxu0 0.0
      %1313 = vmatpush.msra.mxu0 0.0
      %1314 = vmatpush.msra.mxu0 0.0
      %1315 = vmatpush.msra.mxu0 0.0
      %1316 = vmatpush.msra.mxu0 0.0
      %1317 = vmatpush.msra.mxu0 0.0
      %1318 = vmatpush.msra.mxu0 0.0
      %1319 = vmatpush.msra.mxu0 0.0
      %1320 = vmatpush.msra.mxu0 %v1181
      %1321 = vmatmul.f32.gmra.mxu0 %v1263
      %v1322 = vpop.f32.mrf.mxu0
      %v1323 = vadd.f32 %v1260, %v1322
      %1324 = vdwg.mxu0
      %s1325 = scalar_lea.vmem %s3, 16
      %v1326 = vld [vmem:[%s1325] sm:$0xff]
      %1327 = vrot.lane.b32.xlu0 %v1179, 126
      %v1328 = vpop.permute.xlu0 %1327
      %1329 = vrot.lane.b32.xlu0 %v1180, 126
      %v1330 = vpop.permute.xlu0 %1329
      %1331 = vrot.lane.b32.xlu0 %v1181, 126
      %v1332 = vpop.permute.xlu0 %1331
      %v1333 = vsel %vm592, %v1328, %v1330
      %v1334 = vsel %vm592, %v1330, %v1332
      %v1339 = vsel %vm457, %v1326, 0
      %1341 = vmatpush.msra.mxu0 0.0
      %1342 = vmatpush.msra.mxu0 0.0
      %1343 = vmatpush.msra.mxu0 0.0
      %1344 = vmatpush.msra.mxu0 0.0
      %1345 = vmatpush.msra.mxu0 0.0
      %1346 = vmatpush.msra.mxu0 0.0
      %1347 = vmatpush.msra.mxu0 0.0
      %1348 = vmatpush.msra.mxu0 0.0
      %1349 = vmatpush.msra.mxu0 0.0
      %1350 = vmatpush.msra.mxu0 0.0
      %1351 = vmatpush.msra.mxu0 0.0
      %1352 = vmatpush.msra.mxu0 0.0
      %1353 = vmatpush.msra.mxu0 0.0
      %1354 = vmatpush.msra.mxu0 0.0
      %1355 = vmatpush.msra.mxu0 0.0
      %1356 = vmatpush.msra.mxu0 %v1333
      %1357 = vmatmul.f32.gmra.mxu0 %v1339
      %v1358 = vpop.f32.mrf.mxu0
      %v1359 = vadd.f32 0.0, %v1358
      %1360 = vdwg.mxu0
      %1361 = vmatpush.msra.mxu0 0.0
      %1362 = vmatpush.msra.mxu0 0.0
      %1363 = vmatpush.msra.mxu0 0.0
      %1364 = vmatpush.msra.mxu0 0.0
      %1365 = vmatpush.msra.mxu0 0.0
      %1366 = vmatpush.msra.mxu0 0.0
      %1367 = vmatpush.msra.mxu0 0.0
      %1368 = vmatpush.msra.mxu0 0.0
      %1369 = vmatpush.msra.mxu0 0.0
      %1370 = vmatpush.msra.mxu0 0.0
      %1371 = vmatpush.msra.mxu0 0.0
      %1372 = vmatpush.msra.mxu0 0.0
      %1373 = vmatpush.msra.mxu0 0.0
      %1374 = vmatpush.msra.mxu0 0.0
      %1375 = vmatpush.msra.mxu0 0.0
      %1376 = vmatpush.msra.mxu0 %v1334
      %1377 = vmatmul.f32.gmra.mxu0 %v1339
      %v1378 = vpop.f32.mrf.mxu0
      %v1379 = vadd.f32 0.0, %v1378
      %1380 = vdwg.mxu0
      %1381 = vmatpush.msra.mxu0 0.0
      %1382 = vmatpush.msra.mxu0 0.0
      %1383 = vmatpush.msra.mxu0 0.0
      %1384 = vmatpush.msra.mxu0 0.0
      %1385 = vmatpush.msra.mxu0 0.0
      %1386 = vmatpush.msra.mxu0 0.0
      %1387 = vmatpush.msra.mxu0 0.0
      %1388 = vmatpush.msra.mxu0 0.0
      %1389 = vmatpush.msra.mxu0 0.0
      %1390 = vmatpush.msra.mxu0 0.0
      %1391 = vmatpush.msra.mxu0 0.0
      %1392 = vmatpush.msra.mxu0 0.0
      %1393 = vmatpush.msra.mxu0 0.0
      %1394 = vmatpush.msra.mxu0 0.0
      %1395 = vmatpush.msra.mxu0 0.0
      %1396 = vmatpush.msra.mxu0 %v1332
      %1397 = vmatmul.f32.gmra.mxu0 %v1339
      %v1398 = vpop.f32.mrf.mxu0
      %v1399 = vadd.f32 0.0, %v1398
      %1400 = vdwg.mxu0
      %v1401 = vadd.f32 %v1283, %v1359
      %v1402 = vadd.f32 %v1303, %v1379
      %v1403 = vadd.f32 %v1323, %v1399
      %s1404 = scalar_lea.vmem %s3, 24
      %v1405 = vld [vmem:[%s1404] sm:$0xff]
      %1406 = vrot.lane.b32.xlu0 %v1179, 110
      %v1407 = vpop.permute.xlu0 %1406
      %1408 = vrot.lane.b32.xlu0 %v1180, 110
      %v1409 = vpop.permute.xlu0 %1408
      %1410 = vrot.lane.b32.xlu0 %v1181, 110
      %v1411 = vpop.permute.xlu0 %1410
      %v1412 = vsel %vm672, %v1407, %v1409
      %v1413 = vsel %vm672, %v1409, %v1411
      %v1418 = vsel %vm457, %v1405, 0
      %1420 = vmatpush.msra.mxu0 0.0
      %1421 = vmatpush.msra.mxu0 0.0
      %1422 = vmatpush.msra.mxu0 0.0
      %1423 = vmatpush.msra.mxu0 0.0
      %1424 = vmatpush.msra.mxu0 0.0
      %1425 = vmatpush.msra.mxu0 0.0
      %1426 = vmatpush.msra.mxu0 0.0
      %1427 = vmatpush.msra.mxu0 0.0
      %1428 = vmatpush.msra.mxu0 0.0
      %1429 = vmatpush.msra.mxu0 0.0
      %1430 = vmatpush.msra.mxu0 0.0
      %1431 = vmatpush.msra.mxu0 0.0
      %1432 = vmatpush.msra.mxu0 0.0
      %1433 = vmatpush.msra.mxu0 0.0
      %1434 = vmatpush.msra.mxu0 0.0
      %1435 = vmatpush.msra.mxu0 %v1412
      %1436 = vmatmul.f32.gmra.mxu0 %v1418
      %v1437 = vpop.f32.mrf.mxu0
      %v1438 = vadd.f32 0.0, %v1437
      %1439 = vdwg.mxu0
      %1440 = vmatpush.msra.mxu0 0.0
      %1441 = vmatpush.msra.mxu0 0.0
      %1442 = vmatpush.msra.mxu0 0.0
      %1443 = vmatpush.msra.mxu0 0.0
      %1444 = vmatpush.msra.mxu0 0.0
      %1445 = vmatpush.msra.mxu0 0.0
      %1446 = vmatpush.msra.mxu0 0.0
      %1447 = vmatpush.msra.mxu0 0.0
      %1448 = vmatpush.msra.mxu0 0.0
      %1449 = vmatpush.msra.mxu0 0.0
      %1450 = vmatpush.msra.mxu0 0.0
      %1451 = vmatpush.msra.mxu0 0.0
      %1452 = vmatpush.msra.mxu0 0.0
      %1453 = vmatpush.msra.mxu0 0.0
      %1454 = vmatpush.msra.mxu0 0.0
      %1455 = vmatpush.msra.mxu0 %v1413
      %1456 = vmatmul.f32.gmra.mxu0 %v1418
      %v1457 = vpop.f32.mrf.mxu0
      %v1458 = vadd.f32 0.0, %v1457
      %1459 = vdwg.mxu0
      %1460 = vmatpush.msra.mxu0 0.0
      %1461 = vmatpush.msra.mxu0 0.0
      %1462 = vmatpush.msra.mxu0 0.0
      %1463 = vmatpush.msra.mxu0 0.0
      %1464 = vmatpush.msra.mxu0 0.0
      %1465 = vmatpush.msra.mxu0 0.0
      %1466 = vmatpush.msra.mxu0 0.0
      %1467 = vmatpush.msra.mxu0 0.0
      %1468 = vmatpush.msra.mxu0 0.0
      %1469 = vmatpush.msra.mxu0 0.0
      %1470 = vmatpush.msra.mxu0 0.0
      %1471 = vmatpush.msra.mxu0 0.0
      %1472 = vmatpush.msra.mxu0 0.0
      %1473 = vmatpush.msra.mxu0 0.0
      %1474 = vmatpush.msra.mxu0 0.0
      %1475 = vmatpush.msra.mxu0 %v1411
      %1476 = vmatmul.f32.gmra.mxu0 %v1418
      %v1477 = vpop.f32.mrf.mxu0
      %v1478 = vadd.f32 0.0, %v1477
      %1479 = vdwg.mxu0
      %v1480 = vadd.f32 %v1401, %v1438
      %v1481 = vadd.f32 %v1402, %v1458
      %v1482 = vadd.f32 %v1403, %v1478
      %s1483 = scalar_lea.vmem %s3, 32
      %v1484 = vld [vmem:[%s1483] sm:$0xff]
      %1485 = vrot.lane.b32.xlu0 %v1179, 109
      %v1486 = vpop.permute.xlu0 %1485
      %1487 = vrot.lane.b32.xlu0 %v1180, 109
      %v1488 = vpop.permute.xlu0 %1487
      %1489 = vrot.lane.b32.xlu0 %v1181, 109
      %v1490 = vpop.permute.xlu0 %1489
      %v1491 = vsel %vm752, %v1486, %v1488
      %v1492 = vsel %vm752, %v1488, %v1490
      %v1497 = vsel %vm457, %v1484, 0
      %1499 = vmatpush.msra.mxu0 0.0
      %1500 = vmatpush.msra.mxu0 0.0
      %1501 = vmatpush.msra.mxu0 0.0
      %1502 = vmatpush.msra.mxu0 0.0
      %1503 = vmatpush.msra.mxu0 0.0
      %1504 = vmatpush.msra.mxu0 0.0
      %1505 = vmatpush.msra.mxu0 0.0
      %1506 = vmatpush.msra.mxu0 0.0
      %1507 = vmatpush.msra.mxu0 0.0
      %1508 = vmatpush.msra.mxu0 0.0
      %1509 = vmatpush.msra.mxu0 0.0
      %1510 = vmatpush.msra.mxu0 0.0
      %1511 = vmatpush.msra.mxu0 0.0
      %1512 = vmatpush.msra.mxu0 0.0
      %1513 = vmatpush.msra.mxu0 0.0
      %1514 = vmatpush.msra.mxu0 %v1491
      %1515 = vmatmul.f32.gmra.mxu0 %v1497
      %v1516 = vpop.f32.mrf.mxu0
      %v1517 = vadd.f32 0.0, %v1516
      %1518 = vdwg.mxu0
      %1519 = vmatpush.msra.mxu0 0.0
      %1520 = vmatpush.msra.mxu0 0.0
      %1521 = vmatpush.msra.mxu0 0.0
      %1522 = vmatpush.msra.mxu0 0.0
      %1523 = vmatpush.msra.mxu0 0.0
      %1524 = vmatpush.msra.mxu0 0.0
      %1525 = vmatpush.msra.mxu0 0.0
      %1526 = vmatpush.msra.mxu0 0.0
      %1527 = vmatpush.msra.mxu0 0.0
      %1528 = vmatpush.msra.mxu0 0.0
      %1529 = vmatpush.msra.mxu0 0.0
      %1530 = vmatpush.msra.mxu0 0.0
      %1531 = vmatpush.msra.mxu0 0.0
      %1532 = vmatpush.msra.mxu0 0.0
      %1533 = vmatpush.msra.mxu0 0.0
      %1534 = vmatpush.msra.mxu0 %v1492
      %1535 = vmatmul.f32.gmra.mxu0 %v1497
      %v1536 = vpop.f32.mrf.mxu0
      %v1537 = vadd.f32 0.0, %v1536
      %1538 = vdwg.mxu0
      %1539 = vmatpush.msra.mxu0 0.0
      %1540 = vmatpush.msra.mxu0 0.0
      %1541 = vmatpush.msra.mxu0 0.0
      %1542 = vmatpush.msra.mxu0 0.0
      %1543 = vmatpush.msra.mxu0 0.0
      %1544 = vmatpush.msra.mxu0 0.0
      %1545 = vmatpush.msra.mxu0 0.0
      %1546 = vmatpush.msra.mxu0 0.0
      %1547 = vmatpush.msra.mxu0 0.0
      %1548 = vmatpush.msra.mxu0 0.0
      %1549 = vmatpush.msra.mxu0 0.0
      %1550 = vmatpush.msra.mxu0 0.0
      %1551 = vmatpush.msra.mxu0 0.0
      %1552 = vmatpush.msra.mxu0 0.0
      %1553 = vmatpush.msra.mxu0 0.0
      %1554 = vmatpush.msra.mxu0 %v1490
      %1555 = vmatmul.f32.gmra.mxu0 %v1497
      %v1556 = vpop.f32.mrf.mxu0
      %v1557 = vadd.f32 0.0, %v1556
      %1558 = vdwg.mxu0
      %v1559 = vadd.f32 %v1480, %v1517
      %v1560 = vadd.f32 %v1481, %v1537
      %v1561 = vadd.f32 %v1482, %v1557
      %s1562 = scalar_lea.vmem %s3, 40
      %v1563 = vld [vmem:[%s1562] sm:$0xff]
      %1564 = vrot.lane.b32.xlu0 %v1179, 108
      %v1565 = vpop.permute.xlu0 %1564
      %1566 = vrot.lane.b32.xlu0 %v1180, 108
      %v1567 = vpop.permute.xlu0 %1566
      %1568 = vrot.lane.b32.xlu0 %v1181, 108
      %v1569 = vpop.permute.xlu0 %1568
      %v1570 = vsel %vm832, %v1565, %v1567
      %v1571 = vsel %vm832, %v1567, %v1569
      %v1576 = vsel %vm457, %v1563, 0
      %1578 = vmatpush.msra.mxu0 0.0
      %1579 = vmatpush.msra.mxu0 0.0
      %1580 = vmatpush.msra.mxu0 0.0
      %1581 = vmatpush.msra.mxu0 0.0
      %1582 = vmatpush.msra.mxu0 0.0
      %1583 = vmatpush.msra.mxu0 0.0
      %1584 = vmatpush.msra.mxu0 0.0
      %1585 = vmatpush.msra.mxu0 0.0
      %1586 = vmatpush.msra.mxu0 0.0
      %1587 = vmatpush.msra.mxu0 0.0
      %1588 = vmatpush.msra.mxu0 0.0
      %1589 = vmatpush.msra.mxu0 0.0
      %1590 = vmatpush.msra.mxu0 0.0
      %1591 = vmatpush.msra.mxu0 0.0
      %1592 = vmatpush.msra.mxu0 0.0
      %1593 = vmatpush.msra.mxu0 %v1570
      %1594 = vmatmul.f32.gmra.mxu0 %v1576
      %v1595 = vpop.f32.mrf.mxu0
      %v1596 = vadd.f32 0.0, %v1595
      %1597 = vdwg.mxu0
      %1598 = vmatpush.msra.mxu0 0.0
      %1599 = vmatpush.msra.mxu0 0.0
      %1600 = vmatpush.msra.mxu0 0.0
      %1601 = vmatpush.msra.mxu0 0.0
      %1602 = vmatpush.msra.mxu0 0.0
      %1603 = vmatpush.msra.mxu0 0.0
      %1604 = vmatpush.msra.mxu0 0.0
      %1605 = vmatpush.msra.mxu0 0.0
      %1606 = vmatpush.msra.mxu0 0.0
      %1607 = vmatpush.msra.mxu0 0.0
      %1608 = vmatpush.msra.mxu0 0.0
      %1609 = vmatpush.msra.mxu0 0.0
      %1610 = vmatpush.msra.mxu0 0.0
      %1611 = vmatpush.msra.mxu0 0.0
      %1612 = vmatpush.msra.mxu0 0.0
      %1613 = vmatpush.msra.mxu0 %v1571
      %1614 = vmatmul.f32.gmra.mxu0 %v1576
      %v1615 = vpop.f32.mrf.mxu0
      %v1616 = vadd.f32 0.0, %v1615
      %1617 = vdwg.mxu0
      %1618 = vmatpush.msra.mxu0 0.0
      %1619 = vmatpush.msra.mxu0 0.0
      %1620 = vmatpush.msra.mxu0 0.0
      %1621 = vmatpush.msra.mxu0 0.0
      %1622 = vmatpush.msra.mxu0 0.0
      %1623 = vmatpush.msra.mxu0 0.0
      %1624 = vmatpush.msra.mxu0 0.0
      %1625 = vmatpush.msra.mxu0 0.0
      %1626 = vmatpush.msra.mxu0 0.0
      %1627 = vmatpush.msra.mxu0 0.0
      %1628 = vmatpush.msra.mxu0 0.0
      %1629 = vmatpush.msra.mxu0 0.0
      %1630 = vmatpush.msra.mxu0 0.0
      %1631 = vmatpush.msra.mxu0 0.0
      %1632 = vmatpush.msra.mxu0 0.0
      %1633 = vmatpush.msra.mxu0 %v1569
      %1634 = vmatmul.f32.gmra.mxu0 %v1576
      %v1635 = vpop.f32.mrf.mxu0
      %v1636 = vadd.f32 0.0, %v1635
      %1637 = vdwg.mxu0
      %v1638 = vadd.f32 %v1559, %v1596
      %v1639 = vadd.f32 %v1560, %v1616
      %v1640 = vadd.f32 %v1561, %v1636
      %s1641 = scalar_lea.vmem %s3, 48
      %v1642 = vld [vmem:[%s1641] sm:$0xff]
      %1643 = vrot.lane.b32.xlu0 %v1179, 92
      %v1644 = vpop.permute.xlu0 %1643
      %1645 = vrot.lane.b32.xlu0 %v1180, 92
      %v1646 = vpop.permute.xlu0 %1645
      %1647 = vrot.lane.b32.xlu0 %v1181, 92
      %v1648 = vpop.permute.xlu0 %1647
      %v1649 = vsel %vm912, %v1644, %v1646
      %v1650 = vsel %vm912, %v1646, %v1648
      %v1655 = vsel %vm457, %v1642, 0
      %1657 = vmatpush.msra.mxu0 0.0
      %1658 = vmatpush.msra.mxu0 0.0
      %1659 = vmatpush.msra.mxu0 0.0
      %1660 = vmatpush.msra.mxu0 0.0
      %1661 = vmatpush.msra.mxu0 0.0
      %1662 = vmatpush.msra.mxu0 0.0
      %1663 = vmatpush.msra.mxu0 0.0
      %1664 = vmatpush.msra.mxu0 0.0
      %1665 = vmatpush.msra.mxu0 0.0
      %1666 = vmatpush.msra.mxu0 0.0
      %1667 = vmatpush.msra.mxu0 0.0
      %1668 = vmatpush.msra.mxu0 0.0
      %1669 = vmatpush.msra.mxu0 0.0
      %1670 = vmatpush.msra.mxu0 0.0
      %1671 = vmatpush.msra.mxu0 0.0
      %1672 = vmatpush.msra.mxu0 %v1649
      %1673 = vmatmul.f32.gmra.mxu0 %v1655
      %v1674 = vpop.f32.mrf.mxu0
      %v1675 = vadd.f32 0.0, %v1674
      %1676 = vdwg.mxu0
      %1677 = vmatpush.msra.mxu0 0.0
      %1678 = vmatpush.msra.mxu0 0.0
      %1679 = vmatpush.msra.mxu0 0.0
      %1680 = vmatpush.msra.mxu0 0.0
      %1681 = vmatpush.msra.mxu0 0.0
      %1682 = vmatpush.msra.mxu0 0.0
      %1683 = vmatpush.msra.mxu0 0.0
      %1684 = vmatpush.msra.mxu0 0.0
      %1685 = vmatpush.msra.mxu0 0.0
      %1686 = vmatpush.msra.mxu0 0.0
      %1687 = vmatpush.msra.mxu0 0.0
      %1688 = vmatpush.msra.mxu0 0.0
      %1689 = vmatpush.msra.mxu0 0.0
      %1690 = vmatpush.msra.mxu0 0.0
      %1691 = vmatpush.msra.mxu0 0.0
      %1692 = vmatpush.msra.mxu0 %v1650
      %1693 = vmatmul.f32.gmra.mxu0 %v1655
      %v1694 = vpop.f32.mrf.mxu0
      %v1695 = vadd.f32 0.0, %v1694
      %1696 = vdwg.mxu0
      %1697 = vmatpush.msra.mxu0 0.0
      %1698 = vmatpush.msra.mxu0 0.0
      %1699 = vmatpush.msra.mxu0 0.0
      %1700 = vmatpush.msra.mxu0 0.0
      %1701 = vmatpush.msra.mxu0 0.0
      %1702 = vmatpush.msra.mxu0 0.0
      %1703 = vmatpush.msra.mxu0 0.0
      %1704 = vmatpush.msra.mxu0 0.0
      %1705 = vmatpush.msra.mxu0 0.0
      %1706 = vmatpush.msra.mxu0 0.0
      %1707 = vmatpush.msra.mxu0 0.0
      %1708 = vmatpush.msra.mxu0 0.0
      %1709 = vmatpush.msra.mxu0 0.0
      %1710 = vmatpush.msra.mxu0 0.0
      %1711 = vmatpush.msra.mxu0 0.0
      %1712 = vmatpush.msra.mxu0 %v1648
      %1713 = vmatmul.f32.gmra.mxu0 %v1655
      %v1714 = vpop.f32.mrf.mxu0
      %v1715 = vadd.f32 0.0, %v1714
      %1716 = vdwg.mxu0
      %v1717 = vadd.f32 %v1638, %v1675
      %v1718 = vadd.f32 %v1639, %v1695
      %v1719 = vadd.f32 %v1640, %v1715
      %s1720 = scalar_lea.vmem %s3, 56
      %v1721 = vld [vmem:[%s1720] sm:$0xff]
      %1722 = vrot.lane.b32.xlu0 %v1179, 91
      %v1723 = vpop.permute.xlu0 %1722
      %1724 = vrot.lane.b32.xlu0 %v1180, 91
      %v1725 = vpop.permute.xlu0 %1724
      %1726 = vrot.lane.b32.xlu0 %v1181, 91
      %v1727 = vpop.permute.xlu0 %1726
      %v1728 = vsel %vm992, %v1723, %v1725
      %v1729 = vsel %vm992, %v1725, %v1727
      %v1734 = vsel %vm457, %v1721, 0
      %1736 = vmatpush.msra.mxu0 0.0
      %1737 = vmatpush.msra.mxu0 0.0
      %1738 = vmatpush.msra.mxu0 0.0
      %1739 = vmatpush.msra.mxu0 0.0
      %1740 = vmatpush.msra.mxu0 0.0
      %1741 = vmatpush.msra.mxu0 0.0
      %1742 = vmatpush.msra.mxu0 0.0
      %1743 = vmatpush.msra.mxu0 0.0
      %1744 = vmatpush.msra.mxu0 0.0
      %1745 = vmatpush.msra.mxu0 0.0
      %1746 = vmatpush.msra.mxu0 0.0
      %1747 = vmatpush.msra.mxu0 0.0
      %1748 = vmatpush.msra.mxu0 0.0
      %1749 = vmatpush.msra.mxu0 0.0
      %1750 = vmatpush.msra.mxu0 0.0
      %1751 = vmatpush.msra.mxu0 %v1728
      %1752 = vmatmul.f32.gmra.mxu0 %v1734
      %v1753 = vpop.f32.mrf.mxu0
      %v1754 = vadd.f32 0.0, %v1753
      %1755 = vdwg.mxu0
      %1756 = vmatpush.msra.mxu0 0.0
      %1757 = vmatpush.msra.mxu0 0.0
      %1758 = vmatpush.msra.mxu0 0.0
      %1759 = vmatpush.msra.mxu0 0.0
      %1760 = vmatpush.msra.mxu0 0.0
      %1761 = vmatpush.msra.mxu0 0.0
      %1762 = vmatpush.msra.mxu0 0.0
      %1763 = vmatpush.msra.mxu0 0.0
      %1764 = vmatpush.msra.mxu0 0.0
      %1765 = vmatpush.msra.mxu0 0.0
      %1766 = vmatpush.msra.mxu0 0.0
      %1767 = vmatpush.msra.mxu0 0.0
      %1768 = vmatpush.msra.mxu0 0.0
      %1769 = vmatpush.msra.mxu0 0.0
      %1770 = vmatpush.msra.mxu0 0.0
      %1771 = vmatpush.msra.mxu0 %v1729
      %1772 = vmatmul.f32.gmra.mxu0 %v1734
      %v1773 = vpop.f32.mrf.mxu0
      %v1774 = vadd.f32 0.0, %v1773
      %1775 = vdwg.mxu0
      %1776 = vmatpush.msra.mxu0 0.0
      %1777 = vmatpush.msra.mxu0 0.0
      %1778 = vmatpush.msra.mxu0 0.0
      %1779 = vmatpush.msra.mxu0 0.0
      %1780 = vmatpush.msra.mxu0 0.0
      %1781 = vmatpush.msra.mxu0 0.0
      %1782 = vmatpush.msra.mxu0 0.0
      %1783 = vmatpush.msra.mxu0 0.0
      %1784 = vmatpush.msra.mxu0 0.0
      %1785 = vmatpush.msra.mxu0 0.0
      %1786 = vmatpush.msra.mxu0 0.0
      %1787 = vmatpush.msra.mxu0 0.0
      %1788 = vmatpush.msra.mxu0 0.0
      %1789 = vmatpush.msra.mxu0 0.0
      %1790 = vmatpush.msra.mxu0 0.0
      %1791 = vmatpush.msra.mxu0 %v1727
      %1792 = vmatmul.f32.gmra.mxu0 %v1734
      %v1793 = vpop.f32.mrf.mxu0
      %v1794 = vadd.f32 0.0, %v1793
      %1795 = vdwg.mxu0
      %v1796 = vadd.f32 %v1717, %v1754
      %v1797 = vadd.f32 %v1718, %v1774
      %v1798 = vadd.f32 %v1719, %v1794
      %s1799 = scalar_lea.vmem %s3, 64
      %v1800 = vld [vmem:[%s1799] sm:$0xff]
      %1801 = vrot.lane.b32.xlu0 %v1179, 90
      %v1802 = vpop.permute.xlu0 %1801
      %1803 = vrot.lane.b32.xlu0 %v1180, 90
      %v1804 = vpop.permute.xlu0 %1803
      %1805 = vrot.lane.b32.xlu0 %v1181, 90
      %v1806 = vpop.permute.xlu0 %1805
      %v1807 = vsel %vm1072, %v1802, %v1804
      %v1808 = vsel %vm1072, %v1804, %v1806
      %v1813 = vsel %vm457, %v1800, 0
      %1815 = vmatpush.msra.mxu0 0.0
      %1816 = vmatpush.msra.mxu0 0.0
      %1817 = vmatpush.msra.mxu0 0.0
      %1818 = vmatpush.msra.mxu0 0.0
      %1819 = vmatpush.msra.mxu0 0.0
      %1820 = vmatpush.msra.mxu0 0.0
      %1821 = vmatpush.msra.mxu0 0.0
      %1822 = vmatpush.msra.mxu0 0.0
      %1823 = vmatpush.msra.mxu0 0.0
      %1824 = vmatpush.msra.mxu0 0.0
      %1825 = vmatpush.msra.mxu0 0.0
      %1826 = vmatpush.msra.mxu0 0.0
      %1827 = vmatpush.msra.mxu0 0.0
      %1828 = vmatpush.msra.mxu0 0.0
      %1829 = vmatpush.msra.mxu0 0.0
      %1830 = vmatpush.msra.mxu0 %v1807
      %1831 = vmatmul.f32.gmra.mxu0 %v1813
      %v1832 = vpop.f32.mrf.mxu0
      %v1833 = vadd.f32 0.0, %v1832
      %1834 = vdwg.mxu0
      %1835 = vmatpush.msra.mxu0 0.0
      %1836 = vmatpush.msra.mxu0 0.0
      %1837 = vmatpush.msra.mxu0 0.0
      %1838 = vmatpush.msra.mxu0 0.0
      %1839 = vmatpush.msra.mxu0 0.0
      %1840 = vmatpush.msra.mxu0 0.0
      %1841 = vmatpush.msra.mxu0 0.0
      %1842 = vmatpush.msra.mxu0 0.0
      %1843 = vmatpush.msra.mxu0 0.0
      %1844 = vmatpush.msra.mxu0 0.0
      %1845 = vmatpush.msra.mxu0 0.0
      %1846 = vmatpush.msra.mxu0 0.0
      %1847 = vmatpush.msra.mxu0 0.0
      %1848 = vmatpush.msra.mxu0 0.0
      %1849 = vmatpush.msra.mxu0 0.0
      %1850 = vmatpush.msra.mxu0 %v1808
      %1851 = vmatmul.f32.gmra.mxu0 %v1813
      %v1852 = vpop.f32.mrf.mxu0
      %v1853 = vadd.f32 0.0, %v1852
      %1854 = vdwg.mxu0
      %1855 = vmatpush.msra.mxu0 0.0
      %1856 = vmatpush.msra.mxu0 0.0
      %1857 = vmatpush.msra.mxu0 0.0
      %1858 = vmatpush.msra.mxu0 0.0
      %1859 = vmatpush.msra.mxu0 0.0
      %1860 = vmatpush.msra.mxu0 0.0
      %1861 = vmatpush.msra.mxu0 0.0
      %1862 = vmatpush.msra.mxu0 0.0
      %1863 = vmatpush.msra.mxu0 0.0
      %1864 = vmatpush.msra.mxu0 0.0
      %1865 = vmatpush.msra.mxu0 0.0
      %1866 = vmatpush.msra.mxu0 0.0
      %1867 = vmatpush.msra.mxu0 0.0
      %1868 = vmatpush.msra.mxu0 0.0
      %1869 = vmatpush.msra.mxu0 0.0
      %1870 = vmatpush.msra.mxu0 %v1806
      %1871 = vmatmul.f32.gmra.mxu0 %v1813
      %v1872 = vpop.f32.mrf.mxu0
      %v1873 = vadd.f32 0.0, %v1872
      %1874 = vdwg.mxu0
      %v1875 = vadd.f32 %v1796, %v1833
      %v1876 = vadd.f32 %v1797, %v1853
      %v1877 = vadd.f32 %v1798, %v1873
      %v1878 = vld [vmem:[%s4] sm:$0xff]
      %1880 = vset.pattern.permute.xlu0 0
      %1881 = vperm.xlu0 %1880, %v1878
      %v1882 = vpop.permute.xlu0 %1881
      %v1884 = vadd.f32 %v1875, %v1882
      %v1885 = vadd.f32 %v1876, %v1882
      %v1886 = vadd.f32 %v1877, %v1882
      %v1887 = vmax.f32 %v1884, 0.0
      %v1888 = vmax.f32 %v1885, 0.0
      %v1889 = vmax.f32 %v1886, 0.0
      %1890 = vst [vmem:[%s316] sm:$0xff] %v1887
      %1891 = vst [vmem:[%s316 + $0x8] sm:$0xff] %v1888
      %vm1892 = vcmask 261120
      %1893 = vst.msk [vmem:[%s316 + $0x10] sm:$0xff] %vm1892, %v1889
      %v1894 = vld [vmem:[%s316] sm:$0xff]
      %v1895 = vld [vmem:[%s5] sm:$0xff]
      %v1896 = vld [vmem:[%s5 + $0x8] sm:$0xff]
      %s1897 = scalar_lea.vmem %s5, 16
      %v1898 = vld [vmem:[%s1897] sm:$0xff]
      %v1899 = vld [vmem:[%s1897 + $0x8] sm:$0xff]
      %1901 = vrot.lane.b32.xlu0 %v1894, 110
      %v1902 = vpop.permute.xlu0 %1901
      %v1905 = vsel %vm457, %v1898, 0
      %v1908 = vsel %vm457, %v1899, 0
      %1910 = vmatpush.msra.mxu0 0.0
      %1911 = vmatpush.msra.mxu0 0.0
      %1912 = vmatpush.msra.mxu0 0.0
      %1913 = vmatpush.msra.mxu0 0.0
      %1914 = vmatpush.msra.mxu0 0.0
      %1915 = vmatpush.msra.mxu0 0.0
      %1916 = vmatpush.msra.mxu0 0.0
      %1917 = vmatpush.msra.mxu0 0.0
      %1918 = vmatpush.msra.mxu0 0.0
      %1919 = vmatpush.msra.mxu0 0.0
      %1920 = vmatpush.msra.mxu0 0.0
      %1921 = vmatpush.msra.mxu0 0.0
      %1922 = vmatpush.msra.mxu0 0.0
      %1923 = vmatpush.msra.mxu0 0.0
      %1924 = vmatpush.msra.mxu0 0.0
      %1925 = vmatpush.msra.mxu0 %v1902
      %1926 = vmatmul.f32.gmra.mxu0 %v1905
      %v1927 = vpop.f32.mrf.mxu0
      %v1928 = vadd.f32 0.0, %v1927
      %1929 = vmatmul.f32.gmra.mxu0 %v1908
      %v1930 = vpop.f32.mrf.mxu0
      %v1931 = vadd.f32 0.0, %v1930
      %1932 = vdwg.mxu0
      %v1934 = vsel %vm457, %v1895, 0
      %v1937 = vsel %vm457, %v1896, 0
      %1939 = vmatpush.msra.mxu0 0.0
      %1940 = vmatpush.msra.mxu0 0.0
      %1941 = vmatpush.msra.mxu0 0.0
      %1942 = vmatpush.msra.mxu0 0.0
      %1943 = vmatpush.msra.mxu0 0.0
      %1944 = vmatpush.msra.mxu0 0.0
      %1945 = vmatpush.msra.mxu0 0.0
      %1946 = vmatpush.msra.mxu0 0.0
      %1947 = vmatpush.msra.mxu0 0.0
      %1948 = vmatpush.msra.mxu0 0.0
      %1949 = vmatpush.msra.mxu0 0.0
      %1950 = vmatpush.msra.mxu0 0.0
      %1951 = vmatpush.msra.mxu0 0.0
      %1952 = vmatpush.msra.mxu0 0.0
      %1953 = vmatpush.msra.mxu0 0.0
      %1954 = vmatpush.msra.mxu0 %v1894
      %1955 = vmatmul.f32.gmra.mxu0 %v1934
      %v1956 = vpop.f32.mrf.mxu0
      %v1957 = vadd.f32 %v1928, %v1956
      %1958 = vmatmul.f32.gmra.mxu0 %v1937
      %v1959 = vpop.f32.mrf.mxu0
      %v1960 = vadd.f32 %v1931, %v1959
      %1961 = vdwg.mxu0
      %s1962 = scalar_lea.vmem %s5, 32
      %v1963 = vld [vmem:[%s1962] sm:$0xff]
      %v1964 = vld [vmem:[%s1962 + $0x8] sm:$0xff]
      %1965 = vrot.lane.b32.xlu0 %v1894, 92
      %v1966 = vpop.permute.xlu0 %1965
      %v1969 = vsel %vm457, %v1963, 0
      %v1972 = vsel %vm457, %v1964, 0
      %1974 = vmatpush.msra.mxu0 0.0
      %1975 = vmatpush.msra.mxu0 0.0
      %1976 = vmatpush.msra.mxu0 0.0
      %1977 = vmatpush.msra.mxu0 0.0
      %1978 = vmatpush.msra.mxu0 0.0
      %1979 = vmatpush.msra.mxu0 0.0
      %1980 = vmatpush.msra.mxu0 0.0
      %1981 = vmatpush.msra.mxu0 0.0
      %1982 = vmatpush.msra.mxu0 0.0
      %1983 = vmatpush.msra.mxu0 0.0
      %1984 = vmatpush.msra.mxu0 0.0
      %1985 = vmatpush.msra.mxu0 0.0
      %1986 = vmatpush.msra.mxu0 0.0
      %1987 = vmatpush.msra.mxu0 0.0
      %1988 = vmatpush.msra.mxu0 0.0
      %1989 = vmatpush.msra.mxu0 %v1966
      %1990 = vmatmul.f32.gmra.mxu0 %v1969
      %v1991 = vpop.f32.mrf.mxu0
      %v1992 = vadd.f32 0.0, %v1991
      %1993 = vmatmul.f32.gmra.mxu0 %v1972
      %v1994 = vpop.f32.mrf.mxu0
      %v1995 = vadd.f32 0.0, %v1994
      %1996 = vdwg.mxu0
      %v1997 = vadd.f32 %v1957, %v1992
      %v1998 = vadd.f32 %v1960, %v1995
      %s1999 = scalar_lea.vmem %s5, 48
      %v2000 = vld [vmem:[%s1999] sm:$0xff]
      %v2001 = vld [vmem:[%s1999 + $0x8] sm:$0xff]
      %2002 = vrot.lane.b32.xlu0 %v1894, 74
      %v2003 = vpop.permute.xlu0 %2002
      %v2006 = vsel %vm457, %v2000, 0
      %v2009 = vsel %vm457, %v2001, 0
      %2011 = vmatpush.msra.mxu0 0.0
      %2012 = vmatpush.msra.mxu0 0.0
      %2013 = vmatpush.msra.mxu0 0.0
      %2014 = vmatpush.msra.mxu0 0.0
      %2015 = vmatpush.msra.mxu0 0.0
      %2016 = vmatpush.msra.mxu0 0.0
      %2017 = vmatpush.msra.mxu0 0.0
      %2018 = vmatpush.msra.mxu0 0.0
      %2019 = vmatpush.msra.mxu0 0.0
      %2020 = vmatpush.msra.mxu0 0.0
      %2021 = vmatpush.msra.mxu0 0.0
      %2022 = vmatpush.msra.mxu0 0.0
      %2023 = vmatpush.msra.mxu0 0.0
      %2024 = vmatpush.msra.mxu0 0.0
      %2025 = vmatpush.msra.mxu0 0.0
      %2026 = vmatpush.msra.mxu0 %v2003
      %2027 = vmatmul.f32.gmra.mxu0 %v2006
      %v2028 = vpop.f32.mrf.mxu0
      %v2029 = vadd.f32 0.0, %v2028
      %2030 = vmatmul.f32.gmra.mxu0 %v2009
      %v2031 = vpop.f32.mrf.mxu0
      %v2032 = vadd.f32 0.0, %v2031
      %2033 = vdwg.mxu0
      %v2034 = vadd.f32 %v1997, %v2029
      %v2035 = vadd.f32 %v1998, %v2032
      %s2036 = scalar_lea.vmem %s5, 64
      %v2037 = vld [vmem:[%s2036] sm:$0xff]
      %v2038 = vld [vmem:[%s2036 + $0x8] sm:$0xff]
      %2039 = vrot.lane.b32.xlu0 %v1894, 56
      %v2040 = vpop.permute.xlu0 %2039
      %v2043 = vsel %vm457, %v2037, 0
      %v2046 = vsel %vm457, %v2038, 0
      %2048 = vmatpush.msra.mxu0 0.0
      %2049 = vmatpush.msra.mxu0 0.0
      %2050 = vmatpush.msra.mxu0 0.0
      %2051 = vmatpush.msra.mxu0 0.0
      %2052 = vmatpush.msra.mxu0 0.0
      %2053 = vmatpush.msra.mxu0 0.0
      %2054 = vmatpush.msra.mxu0 0.0
      %2055 = vmatpush.msra.mxu0 0.0
      %2056 = vmatpush.msra.mxu0 0.0
      %2057 = vmatpush.msra.mxu0 0.0
      %2058 = vmatpush.msra.mxu0 0.0
      %2059 = vmatpush.msra.mxu0 0.0
      %2060 = vmatpush.msra.mxu0 0.0
      %2061 = vmatpush.msra.mxu0 0.0
      %2062 = vmatpush.msra.mxu0 0.0
      %2063 = vmatpush.msra.mxu0 %v2040
      %2064 = vmatmul.f32.gmra.mxu0 %v2043
      %v2065 = vpop.f32.mrf.mxu0
      %v2066 = vadd.f32 0.0, %v2065
      %2067 = vmatmul.f32.gmra.mxu0 %v2046
      %v2068 = vpop.f32.mrf.mxu0
      %v2069 = vadd.f32 0.0, %v2068
      %2070 = vdwg.mxu0
      %v2071 = vadd.f32 %v2034, %v2066
      %v2072 = vadd.f32 %v2035, %v2069
      %s2073 = scalar_lea.vmem %s5, 80
      %v2074 = vld [vmem:[%s2073] sm:$0xff]
      %v2075 = vld [vmem:[%s2073 + $0x8] sm:$0xff]
      %2076 = vrot.lane.b32.xlu0 %v1894, 38
      %v2077 = vpop.permute.xlu0 %2076
      %v2080 = vsel %vm457, %v2074, 0
      %v2083 = vsel %vm457, %v2075, 0
      %2085 = vmatpush.msra.mxu0 0.0
      %2086 = vmatpush.msra.mxu0 0.0
      %2087 = vmatpush.msra.mxu0 0.0
      %2088 = vmatpush.msra.mxu0 0.0
      %2089 = vmatpush.msra.mxu0 0.0
      %2090 = vmatpush.msra.mxu0 0.0
      %2091 = vmatpush.msra.mxu0 0.0
      %2092 = vmatpush.msra.mxu0 0.0
      %2093 = vmatpush.msra.mxu0 0.0
      %2094 = vmatpush.msra.mxu0 0.0
      %2095 = vmatpush.msra.mxu0 0.0
      %2096 = vmatpush.msra.mxu0 0.0
      %2097 = vmatpush.msra.mxu0 0.0
      %2098 = vmatpush.msra.mxu0 0.0
      %2099 = vmatpush.msra.mxu0 0.0
      %2100 = vmatpush.msra.mxu0 %v2077
      %2101 = vmatmul.f32.gmra.mxu0 %v2080
      %v2102 = vpop.f32.mrf.mxu0
      %v2103 = vadd.f32 0.0, %v2102
      %2104 = vmatmul.f32.gmra.mxu0 %v2083
      %v2105 = vpop.f32.mrf.mxu0
      %v2106 = vadd.f32 0.0, %v2105
      %2107 = vdwg.mxu0
      %v2108 = vadd.f32 %v2071, %v2103
      %v2109 = vadd.f32 %v2072, %v2106
      %s2110 = scalar_lea.vmem %s5, 96
      %v2111 = vld [vmem:[%s2110] sm:$0xff]
      %v2112 = vld [vmem:[%s2110 + $0x8] sm:$0xff]
      %2113 = vrot.lane.b32.xlu0 %v1894, 20
      %v2114 = vpop.permute.xlu0 %2113
      %v2117 = vsel %vm457, %v2111, 0
      %v2120 = vsel %vm457, %v2112, 0
      %2122 = vmatpush.msra.mxu0 0.0
      %2123 = vmatpush.msra.mxu0 0.0
      %2124 = vmatpush.msra.mxu0 0.0
      %2125 = vmatpush.msra.mxu0 0.0
      %2126 = vmatpush.msra.mxu0 0.0
      %2127 = vmatpush.msra.mxu0 0.0
      %2128 = vmatpush.msra.mxu0 0.0
      %2129 = vmatpush.msra.mxu0 0.0
      %2130 = vmatpush.msra.mxu0 0.0
      %2131 = vmatpush.msra.mxu0 0.0
      %2132 = vmatpush.msra.mxu0 0.0
      %2133 = vmatpush.msra.mxu0 0.0
      %2134 = vmatpush.msra.mxu0 0.0
      %2135 = vmatpush.msra.mxu0 0.0
      %2136 = vmatpush.msra.mxu0 0.0
      %2137 = vmatpush.msra.mxu0 %v2114
      %2138 = vmatmul.f32.gmra.mxu0 %v2117
      %v2139 = vpop.f32.mrf.mxu0
      %v2140 = vadd.f32 0.0, %v2139
      %2141 = vmatmul.f32.gmra.mxu0 %v2120
      %v2142 = vpop.f32.mrf.mxu0
      %v2143 = vadd.f32 0.0, %v2142
      %2144 = vdwg.mxu0
      %v2145 = vadd.f32 %v2108, %v2140
      %v2146 = vadd.f32 %v2109, %v2143
      %v2147 = vld [vmem:[%s316] sm:$0xff]
      %v2148 = vld [vmem:[%s316 + $0x8] sm:$0xff]
      %s2149 = scalar_lea.vmem %s5, 112
      %v2150 = vld [vmem:[%s2149] sm:$0xff]
      %v2151 = vld [vmem:[%s2149 + $0x8] sm:$0xff]
      %2154 = vrot.lane.b32.xlu0 %v2147, 2
      %v2155 = vpop.permute.xlu0 %2154
      %2156 = vrot.lane.b32.xlu0 %v2148, 2
      %v2157 = vpop.permute.xlu0 %2156
      %vm2158 = vcmask 15360
      %v2159 = vsel %vm2158, %v2155, %v2157
      %v2162 = vsel %vm457, %v2150, 0
      %v2165 = vsel %vm457, %v2151, 0
      %2167 = vmatpush.msra.mxu0 0.0
      %2168 = vmatpush.msra.mxu0 0.0
      %2169 = vmatpush.msra.mxu0 0.0
      %2170 = vmatpush.msra.mxu0 0.0
      %2171 = vmatpush.msra.mxu0 0.0
      %2172 = vmatpush.msra.mxu0 0.0
      %2173 = vmatpush.msra.mxu0 0.0
      %2174 = vmatpush.msra.mxu0 0.0
      %2175 = vmatpush.msra.mxu0 0.0
      %2176 = vmatpush.msra.mxu0 0.0
      %2177 = vmatpush.msra.mxu0 0.0
      %2178 = vmatpush.msra.mxu0 0.0
      %2179 = vmatpush.msra.mxu0 0.0
      %2180 = vmatpush.msra.mxu0 0.0
      %2181 = vmatpush.msra.mxu0 0.0
      %2182 = vmatpush.msra.mxu0 %v2159
      %2183 = vmatmul.f32.gmra.mxu0 %v2162
      %v2184 = vpop.f32.mrf.mxu0
      %v2185 = vadd.f32 0.0, %v2184
      %2186 = vmatmul.f32.gmra.mxu0 %v2165
      %v2187 = vpop.f32.mrf.mxu0
      %v2188 = vadd.f32 0.0, %v2187
      %2189 = vdwg.mxu0
      %v2190 = vadd.f32 %v2145, %v2185
      %v2191 = vadd.f32 %v2146, %v2188
      %s2192 = scalar_lea.vmem %s5, 128
      %v2193 = vld [vmem:[%s2192] sm:$0xff]
      %v2194 = vld [vmem:[%s2192 + $0x8] sm:$0xff]
      %2195 = vrot.lane.b32.xlu0 %v2148, 112
      %v2196 = vpop.permute.xlu0 %2195
      %v2199 = vsel %vm457, %v2193, 0
      %v2202 = vsel %vm457, %v2194, 0
      %2204 = vmatpush.msra.mxu0 0.0
      %2205 = vmatpush.msra.mxu0 0.0
      %2206 = vmatpush.msra.mxu0 0.0
      %2207 = vmatpush.msra.mxu0 0.0
      %2208 = vmatpush.msra.mxu0 0.0
      %2209 = vmatpush.msra.mxu0 0.0
      %2210 = vmatpush.msra.mxu0 0.0
      %2211 = vmatpush.msra.mxu0 0.0
      %2212 = vmatpush.msra.mxu0 0.0
      %2213 = vmatpush.msra.mxu0 0.0
      %2214 = vmatpush.msra.mxu0 0.0
      %2215 = vmatpush.msra.mxu0 0.0
      %2216 = vmatpush.msra.mxu0 0.0
      %2217 = vmatpush.msra.mxu0 0.0
      %2218 = vmatpush.msra.mxu0 0.0
      %2219 = vmatpush.msra.mxu0 %v2196
      %2220 = vmatmul.f32.gmra.mxu0 %v2199
      %v2221 = vpop.f32.mrf.mxu0
      %v2222 = vadd.f32 0.0, %v2221
      %2223 = vmatmul.f32.gmra.mxu0 %v2202
      %v2224 = vpop.f32.mrf.mxu0
      %v2225 = vadd.f32 0.0, %v2224
      %2226 = vdwg.mxu0
      %v2227 = vadd.f32 %v2190, %v2222
      %v2228 = vadd.f32 %v2191, %v2225
      %s2229 = scalar_lea.vmem %s5, 144
      %v2230 = vld [vmem:[%s2229] sm:$0xff]
      %v2231 = vld [vmem:[%s2229 + $0x8] sm:$0xff]
      %2232 = vrot.lane.b32.xlu0 %v2148, 94
      %v2233 = vpop.permute.xlu0 %2232
      %v2236 = vsel %vm457, %v2230, 0
      %v2239 = vsel %vm457, %v2231, 0
      %2241 = vmatpush.msra.mxu0 0.0
      %2242 = vmatpush.msra.mxu0 0.0
      %2243 = vmatpush.msra.mxu0 0.0
      %2244 = vmatpush.msra.mxu0 0.0
      %2245 = vmatpush.msra.mxu0 0.0
      %2246 = vmatpush.msra.mxu0 0.0
      %2247 = vmatpush.msra.mxu0 0.0
      %2248 = vmatpush.msra.mxu0 0.0
      %2249 = vmatpush.msra.mxu0 0.0
      %2250 = vmatpush.msra.mxu0 0.0
      %2251 = vmatpush.msra.mxu0 0.0
      %2252 = vmatpush.msra.mxu0 0.0
      %2253 = vmatpush.msra.mxu0 0.0
      %2254 = vmatpush.msra.mxu0 0.0
      %2255 = vmatpush.msra.mxu0 0.0
      %2256 = vmatpush.msra.mxu0 %v2233
      %2257 = vmatmul.f32.gmra.mxu0 %v2236
      %v2258 = vpop.f32.mrf.mxu0
      %v2259 = vadd.f32 0.0, %v2258
      %2260 = vmatmul.f32.gmra.mxu0 %v2239
      %v2261 = vpop.f32.mrf.mxu0
      %v2262 = vadd.f32 0.0, %v2261
      %2263 = vdwg.mxu0
      %v2264 = vadd.f32 %v2227, %v2259
      %v2265 = vadd.f32 %v2228, %v2262
      %s2266 = scalar_lea.vmem %s5, 160
      %v2267 = vld [vmem:[%s2266] sm:$0xff]
      %v2268 = vld [vmem:[%s2266 + $0x8] sm:$0xff]
      %2269 = vrot.lane.b32.xlu0 %v2148, 76
      %v2270 = vpop.permute.xlu0 %2269
      %v2273 = vsel %vm457, %v2267, 0
      %v2276 = vsel %vm457, %v2268, 0
      %2278 = vmatpush.msra.mxu0 0.0
      %2279 = vmatpush.msra.mxu0 0.0
      %2280 = vmatpush.msra.mxu0 0.0
      %2281 = vmatpush.msra.mxu0 0.0
      %2282 = vmatpush.msra.mxu0 0.0
      %2283 = vmatpush.msra.mxu0 0.0
      %2284 = vmatpush.msra.mxu0 0.0
      %2285 = vmatpush.msra.mxu0 0.0
      %2286 = vmatpush.msra.mxu0 0.0
      %2287 = vmatpush.msra.mxu0 0.0
      %2288 = vmatpush.msra.mxu0 0.0
      %2289 = vmatpush.msra.mxu0 0.0
      %2290 = vmatpush.msra.mxu0 0.0
      %2291 = vmatpush.msra.mxu0 0.0
      %2292 = vmatpush.msra.mxu0 0.0
      %2293 = vmatpush.msra.mxu0 %v2270
      %2294 = vmatmul.f32.gmra.mxu0 %v2273
      %v2295 = vpop.f32.mrf.mxu0
      %v2296 = vadd.f32 0.0, %v2295
      %2297 = vmatmul.f32.gmra.mxu0 %v2276
      %v2298 = vpop.f32.mrf.mxu0
      %v2299 = vadd.f32 0.0, %v2298
      %2300 = vdwg.mxu0
      %v2301 = vadd.f32 %v2264, %v2296
      %v2302 = vadd.f32 %v2265, %v2299
      %s2303 = scalar_lea.vmem %s5, 176
      %v2304 = vld [vmem:[%s2303] sm:$0xff]
      %v2305 = vld [vmem:[%s2303 + $0x8] sm:$0xff]
      %2306 = vrot.lane.b32.xlu0 %v2148, 58
      %v2307 = vpop.permute.xlu0 %2306
      %v2310 = vsel %vm457, %v2304, 0
      %v2313 = vsel %vm457, %v2305, 0
      %2315 = vmatpush.msra.mxu0 0.0
      %2316 = vmatpush.msra.mxu0 0.0
      %2317 = vmatpush.msra.mxu0 0.0
      %2318 = vmatpush.msra.mxu0 0.0
      %2319 = vmatpush.msra.mxu0 0.0
      %2320 = vmatpush.msra.mxu0 0.0
      %2321 = vmatpush.msra.mxu0 0.0
      %2322 = vmatpush.msra.mxu0 0.0
      %2323 = vmatpush.msra.mxu0 0.0
      %2324 = vmatpush.msra.mxu0 0.0
      %2325 = vmatpush.msra.mxu0 0.0
      %2326 = vmatpush.msra.mxu0 0.0
      %2327 = vmatpush.msra.mxu0 0.0
      %2328 = vmatpush.msra.mxu0 0.0
      %2329 = vmatpush.msra.mxu0 0.0
      %2330 = vmatpush.msra.mxu0 %v2307
      %2331 = vmatmul.f32.gmra.mxu0 %v2310
      %v2332 = vpop.f32.mrf.mxu0
      %v2333 = vadd.f32 0.0, %v2332
      %2334 = vmatmul.f32.gmra.mxu0 %v2313
      %v2335 = vpop.f32.mrf.mxu0
      %v2336 = vadd.f32 0.0, %v2335
      %2337 = vdwg.mxu0
      %v2338 = vadd.f32 %v2301, %v2333
      %v2339 = vadd.f32 %v2302, %v2336
      %s2340 = scalar_lea.vmem %s5, 192
      %v2341 = vld [vmem:[%s2340] sm:$0xff]
      %v2342 = vld [vmem:[%s2340 + $0x8] sm:$0xff]
      %2343 = vrot.lane.b32.xlu0 %v2148, 40
      %v2344 = vpop.permute.xlu0 %2343
      %v2347 = vsel %vm457, %v2341, 0
      %v2350 = vsel %vm457, %v2342, 0
      %2352 = vmatpush.msra.mxu0 0.0
      %2353 = vmatpush.msra.mxu0 0.0
      %2354 = vmatpush.msra.mxu0 0.0
      %2355 = vmatpush.msra.mxu0 0.0
      %2356 = vmatpush.msra.mxu0 0.0
      %2357 = vmatpush.msra.mxu0 0.0
      %2358 = vmatpush.msra.mxu0 0.0
      %2359 = vmatpush.msra.mxu0 0.0
      %2360 = vmatpush.msra.mxu0 0.0
      %2361 = vmatpush.msra.mxu0 0.0
      %2362 = vmatpush.msra.mxu0 0.0
      %2363 = vmatpush.msra.mxu0 0.0
      %2364 = vmatpush.msra.mxu0 0.0
      %2365 = vmatpush.msra.mxu0 0.0
      %2366 = vmatpush.msra.mxu0 0.0
      %2367 = vmatpush.msra.mxu0 %v2344
      %2368 = vmatmul.f32.gmra.mxu0 %v2347
      %v2369 = vpop.f32.mrf.mxu0
      %v2370 = vadd.f32 0.0, %v2369
      %2371 = vmatmul.f32.gmra.mxu0 %v2350
      %v2372 = vpop.f32.mrf.mxu0
      %v2373 = vadd.f32 0.0, %v2372
      %2374 = vdwg.mxu0
      %v2375 = vadd.f32 %v2338, %v2370
      %v2376 = vadd.f32 %v2339, %v2373
      %s2377 = scalar_lea.vmem %s5, 208
      %v2378 = vld [vmem:[%s2377] sm:$0xff]
      %v2379 = vld [vmem:[%s2377 + $0x8] sm:$0xff]
      %2380 = vrot.lane.b32.xlu0 %v2148, 22
      %v2381 = vpop.permute.xlu0 %2380
      %v2384 = vsel %vm457, %v2378, 0
      %v2387 = vsel %vm457, %v2379, 0
      %2389 = vmatpush.msra.mxu0 0.0
      %2390 = vmatpush.msra.mxu0 0.0
      %2391 = vmatpush.msra.mxu0 0.0
      %2392 = vmatpush.msra.mxu0 0.0
      %2393 = vmatpush.msra.mxu0 0.0
      %2394 = vmatpush.msra.mxu0 0.0
      %2395 = vmatpush.msra.mxu0 0.0
      %2396 = vmatpush.msra.mxu0 0.0
      %2397 = vmatpush.msra.mxu0 0.0
      %2398 = vmatpush.msra.mxu0 0.0
      %2399 = vmatpush.msra.mxu0 0.0
      %2400 = vmatpush.msra.mxu0 0.0
      %2401 = vmatpush.msra.mxu0 0.0
      %2402 = vmatpush.msra.mxu0 0.0
      %2403 = vmatpush.msra.mxu0 0.0
      %2404 = vmatpush.msra.mxu0 %v2381
      %2405 = vmatmul.f32.gmra.mxu0 %v2384
      %v2406 = vpop.f32.mrf.mxu0
      %v2407 = vadd.f32 0.0, %v2406
      %2408 = vmatmul.f32.gmra.mxu0 %v2387
      %v2409 = vpop.f32.mrf.mxu0
      %v2410 = vadd.f32 0.0, %v2409
      %2411 = vdwg.mxu0
      %v2412 = vadd.f32 %v2375, %v2407
      %v2413 = vadd.f32 %v2376, %v2410
      %v2414 = vld [vmem:[%s316 + $0x8] sm:$0xff]
      %v2415 = vld [vmem:[%s316 + $0x10] sm:$0xff]
      %s2416 = scalar_lea.vmem %s5, 224
      %v2417 = vld [vmem:[%s2416] sm:$0xff]
      %v2418 = vld [vmem:[%s2416 + $0x8] sm:$0xff]
      %2421 = vrot.lane.b32.xlu0 %v2414, 4
      %v2422 = vpop.permute.xlu0 %2421
      %2423 = vrot.lane.b32.xlu0 %v2415, 4
      %v2424 = vpop.permute.xlu0 %2423
      %vm2425 = vcmask 31744
      %v2426 = vsel %vm2425, %v2422, %v2424
      %v2429 = vsel %vm457, %v2417, 0
      %v2432 = vsel %vm457, %v2418, 0
      %2434 = vmatpush.msra.mxu0 0.0
      %2435 = vmatpush.msra.mxu0 0.0
      %2436 = vmatpush.msra.mxu0 0.0
      %2437 = vmatpush.msra.mxu0 0.0
      %2438 = vmatpush.msra.mxu0 0.0
      %2439 = vmatpush.msra.mxu0 0.0
      %2440 = vmatpush.msra.mxu0 0.0
      %2441 = vmatpush.msra.mxu0 0.0
      %2442 = vmatpush.msra.mxu0 0.0
      %2443 = vmatpush.msra.mxu0 0.0
      %2444 = vmatpush.msra.mxu0 0.0
      %2445 = vmatpush.msra.mxu0 0.0
      %2446 = vmatpush.msra.mxu0 0.0
      %2447 = vmatpush.msra.mxu0 0.0
      %2448 = vmatpush.msra.mxu0 0.0
      %2449 = vmatpush.msra.mxu0 %v2426
      %2450 = vmatmul.f32.gmra.mxu0 %v2429
      %v2451 = vpop.f32.mrf.mxu0
      %v2452 = vadd.f32 0.0, %v2451
      %2453 = vmatmul.f32.gmra.mxu0 %v2432
      %v2454 = vpop.f32.mrf.mxu0
      %v2455 = vadd.f32 0.0, %v2454
      %2456 = vdwg.mxu0
      %v2457 = vadd.f32 %v2412, %v2452
      %v2458 = vadd.f32 %v2413, %v2455
      %s2459 = scalar_lea.vmem %s5, 240
      %v2460 = vld [vmem:[%s2459] sm:$0xff]
      %v2461 = vld [vmem:[%s2459 + $0x8] sm:$0xff]
      %2462 = vrot.lane.b32.xlu0 %v2415, 114
      %v2463 = vpop.permute.xlu0 %2462
      %v2466 = vsel %vm457, %v2460, 0
      %v2469 = vsel %vm457, %v2461, 0
      %2471 = vmatpush.msra.mxu0 0.0
      %2472 = vmatpush.msra.mxu0 0.0
      %2473 = vmatpush.msra.mxu0 0.0
      %2474 = vmatpush.msra.mxu0 0.0
      %2475 = vmatpush.msra.mxu0 0.0
      %2476 = vmatpush.msra.mxu0 0.0
      %2477 = vmatpush.msra.mxu0 0.0
      %2478 = vmatpush.msra.mxu0 0.0
      %2479 = vmatpush.msra.mxu0 0.0
      %2480 = vmatpush.msra.mxu0 0.0
      %2481 = vmatpush.msra.mxu0 0.0
      %2482 = vmatpush.msra.mxu0 0.0
      %2483 = vmatpush.msra.mxu0 0.0
      %2484 = vmatpush.msra.mxu0 0.0
      %2485 = vmatpush.msra.mxu0 0.0
      %2486 = vmatpush.msra.mxu0 %v2463
      %2487 = vmatmul.f32.gmra.mxu0 %v2466
      %v2488 = vpop.f32.mrf.mxu0
      %v2489 = vadd.f32 0.0, %v2488
      %2490 = vmatmul.f32.gmra.mxu0 %v2469
      %v2491 = vpop.f32.mrf.mxu0
      %v2492 = vadd.f32 0.0, %v2491
      %2493 = vdwg.mxu0
      %v2494 = vadd.f32 %v2457, %v2489
      %v2495 = vadd.f32 %v2458, %v2492
      %v2496 = vld [vmem:[%s6] sm:$0xff]
      %v2497 = vld [vmem:[%s6 + $0x8] sm:$0xff]
      %2499 = vset.pattern.permute.xlu0 0
      %2500 = vperm.xlu0 %2499, %v2496
      %v2501 = vpop.permute.xlu0 %2500
      %2504 = vset.pattern.permute.xlu0 0
      %2505 = vperm.xlu0 %2504, %v2497
      %v2506 = vpop.permute.xlu0 %2505
      %v2508 = vadd.f32 %v2494, %v2501
      %v2509 = vadd.f32 %v2495, %v2506
      %v2511 = vrot.slane %v2508, 1
      %2512 = vrot.lane.b32.xlu0 %v2511, 16
      %v2513 = vpop.permute.xlu0 %2512
      %v2515 = vrot.slane %v2508, 2
      %2516 = vrot.lane.b32.xlu0 %v2515, 32
      %v2517 = vpop.permute.xlu0 %2516
      %v2519 = vrot.slane %v2508, 3
      %2520 = vrot.lane.b32.xlu0 %v2519, 48
      %v2521 = vpop.permute.xlu0 %2520
      %v2523 = vrot.slane %v2508, 4
      %2524 = vrot.lane.b32.xlu0 %v2523, 64
      %v2525 = vpop.permute.xlu0 %2524
      %v2527 = vrot.slane %v2508, 5
      %2528 = vrot.lane.b32.xlu0 %v2527, 80
      %v2529 = vpop.permute.xlu0 %2528
      %v2531 = vrot.slane %v2508, 6
      %2532 = vrot.lane.b32.xlu0 %v2531, 96
      %v2533 = vpop.permute.xlu0 %2532
      %v2535 = vrot.slane %v2508, 7
      %2536 = vrot.lane.b32.xlu0 %v2535, 112
      %v2537 = vpop.permute.xlu0 %2536
      %v2540 = vrot.slane %v2509, 1
      %2541 = vrot.lane.b32.xlu0 %v2540, 16
      %v2542 = vpop.permute.xlu0 %2541
      %v2544 = vrot.slane %v2509, 2
      %2545 = vrot.lane.b32.xlu0 %v2544, 32
      %v2546 = vpop.permute.xlu0 %2545
      %v2548 = vrot.slane %v2509, 3
      %2549 = vrot.lane.b32.xlu0 %v2548, 48
      %v2550 = vpop.permute.xlu0 %2549
      %v2552 = vrot.slane %v2509, 4
      %2553 = vrot.lane.b32.xlu0 %v2552, 64
      %v2554 = vpop.permute.xlu0 %2553
      %v2556 = vrot.slane %v2509, 5
      %2557 = vrot.lane.b32.xlu0 %v2556, 80
      %v2558 = vpop.permute.xlu0 %2557
      %v2560 = vrot.slane %v2509, 6
      %2561 = vrot.lane.b32.xlu0 %v2560, 96
      %v2562 = vpop.permute.xlu0 %2561
      %v2564 = vrot.slane %v2509, 7
      %2565 = vrot.lane.b32.xlu0 %v2564, 112
      %v2566 = vpop.permute.xlu0 %2565
      %vm2568 = vcmask 130048
      %v2569 = vsel %vm2568, %v2508, %v2513
      %v2570 = vsel %vm1892, %v2569, %v2517
      %vm2571 = vcmask 392192
      %v2572 = vsel %vm2571, %v2570, %v2521
      %vm2573 = vcmask 523264
      %v2574 = vsel %vm2573, %v2572, %v2525
      %vm2575 = vcmask 654336
      %v2576 = vsel %vm2575, %v2574, %v2529
      %vm2577 = vcmask 785408
      %v2578 = vsel %vm2577, %v2576, %v2533
      %vm2579 = vcmask 916480
      %v2580 = vsel %vm2579, %v2578, %v2537
      %v2581 = vsel %vm2568, %v2509, %v2542
      %v2582 = vsel %vm1892, %v2581, %v2546
      %v2583 = vsel %vm2571, %v2582, %v2550
      %v2584 = vsel %vm2573, %v2583, %v2554
      %v2585 = vsel %vm2575, %v2584, %v2558
      %v2586 = vsel %vm2577, %v2585, %v2562
      %v2587 = vsel %vm2579, %v2586, %v2566
      %v2590 = vrot.slane %v2587, 7
      %vm2591 = vcmask 1040384
      %v2592 = vsel %vm2591, %v2580, %v2590
      %v2594 = vlaneseq
      %vm2595 = vcmp.ge.s32.totalorder %v2594, 0
      %vm2596 = vcmp.lt.s32.totalorder %v2594, 256
      %vm2597 = vmand %vm2595, %vm2596
      %2598 = vst.msk [vmem:[%s311] sm:$0x3] %vm2597, %v2592
      %p2599 = scmp.lt.s32.totalorder %s20, 1
      %s2600 = scalar_select %p2599, %s20, 1
      %s2601 = smul.addr %s2600, 2
      %s2602 = scalar_lea.vmem %s7, %s2601
      %p2603 = scmp.lt.s32.totalorder %s20, 1
      %s2604 = scalar_select %p2603, %s20, 1
      %s2605 = smul.addr %s2604, 3
      %s2606 = smul.addr %s2605, 8
      %s2607 = scalar_lea.vmem %s8, %s2606
      // Predicated region
      $region49: #{_fused_forward.1} parent=47 // pred_check
        %p2608 = pneg %p190
      $region50: #{_fused_forward.1} parent=47 // pred_check_branch
        %2610 = sbr.rel (%p2608) target = $region52
      $region51: #{_fused_forward.1} parent=47 // pred_region
        _
      $region52: #{_fused_forward.1} parent=47 // pred_fallthru
        _
      // Predicated region
      $region53: #{_fused_forward.1} parent=47 // pred_check
        %p2611 = pneg %p216
      $region54: #{_fused_forward.1} parent=47 // pred_check_branch
        %2613 = sbr.rel (%p2611) target = $region56
      $region55: #{_fused_forward.1} parent=47 // pred_region
        _
      $region56: #{_fused_forward.1} parent=47 // pred_fallthru
        _
    $region48: #{_fused_forward.1} parent=5 // pred_fallthru
      _
    %p2614 = scmp.le.s32.totalorder 2, %s15
    // Predicated region
    $region57: #{_fused_forward.1} parent=5 // pred_check
      %p2615 = pneg %p2614
    $region58: #{_fused_forward.1} parent=5 // pred_check_branch
      %2617 = sbr.rel (%p2615) target = $region60
    $region59: #{_fused_forward.1} parent=5 // pred_region
      %s2618 = ssub.s32 %s15, 2
      // Predicated region
      $region61: #{_fused_forward.1} parent=59 // pred_check
        %p2619 = pneg %p196
      $region62: #{_fused_forward.1} parent=59 // pred_check_branch
        %2621 = sbr.rel (%p2619) target = $region64
      $region63: #{_fused_forward.1} parent=59 // pred_region
        %p2622 = scmp.lt.s32.totalorder %s21, 1
        %s2623 = scalar_select %p2622, %s21, 1
        %s2624 = smul.addr %s2623, 2
        %s2625 = scalar_lea.vmem %s7, %s2624
      $region64: #{_fused_forward.1} parent=59 // pred_fallthru
        _
      // Predicated region
      $region65: #{_fused_forward.1} parent=59 // pred_check
        %p2626 = pneg %p222
      $region66: #{_fused_forward.1} parent=59 // pred_check_branch
        %2628 = sbr.rel (%p2626) target = $region68
      $region67: #{_fused_forward.1} parent=59 // pred_region
        %p2629 = scmp.lt.s32.totalorder %s21, 1
        %s2630 = scalar_select %p2629, %s21, 1
        %s2631 = smul.addr %s2630, 3
        %s2632 = smul.addr %s2631, 8
        %s2633 = scalar_lea.vmem %s8, %s2632
      $region68: #{_fused_forward.1} parent=59 // pred_fallthru
        _
    $region60: #{_fused_forward.1} parent=5 // pred_fallthru
      _
  $region6: #{_fused_forward.1} parent=0 // loop_footer
    %s19 = sadd.s32 1, %s15
  $region7: #{_fused_forward.1} parent=0 // loop_footer_branch
    %14 = sbr.rel target = $region3
  $region8: #{_fused_forward.1} parent=0 // loop_exit
    _

</llo_original>
